<compile_context>
chip_gen: v7x
topology: tpu7x:2x2x1
jax: 0.10.0
libtpu: 0.0.40
codegen_flags: <defaults>
</compile_context>

<pallas_src>
import math
import functools

import jax
import jax.numpy as jnp
from jax.experimental import pallas as pl
from jax.experimental.pallas import tpu as pltpu  # noqa: F401  (kept for TPU-specific tuning hooks)


# ----------------------------- fused Pallas kernel -----------------------------

def _bert_fused_kernel(
    emb_ref,      # (NTOK, H)     f32   embedding sum, flattened (batch*seq) tokens
    mask_ref,     # (NTOK, NTOK)  f32   block-diagonal additive attention mask
    eln_g_ref,    # (1, H)        f32   embedding LayerNorm gamma
    eln_b_ref,    # (1, H)        f32   embedding LayerNorm beta
    wq_ref,       # (L*HD, H, Dh) bf16  per-head Wq
    wk_ref,       # (L*HD, H, Dh) bf16  per-head Wk
    wv_ref,       # (L*HD, H, Dh) bf16  per-head Wv
    bq_ref,       # (L*HD, 1, Dh) f32
    bk_ref,       # (L*HD, 1, Dh) f32
    bv_ref,       # (L*HD, 1, Dh) f32
    wo_ref,       # (L*HD, Dh, H) bf16  per-head rows of Wo
    bo_ref,       # (L, 1, H)     f32
    ln1_g_ref,    # (L, 1, H)     f32
    ln1_b_ref,    # (L, 1, H)     f32
    w1_ref,       # (L, H, I)     bf16
    b1_ref,       # (L, 1, I)     f32
    w2_ref,       # (L, I, H)     bf16
    b2_ref,       # (L, 1, H)     f32
    ln2_g_ref,    # (L, 1, H)     f32
    ln2_b_ref,    # (L, 1, H)     f32
    whead_ref,    # (2, H)        bf16  rows: [linear_start, linear_end]
    logits_ref,   # (2, NTOK)     f32   output: start/end logits
    *, layers, heads, scale):

    def layernorm(x, g, b):
        # residual add is done by the caller -> fused "add & LN"
        mean = jnp.mean(x, axis=-1, keepdims=True)
        var = jnp.mean(jnp.square(x - mean), axis=-1, keepdims=True)
        return (x - mean) * jax.lax.rsqrt(var + 1e-12) * g + b

    def mm(x_f32, w_bf16):
        # bf16 MXU operands, f32 accumulation.
        return jnp.dot(x_f32.astype(jnp.bfloat16), w_bf16,
                       preferred_element_type=jnp.float32)

    mask = mask_ref[...]                                           # (NTOK, NTOK), hoisted once
    h = layernorm(emb_ref[...], eln_g_ref[...], eln_b_ref[...])    # (NTOK, H) f32

    for l in range(layers):                                        # static unroll (L=2)
        # ---- multi-head attention, per-head pre-split weights (no lane slicing) ----
        ctx = None
        for hh in range(heads):                                    # static unroll
            li = l * heads + hh
            q = mm(h, wq_ref[li]) + bq_ref[li]                     # (NTOK, Dh)
            k = mm(h, wk_ref[li]) + bk_ref[li]
            v = mm(h, wv_ref[li]) + bv_ref[li]
            # s = q @ k^T  (contract last dims -> no explicit transpose)
            s = jax.lax.dot_general(
                q.astype(jnp.bfloat16), k.astype(jnp.bfloat16),
                dimension_numbers=(((1,), (1,)), ((), ())),
                preferred_element_type=jnp.float32)                # (NTOK, NTOK)
            s = s * scale + mask                                   # scale in f32 after MXU
            s = s - jnp.max(s, axis=-1, keepdims=True)
            p = jnp.exp(s)
            # EUP reciprocal instead of VALU divide.
            p = p * pl.reciprocal(jnp.sum(p, axis=-1, keepdims=True), approx=True)
            pv = jnp.dot(p.astype(jnp.bfloat16), v.astype(jnp.bfloat16),
                         preferred_element_type=jnp.float32)       # (NTOK, Dh)
            # per-head slice of the output projection, accumulated in f32 (no concat)
            head_out = mm(pv, wo_ref[li])                          # (NTOK, H)
            ctx = head_out if ctx is None else ctx + head_out

        # ---- output projection bias + residual + LN (fused) ----
        h = layernorm(h + ctx + bo_ref[l], ln1_g_ref[l], ln1_b_ref[l])

        # ---- FFN + residual + LN (fused) ----
        # TODO(synk): tanh-approx GELU; HF/PyTorch BERT default is erf-GELU.
        ffn = jax.nn.gelu(mm(h, w1_ref[l]) + b1_ref[l], approximate=True)
        ffn = mm(ffn, w2_ref[l]) + b2_ref[l]
        h = layernorm(h + ffn, ln2_g_ref[l], ln2_b_ref[l])

    # ---- start/end head epilogue: (2,H) . (NTOK,H)^T -> one (2, NTOK) slab ----
    logits_ref[...] = jax.lax.dot_general(
        whead_ref[...], h.astype(jnp.bfloat16),
        dimension_numbers=(((1,), (1,)), ((), ())),
        preferred_element_type=jnp.float32)


# ------------------------------- model glue --------------------------------

class Config:
    vocab_size = 100
    type_vocab_size = 2
    max_position = 64
    hidden = 32
    heads = 2
    layers = 2
    intermediate = 64


def init_params(key, cfg):
    def nrm(k, shape, s=0.02):
        return s * jax.random.normal(k, shape, dtype=jnp.float32)

    keys = iter(jax.random.split(key, 8 + cfg.layers * 16))
    p = {
        "word_emb": nrm(next(keys), (cfg.vocab_size, cfg.hidden)),
        "pos_emb": nrm(next(keys), (cfg.max_position, cfg.hidden)),
        "type_emb": nrm(next(keys), (cfg.type_vocab_size, cfg.hidden)),
        "emb_ln_g": jnp.ones((cfg.hidden,), jnp.float32),
        "emb_ln_b": jnp.zeros((cfg.hidden,), jnp.float32),
        "layers": [],
        # NOTE: the PyTorch module inits these to torch.zeros(hidden); zeros
        # would make all logits trivially 0, so we use deterministic normals.
        "linear_start": nrm(next(keys), (cfg.hidden,)),
        "linear_end": nrm(next(keys), (cfg.hidden,)),
    }
    for _ in range(cfg.layers):
        lp = {
            "wq": nrm(next(keys), (cfg.hidden, cfg.hidden)),
            "bq": jnp.zeros((cfg.hidden,), jnp.float32),
            "wk": nrm(next(keys), (cfg.hidden, cfg.hidden)),
            "bk": jnp.zeros((cfg.hidden,), jnp.float32),
            "wv": nrm(next(keys), (cfg.hidden, cfg.hidden)),
            "bv": jnp.zeros((cfg.hidden,), jnp.float32),
            "wo": nrm(next(keys), (cfg.hidden, cfg.hidden)),
            "bo": jnp.zeros((cfg.hidden,), jnp.float32),
            "ln1_g": jnp.ones((cfg.hidden,), jnp.float32),
            "ln1_b": jnp.zeros((cfg.hidden,), jnp.float32),
            "w1": nrm(next(keys), (cfg.hidden, cfg.intermediate)),
            "b1": jnp.zeros((cfg.intermediate,), jnp.float32),
            "w2": nrm(next(keys), (cfg.intermediate, cfg.hidden)),
            "b2": jnp.zeros((cfg.hidden,), jnp.float32),
            "ln2_g": jnp.ones((cfg.hidden,), jnp.float32),
            "ln2_b": jnp.zeros((cfg.hidden,), jnp.float32),
        }
        p["layers"].append(lp)
    return p


def pack_params(params, cfg):
    """Stack per-layer weights; split Q/K/V/O per head at pack time (bf16 matmul weights)."""
    lps = params["layers"]
    H, HD, Dh = cfg.hidden, cfg.heads, cfg.hidden // cfg.heads

    def per_head_w(name):                       # (L*HD, H, Dh): column-split per head
        ws = []
        for lp in lps:
            w = lp[name].reshape(H, HD, Dh)
            ws.extend(w[:, hh, :] for hh in range(HD))
        return jnp.stack(ws).astype(jnp.bfloat16)

    def per_head_b(name):                       # (L*HD, 1, Dh)
        bs = []
        for lp in lps:
            b = lp[name].reshape(HD, Dh)
            bs.extend(b[hh][None, :] for hh in range(HD))
        return jnp.stack(bs).astype(jnp.float32)

    def wo_per_head():                          # (L*HD, Dh, H): row-split per head
        ws = []
        for lp in lps:
            w = lp["wo"].reshape(HD, Dh, H)
            ws.extend(w[hh] for hh in range(HD))
        return jnp.stack(ws).astype(jnp.bfloat16)

    def stk(fn, dtype=jnp.float32):
        return jnp.stack([fn(lp) for lp in lps]).astype(dtype)

    return {
        "word_emb": params["word_emb"],
        "pos_emb": params["pos_emb"],
        "type_emb": params["type_emb"],
        "emb_ln_g": params["emb_ln_g"].reshape(1, -1),
        "emb_ln_b": params["emb_ln_b"].reshape(1, -1),
        "wq": per_head_w("wq"), "wk": per_head_w("wk"), "wv": per_head_w("wv"),
        "bq": per_head_b("bq"), "bk": per_head_b("bk"), "bv": per_head_b("bv"),
        "wo": wo_per_head(),
        "bo": stk(lambda lp: lp["bo"][None, :]),
        "ln1_g": stk(lambda lp: lp["ln1_g"][None, :]),
        "ln1_b": stk(lambda lp: lp["ln1_b"][None, :]),
        "w1": stk(lambda lp: lp["w1"], jnp.bfloat16),
        "b1": stk(lambda lp: lp["b1"][None, :]),
        "w2": stk(lambda lp: lp["w2"], jnp.bfloat16),
        "b2": stk(lambda lp: lp["b2"][None, :]),
        "ln2_g": stk(lambda lp: lp["ln2_g"][None, :]),
        "ln2_b": stk(lambda lp: lp["ln2_b"][None, :]),
        "w_head": jnp.stack([params["linear_start"], params["linear_end"]],
                            axis=0).astype(jnp.bfloat16),           # (2, H)
    }


def my_model_forward(packed, cfg, input_id, attn_masks, token_type):
    """Mirrors MyModel.forward: BERT encoder -> per-token start/end logits."""
    B, S = input_id.shape
    H, HD = cfg.hidden, cfg.heads
    BS = B * S
    NTOK = ((BS + 15) // 16) * 16        # pad flattened token axis to bf16 sublane tile

    # Embedding gathers (data-dependent table lookups) stay as XLA glue.
    # TODO(synk): fuse via PrefetchScalarGridSpec-prefetched ids + in-kernel row gather
    # once sequence lengths make the extra XLA gather/dispatch a real cost.
    emb = (packed["word_emb"][input_id]
           + packed["pos_emb"][:S][None, :, :]
           + packed["type_emb"][token_type])                        # (B, S, H) f32
    emb_flat = jnp.pad(emb.reshape(BS, H), ((0, NTOK - BS), (0, 0)))  # (NTOK, H)

    # Block-diagonal additive mask over the flattened (padded) token axis:
    # 0 where query & key are in the same batch element and the key is a real,
    # unmasked token; -1e4 otherwise (exp underflows to exactly 0 -> identical to
    # per-batch softmax).
    tok_b = jnp.repeat(jnp.arange(B, dtype=jnp.int32), S)
    tok_b = jnp.pad(tok_b, (0, NTOK - BS), constant_values=-1)
    key_ok = jnp.pad(attn_masks.reshape(-1) > 0, (0, NTOK - BS))
    allowed = ((tok_b[:, None] == tok_b[None, :])
               & (tok_b[:, None] >= 0) & key_ok[None, :])
    mask_add = jnp.where(allowed, 0.0, -10000.0).astype(jnp.float32)  # (NTOK, NTOK)

    kernel = functools.partial(
        _bert_fused_kernel, layers=cfg.layers, heads=HD,
        scale=1.0 / math.sqrt(H // HD))

    # Single invocation (no grid): whole batch + all weights resident in VMEM.
    logits = pl.pallas_call(
        kernel,
        out_shape=jax.ShapeDtypeStruct((2, NTOK), jnp.float32),
    )(
        emb_flat, mask_add,
        packed["emb_ln_g"], packed["emb_ln_b"],
        packed["wq"], packed["wk"], packed["wv"],
        packed["bq"], packed["bk"], packed["bv"],
        packed["wo"], packed["bo"],
        packed["ln1_g"], packed["ln1_b"],
        packed["w1"], packed["b1"],
        packed["w2"], packed["b2"],
        packed["ln2_g"], packed["ln2_b"],
        packed["w_head"],
    )

    logits = logits[:, :BS].reshape(2, B, S)
    return logits[0], logits[1]                 # start_logits, end_logits


# --------------------------------- main -------------------------------------

if __name__ == "__main__":
    cfg = Config()
    B, S = 2, 8

    key = jax.random.PRNGKey(0)
    k_param, k_ids, k_type = jax.random.split(key, 3)

    params = init_params(k_param, cfg)
    packed = pack_params(params, cfg)

    input_id = jax.random.randint(k_ids, (B, S), 0, cfg.vocab_size, dtype=jnp.int32)
    token_type = jax.random.randint(k_type, (B, S), 0, cfg.type_vocab_size,
                                    dtype=jnp.int32)
    attn_masks = jnp.ones((B, S), dtype=jnp.int32).at[:, S - 2:].set(0)  # some padding

    fwd = jax.jit(lambda pk, ii, am, tt: my_model_forward(pk, cfg, ii, am, tt))
    start_logits, end_logits = fwd(packed, input_id, attn_masks, token_type)
    jax.block_until_ready((start_logits, end_logits))

    assert start_logits.shape == (B, S) and end_logits.shape == (B, S)
    assert start_logits.dtype == jnp.float32 and end_logits.dtype == jnp.float32
    print("KERNEL_OK")
</pallas_src>

<mosaic_0001>
module attributes {stable_mosaic.version = 11 : i64} {
  func.func @_bert_fused_kernel(%arg0: memref<16x32xf32, #tpu.memory_space<vmem>>, %arg1: memref<16x16xf32, #tpu.memory_space<vmem>>, %arg2: memref<1x32xf32, #tpu.memory_space<vmem>>, %arg3: memref<1x32xf32, #tpu.memory_space<vmem>>, %arg4: memref<4x32x16xbf16, #tpu.memory_space<vmem>>, %arg5: memref<4x32x16xbf16, #tpu.memory_space<vmem>>, %arg6: memref<4x32x16xbf16, #tpu.memory_space<vmem>>, %arg7: memref<4x1x16xf32, #tpu.memory_space<vmem>>, %arg8: memref<4x1x16xf32, #tpu.memory_space<vmem>>, %arg9: memref<4x1x16xf32, #tpu.memory_space<vmem>>, %arg10: memref<4x16x32xbf16, #tpu.memory_space<vmem>>, %arg11: memref<2x1x32xf32, #tpu.memory_space<vmem>>, %arg12: memref<2x1x32xf32, #tpu.memory_space<vmem>>, %arg13: memref<2x1x32xf32, #tpu.memory_space<vmem>>, %arg14: memref<2x32x64xbf16, #tpu.memory_space<vmem>>, %arg15: memref<2x1x64xf32, #tpu.memory_space<vmem>>, %arg16: memref<2x64x32xbf16, #tpu.memory_space<vmem>>, %arg17: memref<2x1x32xf32, #tpu.memory_space<vmem>>, %arg18: memref<2x1x32xf32, #tpu.memory_space<vmem>>, %arg19: memref<2x1x32xf32, #tpu.memory_space<vmem>>, %arg20: memref<2x32xbf16, #tpu.memory_space<vmem>>, %arg21: memref<2x16xf32, #tpu.memory_space<vmem>>) attributes {dimension_semantics = [], scalar_prefetch = 0 : i64, scratch_operands = 0 : i64, tpu.core_type = #tpu.core_type<tc>} {
    %c0 = arith.constant 0 : index
    %c0_0 = arith.constant 0 : index
    %0 = vector.load %arg1[%c0, %c0_0] : memref<16x16xf32, #tpu.memory_space<vmem>>, vector<16x16xf32>
    %c0_1 = arith.constant 0 : index
    %c0_2 = arith.constant 0 : index
    %1 = vector.load %arg0[%c0_1, %c0_2] : memref<16x32xf32, #tpu.memory_space<vmem>>, vector<16x32xf32>
    %c0_3 = arith.constant 0 : index
    %c0_4 = arith.constant 0 : index
    %2 = vector.load %arg2[%c0_3, %c0_4] : memref<1x32xf32, #tpu.memory_space<vmem>>, vector<1x32xf32>
    %c0_5 = arith.constant 0 : index
    %c0_6 = arith.constant 0 : index
    %3 = vector.load %arg3[%c0_5, %c0_6] : memref<1x32xf32, #tpu.memory_space<vmem>>, vector<1x32xf32>
    %cst = arith.constant dense<0.000000e+00> : vector<16xf32>
    %4 = vector.multi_reduction <add>, %1, %cst [1] : vector<16x32xf32> to vector<16xf32>
    %5 = vector.shape_cast %4 : vector<16xf32> to vector<16x1xf32>
    %cst_7 = arith.constant 3.200000e+01 : f32
    %6 = vector.broadcast %cst_7 : f32 to vector<16x1xf32>
    %7 = arith.divf %5, %6 : vector<16x1xf32>
    %8 = vector.broadcast %7 : vector<16x1xf32> to vector<16x32xf32>
    %9 = arith.subf %1, %8 : vector<16x32xf32>
    %10 = arith.mulf %9, %9 : vector<16x32xf32>
    %cst_8 = arith.constant dense<0.000000e+00> : vector<16xf32>
    %11 = vector.multi_reduction <add>, %10, %cst_8 [1] : vector<16x32xf32> to vector<16xf32>
    %12 = vector.shape_cast %11 : vector<16xf32> to vector<16x1xf32>
    %cst_9 = arith.constant 3.200000e+01 : f32
    %13 = vector.broadcast %cst_9 : f32 to vector<16x1xf32>
    %14 = arith.divf %12, %13 : vector<16x1xf32>
    %15 = vector.broadcast %7 : vector<16x1xf32> to vector<16x32xf32>
    %16 = arith.subf %1, %15 : vector<16x32xf32>
    %cst_10 = arith.constant 9.99999996E-13 : f32
    %17 = vector.broadcast %cst_10 : f32 to vector<16x1xf32>
    %18 = arith.addf %14, %17 : vector<16x1xf32>
    %19 = math.rsqrt %18 : vector<16x1xf32>
    %20 = vector.broadcast %19 : vector<16x1xf32> to vector<16x32xf32>
    %21 = arith.mulf %16, %20 : vector<16x32xf32>
    %22 = vector.broadcast %2 : vector<1x32xf32> to vector<16x32xf32>
    %23 = arith.mulf %21, %22 : vector<16x32xf32>
    %24 = vector.broadcast %3 : vector<1x32xf32> to vector<16x32xf32>
    %25 = arith.addf %23, %24 : vector<16x32xf32>
    %c0_11 = arith.constant 0 : index
    %c0_12 = arith.constant 0 : index
    %c0_13 = arith.constant 0 : index
    %26 = vector.load %arg4[%c0_11, %c0_12, %c0_13] : memref<4x32x16xbf16, #tpu.memory_space<vmem>>, vector<1x32x16xbf16>
    %27 = vector.shape_cast %26 : vector<1x32x16xbf16> to vector<32x16xbf16>
    %28 = arith.truncf %25 : vector<16x32xf32> to vector<16x32xbf16>
    %cst_14 = arith.constant dense<0.000000e+00> : vector<16x16xf32>
    %29 = tpu.matmul %28, %27, %cst_14 {dimension_numbers = #tpu.dot_dimension_numbers<[1], [0], [0], [1], [0, 0, 1, 1], [], []>} : vector<16x32xbf16>, vector<32x16xbf16>, vector<16x16xf32> -> vector<16x16xf32>
    %c0_15 = arith.constant 0 : index
    %c0_16 = arith.constant 0 : index
    %c0_17 = arith.constant 0 : index
    %30 = vector.load %arg7[%c0_15, %c0_16, %c0_17] : memref<4x1x16xf32, #tpu.memory_space<vmem>>, vector<1x1x16xf32>
    %31 = vector.shape_cast %30 : vector<1x1x16xf32> to vector<1x16xf32>
    %32 = vector.broadcast %31 : vector<1x16xf32> to vector<16x16xf32>
    %33 = arith.addf %29, %32 : vector<16x16xf32>
    %c0_18 = arith.constant 0 : index
    %c0_19 = arith.constant 0 : index
    %c0_20 = arith.constant 0 : index
    %34 = vector.load %arg5[%c0_18, %c0_19, %c0_20] : memref<4x32x16xbf16, #tpu.memory_space<vmem>>, vector<1x32x16xbf16>
    %35 = vector.shape_cast %34 : vector<1x32x16xbf16> to vector<32x16xbf16>
    %36 = arith.truncf %25 : vector<16x32xf32> to vector<16x32xbf16>
    %cst_21 = arith.constant dense<0.000000e+00> : vector<16x16xf32>
    %37 = tpu.matmul %36, %35, %cst_21 {dimension_numbers = #tpu.dot_dimension_numbers<[1], [0], [0], [1], [0, 0, 1, 1], [], []>} : vector<16x32xbf16>, vector<32x16xbf16>, vector<16x16xf32> -> vector<16x16xf32>
    %c0_22 = arith.constant 0 : index
    %c0_23 = arith.constant 0 : index
    %c0_24 = arith.constant 0 : index
    %38 = vector.load %arg8[%c0_22, %c0_23, %c0_24] : memref<4x1x16xf32, #tpu.memory_space<vmem>>, vector<1x1x16xf32>
    %39 = vector.shape_cast %38 : vector<1x1x16xf32> to vector<1x16xf32>
    %40 = vector.broadcast %39 : vector<1x16xf32> to vector<16x16xf32>
    %41 = arith.addf %37, %40 : vector<16x16xf32>
    %c0_25 = arith.constant 0 : index
    %c0_26 = arith.constant 0 : index
    %c0_27 = arith.constant 0 : index
    %42 = vector.load %arg6[%c0_25, %c0_26, %c0_27] : memref<4x32x16xbf16, #tpu.memory_space<vmem>>, vector<1x32x16xbf16>
    %43 = vector.shape_cast %42 : vector<1x32x16xbf16> to vector<32x16xbf16>
    %44 = arith.truncf %25 : vector<16x32xf32> to vector<16x32xbf16>
    %cst_28 = arith.constant dense<0.000000e+00> : vector<16x16xf32>
    %45 = tpu.matmul %44, %43, %cst_28 {dimension_numbers = #tpu.dot_dimension_numbers<[1], [0], [0], [1], [0, 0, 1, 1], [], []>} : vector<16x32xbf16>, vector<32x16xbf16>, vector<16x16xf32> -> vector<16x16xf32>
    %c0_29 = arith.constant 0 : index
    %c0_30 = arith.constant 0 : index
    %c0_31 = arith.constant 0 : index
    %46 = vector.load %arg9[%c0_29, %c0_30, %c0_31] : memref<4x1x16xf32, #tpu.memory_space<vmem>>, vector<1x1x16xf32>
    %47 = vector.shape_cast %46 : vector<1x1x16xf32> to vector<1x16xf32>
    %48 = vector.broadcast %47 : vector<1x16xf32> to vector<16x16xf32>
    %49 = arith.addf %45, %48 : vector<16x16xf32>
    %50 = arith.truncf %33 : vector<16x16xf32> to vector<16x16xbf16>
    %51 = arith.truncf %41 : vector<16x16xf32> to vector<16x16xbf16>
    %cst_32 = arith.constant dense<0.000000e+00> : vector<16x16xf32>
    %52 = tpu.matmul %50, %51, %cst_32 {dimension_numbers = #tpu.dot_dimension_numbers<[1], [1], [0], [0], [0, 0, 1, 0], [], []>} : vector<16x16xbf16>, vector<16x16xbf16>, vector<16x16xf32> -> vector<16x16xf32>
    %cst_33 = arith.constant 2.500000e-01 : f32
    %53 = vector.broadcast %cst_33 : f32 to vector<16x16xf32>
    %54 = arith.mulf %52, %53 : vector<16x16xf32>
    %55 = arith.addf %54, %0 : vector<16x16xf32>
    %cst_34 = arith.constant dense<0xFF800000> : vector<16xf32>
    %56 = vector.multi_reduction <maximumf>, %55, %cst_34 [1] : vector<16x16xf32> to vector<16xf32>
    %57 = vector.shape_cast %56 : vector<16xf32> to vector<16x1xf32>
    %58 = vector.broadcast %57 : vector<16x1xf32> to vector<16x16xf32>
    %59 = arith.subf %55, %58 : vector<16x16xf32>
    %60 = math.exp %59 : vector<16x16xf32>
    %cst_35 = arith.constant dense<0.000000e+00> : vector<16xf32>
    %61 = vector.multi_reduction <add>, %60, %cst_35 [1] : vector<16x16xf32> to vector<16xf32>
    %62 = vector.shape_cast %61 : vector<16xf32> to vector<16x1xf32>
    %63 = tpu.reciprocal %62 {approx = true} : vector<16x1xf32> -> vector<16x1xf32>
    %64 = vector.broadcast %63 : vector<16x1xf32> to vector<16x16xf32>
    %65 = arith.mulf %60, %64 : vector<16x16xf32>
    %66 = arith.truncf %65 : vector<16x16xf32> to vector<16x16xbf16>
    %67 = arith.truncf %49 : vector<16x16xf32> to vector<16x16xbf16>
    %cst_36 = arith.constant dense<0.000000e+00> : vector<16x16xf32>
    %68 = tpu.matmul %66, %67, %cst_36 {dimension_numbers = #tpu.dot_dimension_numbers<[1], [0], [0], [1], [0, 0, 1, 1], [], []>} : vector<16x16xbf16>, vector<16x16xbf16>, vector<16x16xf32> -> vector<16x16xf32>
    %c0_37 = arith.constant 0 : index
    %c0_38 = arith.constant 0 : index
    %c0_39 = arith.constant 0 : index
    %69 = vector.load %arg10[%c0_37, %c0_38, %c0_39] : memref<4x16x32xbf16, #tpu.memory_space<vmem>>, vector<1x16x32xbf16>
    %70 = vector.shape_cast %69 : vector<1x16x32xbf16> to vector<16x32xbf16>
    %71 = arith.truncf %68 : vector<16x16xf32> to vector<16x16xbf16>
    %cst_40 = arith.constant dense<0.000000e+00> : vector<16x32xf32>
    %72 = tpu.matmul %71, %70, %cst_40 {dimension_numbers = #tpu.dot_dimension_numbers<[1], [0], [0], [1], [0, 0, 1, 1], [], []>} : vector<16x16xbf16>, vector<16x32xbf16>, vector<16x32xf32> -> vector<16x32xf32>
    %c1 = arith.constant 1 : index
    %c0_41 = arith.constant 0 : index
    %c0_42 = arith.constant 0 : index
    %73 = vector.load %arg4[%c1, %c0_41, %c0_42] : memref<4x32x16xbf16, #tpu.memory_space<vmem>>, vector<1x32x16xbf16>
    %74 = vector.shape_cast %73 : vector<1x32x16xbf16> to vector<32x16xbf16>
    %75 = arith.truncf %25 : vector<16x32xf32> to vector<16x32xbf16>
    %cst_43 = arith.constant dense<0.000000e+00> : vector<16x16xf32>
    %76 = tpu.matmul %75, %74, %cst_43 {dimension_numbers = #tpu.dot_dimension_numbers<[1], [0], [0], [1], [0, 0, 1, 1], [], []>} : vector<16x32xbf16>, vector<32x16xbf16>, vector<16x16xf32> -> vector<16x16xf32>
    %c1_44 = arith.constant 1 : index
    %c0_45 = arith.constant 0 : index
    %c0_46 = arith.constant 0 : index
    %77 = vector.load %arg7[%c1_44, %c0_45, %c0_46] : memref<4x1x16xf32, #tpu.memory_space<vmem>>, vector<1x1x16xf32>
    %78 = vector.shape_cast %77 : vector<1x1x16xf32> to vector<1x16xf32>
    %79 = vector.broadcast %78 : vector<1x16xf32> to vector<16x16xf32>
    %80 = arith.addf %76, %79 : vector<16x16xf32>
    %c1_47 = arith.constant 1 : index
    %c0_48 = arith.constant 0 : index
    %c0_49 = arith.constant 0 : index
    %81 = vector.load %arg5[%c1_47, %c0_48, %c0_49] : memref<4x32x16xbf16, #tpu.memory_space<vmem>>, vector<1x32x16xbf16>
    %82 = vector.shape_cast %81 : vector<1x32x16xbf16> to vector<32x16xbf16>
    %83 = arith.truncf %25 : vector<16x32xf32> to vector<16x32xbf16>
    %cst_50 = arith.constant dense<0.000000e+00> : vector<16x16xf32>
    %84 = tpu.matmul %83, %82, %cst_50 {dimension_numbers = #tpu.dot_dimension_numbers<[1], [0], [0], [1], [0, 0, 1, 1], [], []>} : vector<16x32xbf16>, vector<32x16xbf16>, vector<16x16xf32> -> vector<16x16xf32>
    %c1_51 = arith.constant 1 : index
    %c0_52 = arith.constant 0 : index
    %c0_53 = arith.constant 0 : index
    %85 = vector.load %arg8[%c1_51, %c0_52, %c0_53] : memref<4x1x16xf32, #tpu.memory_space<vmem>>, vector<1x1x16xf32>
    %86 = vector.shape_cast %85 : vector<1x1x16xf32> to vector<1x16xf32>
    %87 = vector.broadcast %86 : vector<1x16xf32> to vector<16x16xf32>
    %88 = arith.addf %84, %87 : vector<16x16xf32>
    %c1_54 = arith.constant 1 : index
    %c0_55 = arith.constant 0 : index
    %c0_56 = arith.constant 0 : index
    %89 = vector.load %arg6[%c1_54, %c0_55, %c0_56] : memref<4x32x16xbf16, #tpu.memory_space<vmem>>, vector<1x32x16xbf16>
    %90 = vector.shape_cast %89 : vector<1x32x16xbf16> to vector<32x16xbf16>
    %91 = arith.truncf %25 : vector<16x32xf32> to vector<16x32xbf16>
    %cst_57 = arith.constant dense<0.000000e+00> : vector<16x16xf32>
    %92 = tpu.matmul %91, %90, %cst_57 {dimension_numbers = #tpu.dot_dimension_numbers<[1], [0], [0], [1], [0, 0, 1, 1], [], []>} : vector<16x32xbf16>, vector<32x16xbf16>, vector<16x16xf32> -> vector<16x16xf32>
    %c1_58 = arith.constant 1 : index
    %c0_59 = arith.constant 0 : index
    %c0_60 = arith.constant 0 : index
    %93 = vector.load %arg9[%c1_58, %c0_59, %c0_60] : memref<4x1x16xf32, #tpu.memory_space<vmem>>, vector<1x1x16xf32>
    %94 = vector.shape_cast %93 : vector<1x1x16xf32> to vector<1x16xf32>
    %95 = vector.broadcast %94 : vector<1x16xf32> to vector<16x16xf32>
    %96 = arith.addf %92, %95 : vector<16x16xf32>
    %97 = arith.truncf %80 : vector<16x16xf32> to vector<16x16xbf16>
    %98 = arith.truncf %88 : vector<16x16xf32> to vector<16x16xbf16>
    %cst_61 = arith.constant dense<0.000000e+00> : vector<16x16xf32>
    %99 = tpu.matmul %97, %98, %cst_61 {dimension_numbers = #tpu.dot_dimension_numbers<[1], [1], [0], [0], [0, 0, 1, 0], [], []>} : vector<16x16xbf16>, vector<16x16xbf16>, vector<16x16xf32> -> vector<16x16xf32>
    %cst_62 = arith.constant 2.500000e-01 : f32
    %100 = vector.broadcast %cst_62 : f32 to vector<16x16xf32>
    %101 = arith.mulf %99, %100 : vector<16x16xf32>
    %102 = arith.addf %101, %0 : vector<16x16xf32>
    %cst_63 = arith.constant dense<0xFF800000> : vector<16xf32>
    %103 = vector.multi_reduction <maximumf>, %102, %cst_63 [1] : vector<16x16xf32> to vector<16xf32>
    %104 = vector.shape_cast %103 : vector<16xf32> to vector<16x1xf32>
    %105 = vector.broadcast %104 : vector<16x1xf32> to vector<16x16xf32>
    %106 = arith.subf %102, %105 : vector<16x16xf32>
    %107 = math.exp %106 : vector<16x16xf32>
    %cst_64 = arith.constant dense<0.000000e+00> : vector<16xf32>
    %108 = vector.multi_reduction <add>, %107, %cst_64 [1] : vector<16x16xf32> to vector<16xf32>
    %109 = vector.shape_cast %108 : vector<16xf32> to vector<16x1xf32>
    %110 = tpu.reciprocal %109 {approx = true} : vector<16x1xf32> -> vector<16x1xf32>
    %111 = vector.broadcast %110 : vector<16x1xf32> to vector<16x16xf32>
    %112 = arith.mulf %107, %111 : vector<16x16xf32>
    %113 = arith.truncf %112 : vector<16x16xf32> to vector<16x16xbf16>
    %114 = arith.truncf %96 : vector<16x16xf32> to vector<16x16xbf16>
    %cst_65 = arith.constant dense<0.000000e+00> : vector<16x16xf32>
    %115 = tpu.matmul %113, %114, %cst_65 {dimension_numbers = #tpu.dot_dimension_numbers<[1], [0], [0], [1], [0, 0, 1, 1], [], []>} : vector<16x16xbf16>, vector<16x16xbf16>, vector<16x16xf32> -> vector<16x16xf32>
    %c1_66 = arith.constant 1 : index
    %c0_67 = arith.constant 0 : index
    %c0_68 = arith.constant 0 : index
    %116 = vector.load %arg10[%c1_66, %c0_67, %c0_68] : memref<4x16x32xbf16, #tpu.memory_space<vmem>>, vector<1x16x32xbf16>
    %117 = vector.shape_cast %116 : vector<1x16x32xbf16> to vector<16x32xbf16>
    %118 = arith.truncf %115 : vector<16x16xf32> to vector<16x16xbf16>
    %cst_69 = arith.constant dense<0.000000e+00> : vector<16x32xf32>
    %119 = tpu.matmul %118, %117, %cst_69 {dimension_numbers = #tpu.dot_dimension_numbers<[1], [0], [0], [1], [0, 0, 1, 1], [], []>} : vector<16x16xbf16>, vector<16x32xbf16>, vector<16x32xf32> -> vector<16x32xf32>
    %120 = arith.addf %72, %119 : vector<16x32xf32>
    %121 = arith.addf %25, %120 : vector<16x32xf32>
    %c0_70 = arith.constant 0 : index
    %c0_71 = arith.constant 0 : index
    %c0_72 = arith.constant 0 : index
    %122 = vector.load %arg11[%c0_70, %c0_71, %c0_72] : memref<2x1x32xf32, #tpu.memory_space<vmem>>, vector<1x1x32xf32>
    %123 = vector.shape_cast %122 : vector<1x1x32xf32> to vector<1x32xf32>
    %124 = vector.broadcast %123 : vector<1x32xf32> to vector<16x32xf32>
    %125 = arith.addf %121, %124 : vector<16x32xf32>
    %c0_73 = arith.constant 0 : index
    %c0_74 = arith.constant 0 : index
    %c0_75 = arith.constant 0 : index
    %126 = vector.load %arg12[%c0_73, %c0_74, %c0_75] : memref<2x1x32xf32, #tpu.memory_space<vmem>>, vector<1x1x32xf32>
    %127 = vector.shape_cast %126 : vector<1x1x32xf32> to vector<1x32xf32>
    %c0_76 = arith.constant 0 : index
    %c0_77 = arith.constant 0 : index
    %c0_78 = arith.constant 0 : index
    %128 = vector.load %arg13[%c0_76, %c0_77, %c0_78] : memref<2x1x32xf32, #tpu.memory_space<vmem>>, vector<1x1x32xf32>
    %129 = vector.shape_cast %128 : vector<1x1x32xf32> to vector<1x32xf32>
    %cst_79 = arith.constant dense<0.000000e+00> : vector<16xf32>
    %130 = vector.multi_reduction <add>, %125, %cst_79 [1] : vector<16x32xf32> to vector<16xf32>
    %131 = vector.shape_cast %130 : vector<16xf32> to vector<16x1xf32>
    %cst_80 = arith.constant 3.200000e+01 : f32
    %132 = vector.broadcast %cst_80 : f32 to vector<16x1xf32>
    %133 = arith.divf %131, %132 : vector<16x1xf32>
    %134 = vector.broadcast %133 : vector<16x1xf32> to vector<16x32xf32>
    %135 = arith.subf %125, %134 : vector<16x32xf32>
    %136 = arith.mulf %135, %135 : vector<16x32xf32>
    %cst_81 = arith.constant dense<0.000000e+00> : vector<16xf32>
    %137 = vector.multi_reduction <add>, %136, %cst_81 [1] : vector<16x32xf32> to vector<16xf32>
    %138 = vector.shape_cast %137 : vector<16xf32> to vector<16x1xf32>
    %cst_82 = arith.constant 3.200000e+01 : f32
    %139 = vector.broadcast %cst_82 : f32 to vector<16x1xf32>
    %140 = arith.divf %138, %139 : vector<16x1xf32>
    %141 = vector.broadcast %133 : vector<16x1xf32> to vector<16x32xf32>
    %142 = arith.subf %125, %141 : vector<16x32xf32>
    %cst_83 = arith.constant 9.99999996E-13 : f32
    %143 = vector.broadcast %cst_83 : f32 to vector<16x1xf32>
    %144 = arith.addf %140, %143 : vector<16x1xf32>
    %145 = math.rsqrt %144 : vector<16x1xf32>
    %146 = vector.broadcast %145 : vector<16x1xf32> to vector<16x32xf32>
    %147 = arith.mulf %142, %146 : vector<16x32xf32>
    %148 = vector.broadcast %127 : vector<1x32xf32> to vector<16x32xf32>
    %149 = arith.mulf %147, %148 : vector<16x32xf32>
    %150 = vector.broadcast %129 : vector<1x32xf32> to vector<16x32xf32>
    %151 = arith.addf %149, %150 : vector<16x32xf32>
    %c0_84 = arith.constant 0 : index
    %c0_85 = arith.constant 0 : index
    %c0_86 = arith.constant 0 : index
    %152 = vector.load %arg14[%c0_84, %c0_85, %c0_86] : memref<2x32x64xbf16, #tpu.memory_space<vmem>>, vector<1x32x64xbf16>
    %153 = vector.shape_cast %152 : vector<1x32x64xbf16> to vector<32x64xbf16>
    %154 = arith.truncf %151 : vector<16x32xf32> to vector<16x32xbf16>
    %cst_87 = arith.constant dense<0.000000e+00> : vector<16x64xf32>
    %155 = tpu.matmul %154, %153, %cst_87 {dimension_numbers = #tpu.dot_dimension_numbers<[1], [0], [0], [1], [0, 0, 1, 1], [], []>} : vector<16x32xbf16>, vector<32x64xbf16>, vector<16x64xf32> -> vector<16x64xf32>
    %c0_88 = arith.constant 0 : index
    %c0_89 = arith.constant 0 : index
    %c0_90 = arith.constant 0 : index
    %156 = vector.load %arg15[%c0_88, %c0_89, %c0_90] : memref<2x1x64xf32, #tpu.memory_space<vmem>>, vector<1x1x64xf32>
    %157 = vector.shape_cast %156 : vector<1x1x64xf32> to vector<1x64xf32>
    %158 = vector.broadcast %157 : vector<1x64xf32> to vector<16x64xf32>
    %159 = arith.addf %155, %158 : vector<16x64xf32>
    %160 = arith.mulf %159, %159 : vector<16x64xf32>
    %161 = arith.mulf %159, %160 : vector<16x64xf32>
    %cst_91 = arith.constant 4.471500e-02 : f32
    %162 = vector.broadcast %cst_91 : f32 to vector<16x64xf32>
    %163 = arith.mulf %162, %161 : vector<16x64xf32>
    %164 = arith.addf %159, %163 : vector<16x64xf32>
    %cst_92 = arith.constant 0.797884583 : f32
    %165 = vector.broadcast %cst_92 : f32 to vector<16x64xf32>
    %166 = arith.mulf %165, %164 : vector<16x64xf32>
    %167 = math.tanh %166 : vector<16x64xf32>
    %cst_93 = arith.constant 1.000000e+00 : f32
    %168 = vector.broadcast %cst_93 : f32 to vector<16x64xf32>
    %169 = arith.addf %168, %167 : vector<16x64xf32>
    %cst_94 = arith.constant 5.000000e-01 : f32
    %170 = vector.broadcast %cst_94 : f32 to vector<16x64xf32>
    %171 = arith.mulf %170, %169 : vector<16x64xf32>
    %172 = arith.mulf %159, %171 : vector<16x64xf32>
    %c0_95 = arith.constant 0 : index
    %c0_96 = arith.constant 0 : index
    %c0_97 = arith.constant 0 : index
    %173 = vector.load %arg16[%c0_95, %c0_96, %c0_97] : memref<2x64x32xbf16, #tpu.memory_space<vmem>>, vector<1x64x32xbf16>
    %174 = vector.shape_cast %173 : vector<1x64x32xbf16> to vector<64x32xbf16>
    %175 = arith.truncf %172 : vector<16x64xf32> to vector<16x64xbf16>
    %cst_98 = arith.constant dense<0.000000e+00> : vector<16x32xf32>
    %176 = tpu.matmul %175, %174, %cst_98 {dimension_numbers = #tpu.dot_dimension_numbers<[1], [0], [0], [1], [0, 0, 1, 1], [], []>} : vector<16x64xbf16>, vector<64x32xbf16>, vector<16x32xf32> -> vector<16x32xf32>
    %c0_99 = arith.constant 0 : index
    %c0_100 = arith.constant 0 : index
    %c0_101 = arith.constant 0 : index
    %177 = vector.load %arg17[%c0_99, %c0_100, %c0_101] : memref<2x1x32xf32, #tpu.memory_space<vmem>>, vector<1x1x32xf32>
    %178 = vector.shape_cast %177 : vector<1x1x32xf32> to vector<1x32xf32>
    %179 = vector.broadcast %178 : vector<1x32xf32> to vector<16x32xf32>
    %180 = arith.addf %176, %179 : vector<16x32xf32>
    %181 = arith.addf %151, %180 : vector<16x32xf32>
    %c0_102 = arith.constant 0 : index
    %c0_103 = arith.constant 0 : index
    %c0_104 = arith.constant 0 : index
    %182 = vector.load %arg18[%c0_102, %c0_103, %c0_104] : memref<2x1x32xf32, #tpu.memory_space<vmem>>, vector<1x1x32xf32>
    %183 = vector.shape_cast %182 : vector<1x1x32xf32> to vector<1x32xf32>
    %c0_105 = arith.constant 0 : index
    %c0_106 = arith.constant 0 : index
    %c0_107 = arith.constant 0 : index
    %184 = vector.load %arg19[%c0_105, %c0_106, %c0_107] : memref<2x1x32xf32, #tpu.memory_space<vmem>>, vector<1x1x32xf32>
    %185 = vector.shape_cast %184 : vector<1x1x32xf32> to vector<1x32xf32>
    %cst_108 = arith.constant dense<0.000000e+00> : vector<16xf32>
    %186 = vector.multi_reduction <add>, %181, %cst_108 [1] : vector<16x32xf32> to vector<16xf32>
    %187 = vector.shape_cast %186 : vector<16xf32> to vector<16x1xf32>
    %cst_109 = arith.constant 3.200000e+01 : f32
    %188 = vector.broadcast %cst_109 : f32 to vector<16x1xf32>
    %189 = arith.divf %187, %188 : vector<16x1xf32>
    %190 = vector.broadcast %189 : vector<16x1xf32> to vector<16x32xf32>
    %191 = arith.subf %181, %190 : vector<16x32xf32>
    %192 = arith.mulf %191, %191 : vector<16x32xf32>
    %cst_110 = arith.constant dense<0.000000e+00> : vector<16xf32>
    %193 = vector.multi_reduction <add>, %192, %cst_110 [1] : vector<16x32xf32> to vector<16xf32>
    %194 = vector.shape_cast %193 : vector<16xf32> to vector<16x1xf32>
    %cst_111 = arith.constant 3.200000e+01 : f32
    %195 = vector.broadcast %cst_111 : f32 to vector<16x1xf32>
    %196 = arith.divf %194, %195 : vector<16x1xf32>
    %197 = vector.broadcast %189 : vector<16x1xf32> to vector<16x32xf32>
    %198 = arith.subf %181, %197 : vector<16x32xf32>
    %cst_112 = arith.constant 9.99999996E-13 : f32
    %199 = vector.broadcast %cst_112 : f32 to vector<16x1xf32>
    %200 = arith.addf %196, %199 : vector<16x1xf32>
    %201 = math.rsqrt %200 : vector<16x1xf32>
    %202 = vector.broadcast %201 : vector<16x1xf32> to vector<16x32xf32>
    %203 = arith.mulf %198, %202 : vector<16x32xf32>
    %204 = vector.broadcast %183 : vector<1x32xf32> to vector<16x32xf32>
    %205 = arith.mulf %203, %204 : vector<16x32xf32>
    %206 = vector.broadcast %185 : vector<1x32xf32> to vector<16x32xf32>
    %207 = arith.addf %205, %206 : vector<16x32xf32>
    %c2 = arith.constant 2 : index
    %c0_113 = arith.constant 0 : index
    %c0_114 = arith.constant 0 : index
    %208 = vector.load %arg4[%c2, %c0_113, %c0_114] : memref<4x32x16xbf16, #tpu.memory_space<vmem>>, vector<1x32x16xbf16>
    %209 = vector.shape_cast %208 : vector<1x32x16xbf16> to vector<32x16xbf16>
    %210 = arith.truncf %207 : vector<16x32xf32> to vector<16x32xbf16>
    %cst_115 = arith.constant dense<0.000000e+00> : vector<16x16xf32>
    %211 = tpu.matmul %210, %209, %cst_115 {dimension_numbers = #tpu.dot_dimension_numbers<[1], [0], [0], [1], [0, 0, 1, 1], [], []>} : vector<16x32xbf16>, vector<32x16xbf16>, vector<16x16xf32> -> vector<16x16xf32>
    %c2_116 = arith.constant 2 : index
    %c0_117 = arith.constant 0 : index
    %c0_118 = arith.constant 0 : index
    %212 = vector.load %arg7[%c2_116, %c0_117, %c0_118] : memref<4x1x16xf32, #tpu.memory_space<vmem>>, vector<1x1x16xf32>
    %213 = vector.shape_cast %212 : vector<1x1x16xf32> to vector<1x16xf32>
    %214 = vector.broadcast %213 : vector<1x16xf32> to vector<16x16xf32>
    %215 = arith.addf %211, %214 : vector<16x16xf32>
    %c2_119 = arith.constant 2 : index
    %c0_120 = arith.constant 0 : index
    %c0_121 = arith.constant 0 : index
    %216 = vector.load %arg5[%c2_119, %c0_120, %c0_121] : memref<4x32x16xbf16, #tpu.memory_space<vmem>>, vector<1x32x16xbf16>
    %217 = vector.shape_cast %216 : vector<1x32x16xbf16> to vector<32x16xbf16>
    %218 = arith.truncf %207 : vector<16x32xf32> to vector<16x32xbf16>
    %cst_122 = arith.constant dense<0.000000e+00> : vector<16x16xf32>
    %219 = tpu.matmul %218, %217, %cst_122 {dimension_numbers = #tpu.dot_dimension_numbers<[1], [0], [0], [1], [0, 0, 1, 1], [], []>} : vector<16x32xbf16>, vector<32x16xbf16>, vector<16x16xf32> -> vector<16x16xf32>
    %c2_123 = arith.constant 2 : index
    %c0_124 = arith.constant 0 : index
    %c0_125 = arith.constant 0 : index
    %220 = vector.load %arg8[%c2_123, %c0_124, %c0_125] : memref<4x1x16xf32, #tpu.memory_space<vmem>>, vector<1x1x16xf32>
    %221 = vector.shape_cast %220 : vector<1x1x16xf32> to vector<1x16xf32>
    %222 = vector.broadcast %221 : vector<1x16xf32> to vector<16x16xf32>
    %223 = arith.addf %219, %222 : vector<16x16xf32>
    %c2_126 = arith.constant 2 : index
    %c0_127 = arith.constant 0 : index
    %c0_128 = arith.constant 0 : index
    %224 = vector.load %arg6[%c2_126, %c0_127, %c0_128] : memref<4x32x16xbf16, #tpu.memory_space<vmem>>, vector<1x32x16xbf16>
    %225 = vector.shape_cast %224 : vector<1x32x16xbf16> to vector<32x16xbf16>
    %226 = arith.truncf %207 : vector<16x32xf32> to vector<16x32xbf16>
    %cst_129 = arith.constant dense<0.000000e+00> : vector<16x16xf32>
    %227 = tpu.matmul %226, %225, %cst_129 {dimension_numbers = #tpu.dot_dimension_numbers<[1], [0], [0], [1], [0, 0, 1, 1], [], []>} : vector<16x32xbf16>, vector<32x16xbf16>, vector<16x16xf32> -> vector<16x16xf32>
    %c2_130 = arith.constant 2 : index
    %c0_131 = arith.constant 0 : index
    %c0_132 = arith.constant 0 : index
    %228 = vector.load %arg9[%c2_130, %c0_131, %c0_132] : memref<4x1x16xf32, #tpu.memory_space<vmem>>, vector<1x1x16xf32>
    %229 = vector.shape_cast %228 : vector<1x1x16xf32> to vector<1x16xf32>
    %230 = vector.broadcast %229 : vector<1x16xf32> to vector<16x16xf32>
    %231 = arith.addf %227, %230 : vector<16x16xf32>
    %232 = arith.truncf %215 : vector<16x16xf32> to vector<16x16xbf16>
    %233 = arith.truncf %223 : vector<16x16xf32> to vector<16x16xbf16>
    %cst_133 = arith.constant dense<0.000000e+00> : vector<16x16xf32>
    %234 = tpu.matmul %232, %233, %cst_133 {dimension_numbers = #tpu.dot_dimension_numbers<[1], [1], [0], [0], [0, 0, 1, 0], [], []>} : vector<16x16xbf16>, vector<16x16xbf16>, vector<16x16xf32> -> vector<16x16xf32>
    %cst_134 = arith.constant 2.500000e-01 : f32
    %235 = vector.broadcast %cst_134 : f32 to vector<16x16xf32>
    %236 = arith.mulf %234, %235 : vector<16x16xf32>
    %237 = arith.addf %236, %0 : vector<16x16xf32>
    %cst_135 = arith.constant dense<0xFF800000> : vector<16xf32>
    %238 = vector.multi_reduction <maximumf>, %237, %cst_135 [1] : vector<16x16xf32> to vector<16xf32>
    %239 = vector.shape_cast %238 : vector<16xf32> to vector<16x1xf32>
    %240 = vector.broadcast %239 : vector<16x1xf32> to vector<16x16xf32>
    %241 = arith.subf %237, %240 : vector<16x16xf32>
    %242 = math.exp %241 : vector<16x16xf32>
    %cst_136 = arith.constant dense<0.000000e+00> : vector<16xf32>
    %243 = vector.multi_reduction <add>, %242, %cst_136 [1] : vector<16x16xf32> to vector<16xf32>
    %244 = vector.shape_cast %243 : vector<16xf32> to vector<16x1xf32>
    %245 = tpu.reciprocal %244 {approx = true} : vector<16x1xf32> -> vector<16x1xf32>
    %246 = vector.broadcast %245 : vector<16x1xf32> to vector<16x16xf32>
    %247 = arith.mulf %242, %246 : vector<16x16xf32>
    %248 = arith.truncf %247 : vector<16x16xf32> to vector<16x16xbf16>
    %249 = arith.truncf %231 : vector<16x16xf32> to vector<16x16xbf16>
    %cst_137 = arith.constant dense<0.000000e+00> : vector<16x16xf32>
    %250 = tpu.matmul %248, %249, %cst_137 {dimension_numbers = #tpu.dot_dimension_numbers<[1], [0], [0], [1], [0, 0, 1, 1], [], []>} : vector<16x16xbf16>, vector<16x16xbf16>, vector<16x16xf32> -> vector<16x16xf32>
    %c2_138 = arith.constant 2 : index
    %c0_139 = arith.constant 0 : index
    %c0_140 = arith.constant 0 : index
    %251 = vector.load %arg10[%c2_138, %c0_139, %c0_140] : memref<4x16x32xbf16, #tpu.memory_space<vmem>>, vector<1x16x32xbf16>
    %252 = vector.shape_cast %251 : vector<1x16x32xbf16> to vector<16x32xbf16>
    %253 = arith.truncf %250 : vector<16x16xf32> to vector<16x16xbf16>
    %cst_141 = arith.constant dense<0.000000e+00> : vector<16x32xf32>
    %254 = tpu.matmul %253, %252, %cst_141 {dimension_numbers = #tpu.dot_dimension_numbers<[1], [0], [0], [1], [0, 0, 1, 1], [], []>} : vector<16x16xbf16>, vector<16x32xbf16>, vector<16x32xf32> -> vector<16x32xf32>
    %c3 = arith.constant 3 : index
    %c0_142 = arith.constant 0 : index
    %c0_143 = arith.constant 0 : index
    %255 = vector.load %arg4[%c3, %c0_142, %c0_143] : memref<4x32x16xbf16, #tpu.memory_space<vmem>>, vector<1x32x16xbf16>
    %256 = vector.shape_cast %255 : vector<1x32x16xbf16> to vector<32x16xbf16>
    %257 = arith.truncf %207 : vector<16x32xf32> to vector<16x32xbf16>
    %cst_144 = arith.constant dense<0.000000e+00> : vector<16x16xf32>
    %258 = tpu.matmul %257, %256, %cst_144 {dimension_numbers = #tpu.dot_dimension_numbers<[1], [0], [0], [1], [0, 0, 1, 1], [], []>} : vector<16x32xbf16>, vector<32x16xbf16>, vector<16x16xf32> -> vector<16x16xf32>
    %c3_145 = arith.constant 3 : index
    %c0_146 = arith.constant 0 : index
    %c0_147 = arith.constant 0 : index
    %259 = vector.load %arg7[%c3_145, %c0_146, %c0_147] : memref<4x1x16xf32, #tpu.memory_space<vmem>>, vector<1x1x16xf32>
    %260 = vector.shape_cast %259 : vector<1x1x16xf32> to vector<1x16xf32>
    %261 = vector.broadcast %260 : vector<1x16xf32> to vector<16x16xf32>
    %262 = arith.addf %258, %261 : vector<16x16xf32>
    %c3_148 = arith.constant 3 : index
    %c0_149 = arith.constant 0 : index
    %c0_150 = arith.constant 0 : index
    %263 = vector.load %arg5[%c3_148, %c0_149, %c0_150] : memref<4x32x16xbf16, #tpu.memory_space<vmem>>, vector<1x32x16xbf16>
    %264 = vector.shape_cast %263 : vector<1x32x16xbf16> to vector<32x16xbf16>
    %265 = arith.truncf %207 : vector<16x32xf32> to vector<16x32xbf16>
    %cst_151 = arith.constant dense<0.000000e+00> : vector<16x16xf32>
    %266 = tpu.matmul %265, %264, %cst_151 {dimension_numbers = #tpu.dot_dimension_numbers<[1], [0], [0], [1], [0, 0, 1, 1], [], []>} : vector<16x32xbf16>, vector<32x16xbf16>, vector<16x16xf32> -> vector<16x16xf32>
    %c3_152 = arith.constant 3 : index
    %c0_153 = arith.constant 0 : index
    %c0_154 = arith.constant 0 : index
    %267 = vector.load %arg8[%c3_152, %c0_153, %c0_154] : memref<4x1x16xf32, #tpu.memory_space<vmem>>, vector<1x1x16xf32>
    %268 = vector.shape_cast %267 : vector<1x1x16xf32> to vector<1x16xf32>
    %269 = vector.broadcast %268 : vector<1x16xf32> to vector<16x16xf32>
    %270 = arith.addf %266, %269 : vector<16x16xf32>
    %c3_155 = arith.constant 3 : index
    %c0_156 = arith.constant 0 : index
    %c0_157 = arith.constant 0 : index
    %271 = vector.load %arg6[%c3_155, %c0_156, %c0_157] : memref<4x32x16xbf16, #tpu.memory_space<vmem>>, vector<1x32x16xbf16>
    %272 = vector.shape_cast %271 : vector<1x32x16xbf16> to vector<32x16xbf16>
    %273 = arith.truncf %207 : vector<16x32xf32> to vector<16x32xbf16>
    %cst_158 = arith.constant dense<0.000000e+00> : vector<16x16xf32>
    %274 = tpu.matmul %273, %272, %cst_158 {dimension_numbers = #tpu.dot_dimension_numbers<[1], [0], [0], [1], [0, 0, 1, 1], [], []>} : vector<16x32xbf16>, vector<32x16xbf16>, vector<16x16xf32> -> vector<16x16xf32>
    %c3_159 = arith.constant 3 : index
    %c0_160 = arith.constant 0 : index
    %c0_161 = arith.constant 0 : index
    %275 = vector.load %arg9[%c3_159, %c0_160, %c0_161] : memref<4x1x16xf32, #tpu.memory_space<vmem>>, vector<1x1x16xf32>
    %276 = vector.shape_cast %275 : vector<1x1x16xf32> to vector<1x16xf32>
    %277 = vector.broadcast %276 : vector<1x16xf32> to vector<16x16xf32>
    %278 = arith.addf %274, %277 : vector<16x16xf32>
    %279 = arith.truncf %262 : vector<16x16xf32> to vector<16x16xbf16>
    %280 = arith.truncf %270 : vector<16x16xf32> to vector<16x16xbf16>
    %cst_162 = arith.constant dense<0.000000e+00> : vector<16x16xf32>
    %281 = tpu.matmul %279, %280, %cst_162 {dimension_numbers = #tpu.dot_dimension_numbers<[1], [1], [0], [0], [0, 0, 1, 0], [], []>} : vector<16x16xbf16>, vector<16x16xbf16>, vector<16x16xf32> -> vector<16x16xf32>
    %cst_163 = arith.constant 2.500000e-01 : f32
    %282 = vector.broadcast %cst_163 : f32 to vector<16x16xf32>
    %283 = arith.mulf %281, %282 : vector<16x16xf32>
    %284 = arith.addf %283, %0 : vector<16x16xf32>
    %cst_164 = arith.constant dense<0xFF800000> : vector<16xf32>
    %285 = vector.multi_reduction <maximumf>, %284, %cst_164 [1] : vector<16x16xf32> to vector<16xf32>
    %286 = vector.shape_cast %285 : vector<16xf32> to vector<16x1xf32>
    %287 = vector.broadcast %286 : vector<16x1xf32> to vector<16x16xf32>
    %288 = arith.subf %284, %287 : vector<16x16xf32>
    %289 = math.exp %288 : vector<16x16xf32>
    %cst_165 = arith.constant dense<0.000000e+00> : vector<16xf32>
    %290 = vector.multi_reduction <add>, %289, %cst_165 [1] : vector<16x16xf32> to vector<16xf32>
    %291 = vector.shape_cast %290 : vector<16xf32> to vector<16x1xf32>
    %292 = tpu.reciprocal %291 {approx = true} : vector<16x1xf32> -> vector<16x1xf32>
    %293 = vector.broadcast %292 : vector<16x1xf32> to vector<16x16xf32>
    %294 = arith.mulf %289, %293 : vector<16x16xf32>
    %295 = arith.truncf %294 : vector<16x16xf32> to vector<16x16xbf16>
    %296 = arith.truncf %278 : vector<16x16xf32> to vector<16x16xbf16>
    %cst_166 = arith.constant dense<0.000000e+00> : vector<16x16xf32>
    %297 = tpu.matmul %295, %296, %cst_166 {dimension_numbers = #tpu.dot_dimension_numbers<[1], [0], [0], [1], [0, 0, 1, 1], [], []>} : vector<16x16xbf16>, vector<16x16xbf16>, vector<16x16xf32> -> vector<16x16xf32>
    %c3_167 = arith.constant 3 : index
    %c0_168 = arith.constant 0 : index
    %c0_169 = arith.constant 0 : index
    %298 = vector.load %arg10[%c3_167, %c0_168, %c0_169] : memref<4x16x32xbf16, #tpu.memory_space<vmem>>, vector<1x16x32xbf16>
    %299 = vector.shape_cast %298 : vector<1x16x32xbf16> to vector<16x32xbf16>
    %300 = arith.truncf %297 : vector<16x16xf32> to vector<16x16xbf16>
    %cst_170 = arith.constant dense<0.000000e+00> : vector<16x32xf32>
    %301 = tpu.matmul %300, %299, %cst_170 {dimension_numbers = #tpu.dot_dimension_numbers<[1], [0], [0], [1], [0, 0, 1, 1], [], []>} : vector<16x16xbf16>, vector<16x32xbf16>, vector<16x32xf32> -> vector<16x32xf32>
    %302 = arith.addf %254, %301 : vector<16x32xf32>
    %303 = arith.addf %207, %302 : vector<16x32xf32>
    %c1_171 = arith.constant 1 : index
    %c0_172 = arith.constant 0 : index
    %c0_173 = arith.constant 0 : index
    %304 = vector.load %arg11[%c1_171, %c0_172, %c0_173] : memref<2x1x32xf32, #tpu.memory_space<vmem>>, vector<1x1x32xf32>
    %305 = vector.shape_cast %304 : vector<1x1x32xf32> to vector<1x32xf32>
    %306 = vector.broadcast %305 : vector<1x32xf32> to vector<16x32xf32>
    %307 = arith.addf %303, %306 : vector<16x32xf32>
    %c1_174 = arith.constant 1 : index
    %c0_175 = arith.constant 0 : index
    %c0_176 = arith.constant 0 : index
    %308 = vector.load %arg12[%c1_174, %c0_175, %c0_176] : memref<2x1x32xf32, #tpu.memory_space<vmem>>, vector<1x1x32xf32>
    %309 = vector.shape_cast %308 : vector<1x1x32xf32> to vector<1x32xf32>
    %c1_177 = arith.constant 1 : index
    %c0_178 = arith.constant 0 : index
    %c0_179 = arith.constant 0 : index
    %310 = vector.load %arg13[%c1_177, %c0_178, %c0_179] : memref<2x1x32xf32, #tpu.memory_space<vmem>>, vector<1x1x32xf32>
    %311 = vector.shape_cast %310 : vector<1x1x32xf32> to vector<1x32xf32>
    %cst_180 = arith.constant dense<0.000000e+00> : vector<16xf32>
    %312 = vector.multi_reduction <add>, %307, %cst_180 [1] : vector<16x32xf32> to vector<16xf32>
    %313 = vector.shape_cast %312 : vector<16xf32> to vector<16x1xf32>
    %cst_181 = arith.constant 3.200000e+01 : f32
    %314 = vector.broadcast %cst_181 : f32 to vector<16x1xf32>
    %315 = arith.divf %313, %314 : vector<16x1xf32>
    %316 = vector.broadcast %315 : vector<16x1xf32> to vector<16x32xf32>
    %317 = arith.subf %307, %316 : vector<16x32xf32>
    %318 = arith.mulf %317, %317 : vector<16x32xf32>
    %cst_182 = arith.constant dense<0.000000e+00> : vector<16xf32>
    %319 = vector.multi_reduction <add>, %318, %cst_182 [1] : vector<16x32xf32> to vector<16xf32>
    %320 = vector.shape_cast %319 : vector<16xf32> to vector<16x1xf32>
    %cst_183 = arith.constant 3.200000e+01 : f32
    %321 = vector.broadcast %cst_183 : f32 to vector<16x1xf32>
    %322 = arith.divf %320, %321 : vector<16x1xf32>
    %323 = vector.broadcast %315 : vector<16x1xf32> to vector<16x32xf32>
    %324 = arith.subf %307, %323 : vector<16x32xf32>
    %cst_184 = arith.constant 9.99999996E-13 : f32
    %325 = vector.broadcast %cst_184 : f32 to vector<16x1xf32>
    %326 = arith.addf %322, %325 : vector<16x1xf32>
    %327 = math.rsqrt %326 : vector<16x1xf32>
    %328 = vector.broadcast %327 : vector<16x1xf32> to vector<16x32xf32>
    %329 = arith.mulf %324, %328 : vector<16x32xf32>
    %330 = vector.broadcast %309 : vector<1x32xf32> to vector<16x32xf32>
    %331 = arith.mulf %329, %330 : vector<16x32xf32>
    %332 = vector.broadcast %311 : vector<1x32xf32> to vector<16x32xf32>
    %333 = arith.addf %331, %332 : vector<16x32xf32>
    %c1_185 = arith.constant 1 : index
    %c0_186 = arith.constant 0 : index
    %c0_187 = arith.constant 0 : index
    %334 = vector.load %arg14[%c1_185, %c0_186, %c0_187] : memref<2x32x64xbf16, #tpu.memory_space<vmem>>, vector<1x32x64xbf16>
    %335 = vector.shape_cast %334 : vector<1x32x64xbf16> to vector<32x64xbf16>
    %336 = arith.truncf %333 : vector<16x32xf32> to vector<16x32xbf16>
    %cst_188 = arith.constant dense<0.000000e+00> : vector<16x64xf32>
    %337 = tpu.matmul %336, %335, %cst_188 {dimension_numbers = #tpu.dot_dimension_numbers<[1], [0], [0], [1], [0, 0, 1, 1], [], []>} : vector<16x32xbf16>, vector<32x64xbf16>, vector<16x64xf32> -> vector<16x64xf32>
    %c1_189 = arith.constant 1 : index
    %c0_190 = arith.constant 0 : index
    %c0_191 = arith.constant 0 : index
    %338 = vector.load %arg15[%c1_189, %c0_190, %c0_191] : memref<2x1x64xf32, #tpu.memory_space<vmem>>, vector<1x1x64xf32>
    %339 = vector.shape_cast %338 : vector<1x1x64xf32> to vector<1x64xf32>
    %340 = vector.broadcast %339 : vector<1x64xf32> to vector<16x64xf32>
    %341 = arith.addf %337, %340 : vector<16x64xf32>
    %342 = arith.mulf %341, %341 : vector<16x64xf32>
    %343 = arith.mulf %341, %342 : vector<16x64xf32>
    %cst_192 = arith.constant 4.471500e-02 : f32
    %344 = vector.broadcast %cst_192 : f32 to vector<16x64xf32>
    %345 = arith.mulf %344, %343 : vector<16x64xf32>
    %346 = arith.addf %341, %345 : vector<16x64xf32>
    %cst_193 = arith.constant 0.797884583 : f32
    %347 = vector.broadcast %cst_193 : f32 to vector<16x64xf32>
    %348 = arith.mulf %347, %346 : vector<16x64xf32>
    %349 = math.tanh %348 : vector<16x64xf32>
    %cst_194 = arith.constant 1.000000e+00 : f32
    %350 = vector.broadcast %cst_194 : f32 to vector<16x64xf32>
    %351 = arith.addf %350, %349 : vector<16x64xf32>
    %cst_195 = arith.constant 5.000000e-01 : f32
    %352 = vector.broadcast %cst_195 : f32 to vector<16x64xf32>
    %353 = arith.mulf %352, %351 : vector<16x64xf32>
    %354 = arith.mulf %341, %353 : vector<16x64xf32>
    %c1_196 = arith.constant 1 : index
    %c0_197 = arith.constant 0 : index
    %c0_198 = arith.constant 0 : index
    %355 = vector.load %arg16[%c1_196, %c0_197, %c0_198] : memref<2x64x32xbf16, #tpu.memory_space<vmem>>, vector<1x64x32xbf16>
    %356 = vector.shape_cast %355 : vector<1x64x32xbf16> to vector<64x32xbf16>
    %357 = arith.truncf %354 : vector<16x64xf32> to vector<16x64xbf16>
    %cst_199 = arith.constant dense<0.000000e+00> : vector<16x32xf32>
    %358 = tpu.matmul %357, %356, %cst_199 {dimension_numbers = #tpu.dot_dimension_numbers<[1], [0], [0], [1], [0, 0, 1, 1], [], []>} : vector<16x64xbf16>, vector<64x32xbf16>, vector<16x32xf32> -> vector<16x32xf32>
    %c1_200 = arith.constant 1 : index
    %c0_201 = arith.constant 0 : index
    %c0_202 = arith.constant 0 : index
    %359 = vector.load %arg17[%c1_200, %c0_201, %c0_202] : memref<2x1x32xf32, #tpu.memory_space<vmem>>, vector<1x1x32xf32>
    %360 = vector.shape_cast %359 : vector<1x1x32xf32> to vector<1x32xf32>
    %361 = vector.broadcast %360 : vector<1x32xf32> to vector<16x32xf32>
    %362 = arith.addf %358, %361 : vector<16x32xf32>
    %363 = arith.addf %333, %362 : vector<16x32xf32>
    %c1_203 = arith.constant 1 : index
    %c0_204 = arith.constant 0 : index
    %c0_205 = arith.constant 0 : index
    %364 = vector.load %arg18[%c1_203, %c0_204, %c0_205] : memref<2x1x32xf32, #tpu.memory_space<vmem>>, vector<1x1x32xf32>
    %365 = vector.shape_cast %364 : vector<1x1x32xf32> to vector<1x32xf32>
    %c1_206 = arith.constant 1 : index
    %c0_207 = arith.constant 0 : index
    %c0_208 = arith.constant 0 : index
    %366 = vector.load %arg19[%c1_206, %c0_207, %c0_208] : memref<2x1x32xf32, #tpu.memory_space<vmem>>, vector<1x1x32xf32>
    %367 = vector.shape_cast %366 : vector<1x1x32xf32> to vector<1x32xf32>
    %cst_209 = arith.constant dense<0.000000e+00> : vector<16xf32>
    %368 = vector.multi_reduction <add>, %363, %cst_209 [1] : vector<16x32xf32> to vector<16xf32>
    %369 = vector.shape_cast %368 : vector<16xf32> to vector<16x1xf32>
    %cst_210 = arith.constant 3.200000e+01 : f32
    %370 = vector.broadcast %cst_210 : f32 to vector<16x1xf32>
    %371 = arith.divf %369, %370 : vector<16x1xf32>
    %372 = vector.broadcast %371 : vector<16x1xf32> to vector<16x32xf32>
    %373 = arith.subf %363, %372 : vector<16x32xf32>
    %374 = arith.mulf %373, %373 : vector<16x32xf32>
    %cst_211 = arith.constant dense<0.000000e+00> : vector<16xf32>
    %375 = vector.multi_reduction <add>, %374, %cst_211 [1] : vector<16x32xf32> to vector<16xf32>
    %376 = vector.shape_cast %375 : vector<16xf32> to vector<16x1xf32>
    %cst_212 = arith.constant 3.200000e+01 : f32
    %377 = vector.broadcast %cst_212 : f32 to vector<16x1xf32>
    %378 = arith.divf %376, %377 : vector<16x1xf32>
    %379 = vector.broadcast %371 : vector<16x1xf32> to vector<16x32xf32>
    %380 = arith.subf %363, %379 : vector<16x32xf32>
    %cst_213 = arith.constant 9.99999996E-13 : f32
    %381 = vector.broadcast %cst_213 : f32 to vector<16x1xf32>
    %382 = arith.addf %378, %381 : vector<16x1xf32>
    %383 = math.rsqrt %382 : vector<16x1xf32>
    %384 = vector.broadcast %383 : vector<16x1xf32> to vector<16x32xf32>
    %385 = arith.mulf %380, %384 : vector<16x32xf32>
    %386 = vector.broadcast %365 : vector<1x32xf32> to vector<16x32xf32>
    %387 = arith.mulf %385, %386 : vector<16x32xf32>
    %388 = vector.broadcast %367 : vector<1x32xf32> to vector<16x32xf32>
    %389 = arith.addf %387, %388 : vector<16x32xf32>
    %c0_214 = arith.constant 0 : index
    %c0_215 = arith.constant 0 : index
    %390 = vector.load %arg20[%c0_214, %c0_215] : memref<2x32xbf16, #tpu.memory_space<vmem>>, vector<2x32xbf16>
    %391 = arith.truncf %389 : vector<16x32xf32> to vector<16x32xbf16>
    %cst_216 = arith.constant dense<0.000000e+00> : vector<2x16xf32>
    %392 = tpu.matmul %390, %391, %cst_216 {dimension_numbers = #tpu.dot_dimension_numbers<[1], [1], [0], [0], [0, 0, 1, 0], [], []>} : vector<2x32xbf16>, vector<16x32xbf16>, vector<2x16xf32> -> vector<2x16xf32>
    %c0_217 = arith.constant 0 : index
    %c0_218 = arith.constant 0 : index
    %393 = vector.load %arg21[%c0_217, %c0_218] : memref<2x16xf32, #tpu.memory_space<vmem>>, vector<2x16xf32>
    tpu.vector_store %arg21[%c0_217, %c0_218], %392 {strides = array<i32>} : memref<2x16xf32, #tpu.memory_space<vmem>>, vector<2x16xf32>,
    return
  }
}

</mosaic_0001>

<llo_original>
// kernel: eq.8
$region0: #{eq.8}
  %s0 = inlined_call_operand.vmem [shape: s32[2,8], index: 0, kind: input, shape index: {}]
  %s1 = inlined_call_operand.vmem [shape: s32[16], index: 1, kind: output, shape index: {}]
  $region1: #{eq.8} parent=0
    #allocation0 [shape = 'u8[4096]{0}', space=vmem, size = 0x1000, scoped, tag = 'scoped mem for output reshape']
    #allocation1 [shape = 'u8[4096]{0}', space=vmem, size = 0x1000, scoped, tag = 'scoped mem for input reshape']
    %s3 = sshllo.u32 0, 2
    %v4 = vld [vmem:[%s0] sm:%s3]
    %5 = vst [vmem:[#allocation1] sm:%s3] %v4
    %v6 = vld [vmem:[#allocation1] sm:$0x1]
    %vm7 = vcmask 64512
    %8 = vst.msk [vmem:[#allocation0] sm:$0x1] %vm7, %v6
    %s9 = scalar_lea.vmem [#allocation1], 1
    %v10 = vld [vmem:[%s9] sm:$0x1]
    %11 = vrot.lane.b32.xlu0 %v10, 8
    %v12 = vpop.permute.xlu0 %11
    %vm13 = vcmask 130112
    %14 = vst.msk [vmem:[#allocation0] sm:$0x1] %vm13, %v12
    %s16 = sshllo.u32 0, 1
    %v18 = vld [vmem:[#allocation0] sm:%s16]
    %s19 = sshllo.u32 0, 1
    %20 = vst [vmem:[%s1] sm:%s19] %v18

// kernel: squeeze.2
$region0: #{squeeze.2}
  %s0 = inlined_call_operand.vmem [shape: f32[16], index: 0, kind: input, shape index: {}]
  %s1 = inlined_call_operand.hbm [shape: f32[2,8], index: 1, kind: output, shape index: {}]
  $region1: #{squeeze.2} parent=0
    #allocation0 [shape = 'u8[1024]{0}', space=vmem, size = 0x400, scoped, tag = 'operand span for operand 1']
    #allocation1 [shape = 's32[1]{0}', space=sflag, size = 0x4, scoped, tag = 'scoped memory for squeeze.2']
    #allocation2 [shape = 'u8[4096]{0}', space=vmem, size = 0x1000, scoped, tag = 'scoped mem for output reshape']
    #allocation3 [shape = 'u8[4096]{0}', space=vmem, size = 0x1000, scoped, tag = 'scoped mem for input reshape']
    %2 = vsyncpa [#allocation1], 0
    %s4 = sshllo.u32 0, 1
    %v5 = vld [vmem:[%s0] sm:%s4]
    %6 = vst [vmem:[#allocation3] sm:%s4] %v5
    %v7 = vld [vmem:[#allocation3] sm:$0x1]
    %vm8 = vcmask 64512
    %9 = vst.msk [vmem:[#allocation2] sm:$0x1] %vm8, %v7
    %v10 = vld [vmem:[#allocation3] sm:$0x1]
    %11 = vrot.lane.b32.xlu0 %v10, 120
    %v12 = vpop.permute.xlu0 %11
    %vm13 = vcmask 64512
    %s14 = scalar_lea.vmem [#allocation2], 1
    %15 = vst.msk [vmem:[%s14] sm:$0x1] %vm13, %v12
    %s17 = sshllo.u32 0, 2
    %v19 = vld [vmem:[#allocation2] sm:%s17]
    %s20 = sshllo.u32 0, 2
    %21 = vst [vmem:[#allocation0] sm:%s20] %v19
    %s23 = ssub.s32 32, 32
    %24 = vsyncadd [#allocation1], %s23
    %s26 = sshll.u32 [#allocation0], 4
    %s27 = int_to_ptr.vmem [resolvable:$true] %s26
    %29 = dma.vmem_to_hbm [thread:$0]  %s27, 32, %s1, [#allocation1]
    %30 = dma.done [#allocation1], 32
    %31 = vsyncpa [#allocation1], 1

// kernel: _lambda_.1
$region0: #{_lambda_.1}
  #allocation0 [shape = 'u32[]', space=smem, size = 0x4, offset = 0x4, fixed_abs, tag = 'smem constant byte address 0x4 - core index']
  #allocation1 [shape = 'u32[144,128]{1,0:T(1,128)}', space=vmem, size = 0x12000, scoped, tag = 'internal scratch']
  %s0 = inlined_call_operand.vmem [shape: f32[16,32], index: 0, kind: input, shape index: {}]
  %s1 = inlined_call_operand.vmem [shape: f32[16,16], index: 1, kind: input, shape index: {}]
  %s2 = inlined_call_operand.vmem [shape: f32[1,32], index: 2, kind: input, shape index: {}]
  %s3 = inlined_call_operand.vmem [shape: f32[1,32], index: 3, kind: input, shape index: {}]
  %s4 = inlined_call_operand.vmem [shape: bf16[4,32,16], index: 4, kind: input, shape index: {}]
  %s5 = inlined_call_operand.vmem [shape: bf16[4,32,16], index: 5, kind: input, shape index: {}]
  %s6 = inlined_call_operand.vmem [shape: bf16[4,32,16], index: 6, kind: input, shape index: {}]
  %s7 = inlined_call_operand.vmem [shape: f32[4,1,16], index: 7, kind: input, shape index: {}]
  %s8 = inlined_call_operand.vmem [shape: f32[4,1,16], index: 8, kind: input, shape index: {}]
  %s9 = inlined_call_operand.vmem [shape: f32[4,1,16], index: 9, kind: input, shape index: {}]
  %s10 = inlined_call_operand.vmem [shape: bf16[4,16,32], index: 10, kind: input, shape index: {}]
  %s11 = inlined_call_operand.vmem [shape: f32[2,1,32], index: 11, kind: input, shape index: {}]
  %s12 = inlined_call_operand.vmem [shape: f32[2,1,32], index: 12, kind: input, shape index: {}]
  %s13 = inlined_call_operand.vmem [shape: f32[2,1,32], index: 13, kind: input, shape index: {}]
  %s14 = inlined_call_operand.vmem [shape: bf16[2,32,64], index: 14, kind: input, shape index: {}]
  %s15 = inlined_call_operand.vmem [shape: f32[2,1,64], index: 15, kind: input, shape index: {}]
  %s16 = inlined_call_operand.vmem [shape: bf16[2,64,32], index: 16, kind: input, shape index: {}]
  %s17 = inlined_call_operand.vmem [shape: f32[2,1,32], index: 17, kind: input, shape index: {}]
  %s18 = inlined_call_operand.vmem [shape: f32[2,1,32], index: 18, kind: input, shape index: {}]
  %s19 = inlined_call_operand.vmem [shape: f32[2,1,32], index: 19, kind: input, shape index: {}]
  %s20 = inlined_call_operand.vmem [shape: bf16[2,32], index: 20, kind: input, shape index: {}]
  %s21 = inlined_call_operand.vmem [shape: f32[2,16], index: 21, kind: output, shape index: {}]
  %s22 = sld [smem:[#allocation0]]
  $region94: #{_lambda_.1} parent=0
    _
  %s24 = ssub.s32 1, %s22
  %s25 = scalar_select 0, %s24, %s22
  // Predicated region
  $region2: #{_lambda_.1} parent=0 // pred_check
    _
  $region3: #{_lambda_.1} parent=0 // pred_check_branch
    %27 = sbr.rel (0) target = $region5
  $region4: #{_lambda_.1} parent=0 // pred_region
    _
  $region5: #{_lambda_.1} parent=0 // pred_fallthru
    _
  // Predicated region
  $region6: #{_lambda_.1} parent=0 // pred_check
    _
  $region7: #{_lambda_.1} parent=0 // pred_check_branch
    %29 = sbr.rel (0) target = $region9
  $region8: #{_lambda_.1} parent=0 // pred_region
    _
  $region9: #{_lambda_.1} parent=0 // pred_fallthru
    _
  // Predicated region
  $region10: #{_lambda_.1} parent=0 // pred_check
    _
  $region11: #{_lambda_.1} parent=0 // pred_check_branch
    %31 = sbr.rel (0) target = $region13
  $region12: #{_lambda_.1} parent=0 // pred_region
    _
  $region13: #{_lambda_.1} parent=0 // pred_fallthru
    _
  // Predicated region
  $region14: #{_lambda_.1} parent=0 // pred_check
    _
  $region15: #{_lambda_.1} parent=0 // pred_check_branch
    %33 = sbr.rel (0) target = $region17
  $region16: #{_lambda_.1} parent=0 // pred_region
    _
  $region17: #{_lambda_.1} parent=0 // pred_fallthru
    _
  // Predicated region
  $region18: #{_lambda_.1} parent=0 // pred_check
    _
  $region19: #{_lambda_.1} parent=0 // pred_check_branch
    %35 = sbr.rel (0) target = $region21
  $region20: #{_lambda_.1} parent=0 // pred_region
    _
  $region21: #{_lambda_.1} parent=0 // pred_fallthru
    _
  // Predicated region
  $region22: #{_lambda_.1} parent=0 // pred_check
    _
  $region23: #{_lambda_.1} parent=0 // pred_check_branch
    %37 = sbr.rel (0) target = $region25
  $region24: #{_lambda_.1} parent=0 // pred_region
    _
  $region25: #{_lambda_.1} parent=0 // pred_fallthru
    _
  // Predicated region
  $region26: #{_lambda_.1} parent=0 // pred_check
    _
  $region27: #{_lambda_.1} parent=0 // pred_check_branch
    %39 = sbr.rel (0) target = $region29
  $region28: #{_lambda_.1} parent=0 // pred_region
    _
  $region29: #{_lambda_.1} parent=0 // pred_fallthru
    _
  // Predicated region
  $region30: #{_lambda_.1} parent=0 // pred_check
    _
  $region31: #{_lambda_.1} parent=0 // pred_check_branch
    %41 = sbr.rel (0) target = $region33
  $region32: #{_lambda_.1} parent=0 // pred_region
    _
  $region33: #{_lambda_.1} parent=0 // pred_fallthru
    _
  // Predicated region
  $region34: #{_lambda_.1} parent=0 // pred_check
    _
  $region35: #{_lambda_.1} parent=0 // pred_check_branch
    %43 = sbr.rel (0) target = $region37
  $region36: #{_lambda_.1} parent=0 // pred_region
    _
  $region37: #{_lambda_.1} parent=0 // pred_fallthru
    _
  // Predicated region
  $region38: #{_lambda_.1} parent=0 // pred_check
    _
  $region39: #{_lambda_.1} parent=0 // pred_check_branch
    %45 = sbr.rel (0) target = $region41
  $region40: #{_lambda_.1} parent=0 // pred_region
    _
  $region41: #{_lambda_.1} parent=0 // pred_fallthru
    _
  // Predicated region
  $region42: #{_lambda_.1} parent=0 // pred_check
    _
  $region43: #{_lambda_.1} parent=0 // pred_check_branch
    %47 = sbr.rel (0) target = $region45
  $region44: #{_lambda_.1} parent=0 // pred_region
    _
  $region45: #{_lambda_.1} parent=0 // pred_fallthru
    _
  // Predicated region
  $region46: #{_lambda_.1} parent=0 // pred_check
    _
  $region47: #{_lambda_.1} parent=0 // pred_check_branch
    %49 = sbr.rel (0) target = $region49
  $region48: #{_lambda_.1} parent=0 // pred_region
    _
  $region49: #{_lambda_.1} parent=0 // pred_fallthru
    _
  // Predicated region
  $region50: #{_lambda_.1} parent=0 // pred_check
    _
  $region51: #{_lambda_.1} parent=0 // pred_check_branch
    %51 = sbr.rel (0) target = $region53
  $region52: #{_lambda_.1} parent=0 // pred_region
    _
  $region53: #{_lambda_.1} parent=0 // pred_fallthru
    _
  // Predicated region
  $region54: #{_lambda_.1} parent=0 // pred_check
    _
  $region55: #{_lambda_.1} parent=0 // pred_check_branch
    %53 = sbr.rel (0) target = $region57
  $region56: #{_lambda_.1} parent=0 // pred_region
    _
  $region57: #{_lambda_.1} parent=0 // pred_fallthru
    _
  // Predicated region
  $region58: #{_lambda_.1} parent=0 // pred_check
    _
  $region59: #{_lambda_.1} parent=0 // pred_check_branch
    %55 = sbr.rel (0) target = $region61
  $region60: #{_lambda_.1} parent=0 // pred_region
    _
  $region61: #{_lambda_.1} parent=0 // pred_fallthru
    _
  // Predicated region
  $region62: #{_lambda_.1} parent=0 // pred_check
    _
  $region63: #{_lambda_.1} parent=0 // pred_check_branch
    %57 = sbr.rel (0) target = $region65
  $region64: #{_lambda_.1} parent=0 // pred_region
    _
  $region65: #{_lambda_.1} parent=0 // pred_fallthru
    _
  // Predicated region
  $region66: #{_lambda_.1} parent=0 // pred_check
    _
  $region67: #{_lambda_.1} parent=0 // pred_check_branch
    %59 = sbr.rel (0) target = $region69
  $region68: #{_lambda_.1} parent=0 // pred_region
    _
  $region69: #{_lambda_.1} parent=0 // pred_fallthru
    _
  // Predicated region
  $region70: #{_lambda_.1} parent=0 // pred_check
    _
  $region71: #{_lambda_.1} parent=0 // pred_check_branch
    %61 = sbr.rel (0) target = $region73
  $region72: #{_lambda_.1} parent=0 // pred_region
    _
  $region73: #{_lambda_.1} parent=0 // pred_fallthru
    _
  // Predicated region
  $region74: #{_lambda_.1} parent=0 // pred_check
    _
  $region75: #{_lambda_.1} parent=0 // pred_check_branch
    %63 = sbr.rel (0) target = $region77
  $region76: #{_lambda_.1} parent=0 // pred_region
    _
  $region77: #{_lambda_.1} parent=0 // pred_fallthru
    _
  // Predicated region
  $region78: #{_lambda_.1} parent=0 // pred_check
    _
  $region79: #{_lambda_.1} parent=0 // pred_check_branch
    %65 = sbr.rel (0) target = $region81
  $region80: #{_lambda_.1} parent=0 // pred_region
    _
  $region81: #{_lambda_.1} parent=0 // pred_fallthru
    _
  // Predicated region
  $region82: #{_lambda_.1} parent=0 // pred_check
    _
  $region83: #{_lambda_.1} parent=0 // pred_check_branch
    %67 = sbr.rel (0) target = $region85
  $region84: #{_lambda_.1} parent=0 // pred_region
    _
  $region85: #{_lambda_.1} parent=0 // pred_fallthru
    _
  %v69 = vld [vmem:[%s1] sm:$0xff]
  %v70 = vld [vmem:[%s1 + $0x8] sm:$0xff]
  %v71 = vld [vmem:[%s0] sm:$0xff]
  %v72 = vld [vmem:[%s0 + $0x8] sm:$0xff]
  %v73 = vld [vmem:[%s2] sm:$0x1]
  %v74 = vld [vmem:[%s3] sm:$0x1]
  %vm75 = vcmask 261120
  %v76 = vsel %vm75, %v71, 0.0
  %77 = vadd.xlane.f32.xlu0 %v76
  %v78 = vpop.xlane.xlu0 %77
  %v79 = vsel %vm75, %v72, 0.0
  %80 = vadd.xlane.f32.xlu0 %v79
  %v81 = vpop.xlane.xlu0 %80
  %v82 = vrcp.pop 32.0
  %v83 = vmul.f32 %v78, %v82
  %v84 = vmul.f32 %v81, %v82
  %v85 = vsub.f32 %v71, %v83
  %v86 = vsub.f32 %v72, %v84
  %v87 = vmul.f32 %v85, %v85
  %v88 = vmul.f32 %v86, %v86
  %v89 = vsel %vm75, %v87, 0.0
  %90 = vadd.xlane.f32.xlu0 %v89
  %v91 = vpop.xlane.xlu0 %90
  %v92 = vsel %vm75, %v88, 0.0
  %93 = vadd.xlane.f32.xlu0 %v92
  %v94 = vpop.xlane.xlu0 %93
  %v95 = vmul.f32 %v91, %v82
  %v96 = vmul.f32 %v94, %v82
  %v97 = vadd.f32 %v95, 1e-12
  %v98 = vadd.f32 %v96, 1e-12
  %v99 = vrsqrt.pop %v97
  %v100 = vrsqrt.pop %v98
  %v101 = vmul.f32 %v85, %v99
  %v102 = vmul.f32 %v86, %v100
  %v104 = vlaneseq
  %v105 = vshrl.u32 %v104, 7
  %v106 = vsub.s32 0, %v105
  %v107 = vrot.slane %v73, %v106
  %v109 = vmul.f32 %v101, %v107
  %v110 = vmul.f32 %v102, %v107
  %v112 = vlaneseq
  %v113 = vshrl.u32 %v112, 7
  %v114 = vsub.s32 0, %v113
  %v115 = vrot.slane %v74, %v114
  %v117 = vadd.f32 %v109, %v115
  %v118 = vadd.f32 %v110, %v115
  %v119 = vld [vmem:[%s4] sm:$0xf]
  %v120 = vld [vmem:[%s4 + $0x4] sm:$0xf]
  %v121 = vld [vmem:[%s4 + $0x8] sm:$0xf]
  %v122 = vld [vmem:[%s4 + $0xc] sm:$0xf]
  %v123 = vpack.c.bf16 %v118, %v117
  %v124 = vld [vmem:[%s7] sm:$0x1]
  %v126 = vlaneseq
  %v127 = vshrl.u32 %v126, 7
  %v128 = vsub.s32 0, %v127
  %v129 = vrot.slane %v124, %v128
  %v135 = vunpack.c.l.b16 %v119
  %v136 = vunpack.c.l.b16 %v120
  %v137 = vunpack.c.l.b16 %v121
  %v138 = vunpack.c.l.b16 %v122
  %v139 = vpack.c.b16 %v136, %v135
  %v140 = vpack.c.b16 %v138, %v137
  %v144 = vsel %vm75, %v123, 0
  %146 = vmatprep.subr.bf16.mxu0 0
  %147 = vmatpush1.bf16.msra.mxu0 %v139
  %148 = vmatprep.subr.bf16.mxu0 0
  %149 = vmatpush1.bf16.msra.mxu0 %v140
  %150 = vmatprep.subr.bf16.mxu0 0
  %151 = vmatpush1.bf16.msra.mxu0 0
  %152 = vmatprep.subr.bf16.mxu0 0
  %153 = vmatpush1.bf16.msra.mxu0 0
  %154 = vmatprep.subr.bf16.mxu0 0
  %155 = vmatpush1.bf16.msra.mxu0 0
  %156 = vmatprep.subr.bf16.mxu0 0
  %157 = vmatpush1.bf16.msra.mxu0 0
  %158 = vmatprep.subr.bf16.mxu0 0
  %159 = vmatpush1.bf16.msra.mxu0 0
  %160 = vmatprep.subr.bf16.mxu0 0
  %161 = vmatpush1.bf16.msra.mxu0 0
  %162 = vmatprep.subr.bf16.mxu0 0
  %163 = vmatpush1.bf16.msra.mxu0 0
  %164 = vmatprep.subr.bf16.mxu0 0
  %165 = vmatpush1.bf16.msra.mxu0 0
  %166 = vmatprep.subr.bf16.mxu0 0
  %167 = vmatpush1.bf16.msra.mxu0 0
  %168 = vmatprep.subr.bf16.mxu0 0
  %169 = vmatpush1.bf16.msra.mxu0 0
  %170 = vmatprep.subr.bf16.mxu0 0
  %171 = vmatpush1.bf16.msra.mxu0 0
  %172 = vmatprep.subr.bf16.mxu0 0
  %173 = vmatpush1.bf16.msra.mxu0 0
  %174 = vmatprep.subr.bf16.mxu0 0
  %175 = vmatpush1.bf16.msra.mxu0 0
  %176 = vmatprep.subr.bf16.mxu0 0
  %177 = vmatpush1.bf16.msra.mxu0 0
  %178 = vmatprep.mubr.bf16.mxu0 0
  %179 = vmatmul.mubr.bf16.gmra.mrb[0].mxu0 %v144
  %v180 = vpop.f32.mrb[0].mxu0
  %v181 = vadd.f32 %v129, %v180
  %v182 = vpop.f32.mrb[0].mxu0
  %v183 = vpop.f32.mrb[0].mxu0
  %v184 = vadd.f32 %v129, %v183
  %v185 = vpop.f32.mrb[0].mxu0
  %186 = vdwg.mxu0
  %v187 = vld [vmem:[%s5] sm:$0xf]
  %v188 = vld [vmem:[%s5 + $0x4] sm:$0xf]
  %v189 = vld [vmem:[%s5 + $0x8] sm:$0xf]
  %v190 = vld [vmem:[%s5 + $0xc] sm:$0xf]
  %v191 = vld [vmem:[%s8] sm:$0x1]
  %v193 = vlaneseq
  %v194 = vshrl.u32 %v193, 7
  %v195 = vsub.s32 0, %v194
  %v196 = vrot.slane %v191, %v195
  %v202 = vunpack.c.l.b16 %v187
  %v203 = vunpack.c.l.b16 %v188
  %v204 = vunpack.c.l.b16 %v189
  %v205 = vunpack.c.l.b16 %v190
  %v206 = vpack.c.b16 %v203, %v202
  %v207 = vpack.c.b16 %v205, %v204
  %210 = vmatprep.subr.bf16.mxu0 0
  %211 = vmatpush1.bf16.msra.mxu0 %v206
  %212 = vmatprep.subr.bf16.mxu0 0
  %213 = vmatpush1.bf16.msra.mxu0 %v207
  %214 = vmatprep.subr.bf16.mxu0 0
  %215 = vmatpush1.bf16.msra.mxu0 0
  %216 = vmatprep.subr.bf16.mxu0 0
  %217 = vmatpush1.bf16.msra.mxu0 0
  %218 = vmatprep.subr.bf16.mxu0 0
  %219 = vmatpush1.bf16.msra.mxu0 0
  %220 = vmatprep.subr.bf16.mxu0 0
  %221 = vmatpush1.bf16.msra.mxu0 0
  %222 = vmatprep.subr.bf16.mxu0 0
  %223 = vmatpush1.bf16.msra.mxu0 0
  %224 = vmatprep.subr.bf16.mxu0 0
  %225 = vmatpush1.bf16.msra.mxu0 0
  %226 = vmatprep.subr.bf16.mxu0 0
  %227 = vmatpush1.bf16.msra.mxu0 0
  %228 = vmatprep.subr.bf16.mxu0 0
  %229 = vmatpush1.bf16.msra.mxu0 0
  %230 = vmatprep.subr.bf16.mxu0 0
  %231 = vmatpush1.bf16.msra.mxu0 0
  %232 = vmatprep.subr.bf16.mxu0 0
  %233 = vmatpush1.bf16.msra.mxu0 0
  %234 = vmatprep.subr.bf16.mxu0 0
  %235 = vmatpush1.bf16.msra.mxu0 0
  %236 = vmatprep.subr.bf16.mxu0 0
  %237 = vmatpush1.bf16.msra.mxu0 0
  %238 = vmatprep.subr.bf16.mxu0 0
  %239 = vmatpush1.bf16.msra.mxu0 0
  %240 = vmatprep.subr.bf16.mxu0 0
  %241 = vmatpush1.bf16.msra.mxu0 0
  %242 = vmatprep.mubr.bf16.mxu0 0
  %243 = vmatmul.mubr.bf16.gmra.mrb[0].mxu0 %v144
  %v244 = vpop.f32.mrb[0].mxu0
  %v245 = vadd.f32 %v196, %v244
  %v246 = vpop.f32.mrb[0].mxu0
  %v247 = vpop.f32.mrb[0].mxu0
  %v248 = vadd.f32 %v196, %v247
  %v249 = vpop.f32.mrb[0].mxu0
  %250 = vdwg.mxu0
  %v251 = vld [vmem:[%s6] sm:$0xf]
  %v252 = vld [vmem:[%s6 + $0x4] sm:$0xf]
  %v253 = vld [vmem:[%s6 + $0x8] sm:$0xf]
  %v254 = vld [vmem:[%s6 + $0xc] sm:$0xf]
  %v255 = vld [vmem:[%s9] sm:$0x1]
  %v257 = vlaneseq
  %v258 = vshrl.u32 %v257, 7
  %v259 = vsub.s32 0, %v258
  %v260 = vrot.slane %v255, %v259
  %v266 = vunpack.c.l.b16 %v251
  %v267 = vunpack.c.l.b16 %v252
  %v268 = vunpack.c.l.b16 %v253
  %v269 = vunpack.c.l.b16 %v254
  %v270 = vpack.c.b16 %v267, %v266
  %v271 = vpack.c.b16 %v269, %v268
  %274 = vmatprep.subr.bf16.mxu0 0
  %275 = vmatpush1.bf16.msra.mxu0 %v270
  %276 = vmatprep.subr.bf16.mxu0 0
  %277 = vmatpush1.bf16.msra.mxu0 %v271
  %278 = vmatprep.subr.bf16.mxu0 0
  %279 = vmatpush1.bf16.msra.mxu0 0
  %280 = vmatprep.subr.bf16.mxu0 0
  %281 = vmatpush1.bf16.msra.mxu0 0
  %282 = vmatprep.subr.bf16.mxu0 0
  %283 = vmatpush1.bf16.msra.mxu0 0
  %284 = vmatprep.subr.bf16.mxu0 0
  %285 = vmatpush1.bf16.msra.mxu0 0
  %286 = vmatprep.subr.bf16.mxu0 0
  %287 = vmatpush1.bf16.msra.mxu0 0
  %288 = vmatprep.subr.bf16.mxu0 0
  %289 = vmatpush1.bf16.msra.mxu0 0
  %290 = vmatprep.subr.bf16.mxu0 0
  %291 = vmatpush1.bf16.msra.mxu0 0
  %292 = vmatprep.subr.bf16.mxu0 0
  %293 = vmatpush1.bf16.msra.mxu0 0
  %294 = vmatprep.subr.bf16.mxu0 0
  %295 = vmatpush1.bf16.msra.mxu0 0
  %296 = vmatprep.subr.bf16.mxu0 0
  %297 = vmatpush1.bf16.msra.mxu0 0
  %298 = vmatprep.subr.bf16.mxu0 0
  %299 = vmatpush1.bf16.msra.mxu0 0
  %300 = vmatprep.subr.bf16.mxu0 0
  %301 = vmatpush1.bf16.msra.mxu0 0
  %302 = vmatprep.subr.bf16.mxu0 0
  %303 = vmatpush1.bf16.msra.mxu0 0
  %304 = vmatprep.subr.bf16.mxu0 0
  %305 = vmatpush1.bf16.msra.mxu0 0
  %306 = vmatprep.mubr.bf16.mxu0 0
  %307 = vmatmul.mubr.bf16.gmra.mrb[0].mxu0 %v144
  %v308 = vpop.f32.mrb[0].mxu0
  %v309 = vadd.f32 %v260, %v308
  %v310 = vpop.f32.mrb[0].mxu0
  %v311 = vpop.f32.mrb[0].mxu0
  %v312 = vadd.f32 %v260, %v311
  %v313 = vpop.f32.mrb[0].mxu0
  %314 = vdwg.mxu0
  %v315 = vpack.c.bf16 %v184, %v181
  %v316 = vpack.c.bf16 %v248, %v245
  %vm317 = vcmask 130048
  %v319 = vsel %vm317, %v315, 0
  %v322 = vsel %vm317, %v316, 0
  %324 = vmatprep.subr.bf16.mxu0 0
  %325 = vmatpush1.bf16.xpose.msra.mxu0 %v322
  %326 = vmatprep.subr.bf16.mxu0 0
  %327 = vmatpush1.bf16.xpose.msra.mxu0 0
  %328 = vmatprep.subr.bf16.mxu0 0
  %329 = vmatpush1.bf16.xpose.msra.mxu0 0
  %330 = vmatprep.subr.bf16.mxu0 0
  %331 = vmatpush1.bf16.xpose.msra.mxu0 0
  %332 = vmatprep.subr.bf16.mxu0 0
  %333 = vmatpush1.bf16.xpose.msra.mxu0 0
  %334 = vmatprep.subr.bf16.mxu0 0
  %335 = vmatpush1.bf16.xpose.msra.mxu0 0
  %336 = vmatprep.subr.bf16.mxu0 0
  %337 = vmatpush1.bf16.xpose.msra.mxu0 0
  %338 = vmatprep.subr.bf16.mxu0 0
  %339 = vmatpush1.bf16.xpose.msra.mxu0 0
  %340 = vmatprep.subr.bf16.mxu0 0
  %341 = vmatpush1.bf16.xpose.msra.mxu0 0
  %342 = vmatprep.subr.bf16.mxu0 0
  %343 = vmatpush1.bf16.xpose.msra.mxu0 0
  %344 = vmatprep.subr.bf16.mxu0 0
  %345 = vmatpush1.bf16.xpose.msra.mxu0 0
  %346 = vmatprep.subr.bf16.mxu0 0
  %347 = vmatpush1.bf16.xpose.msra.mxu0 0
  %348 = vmatprep.subr.bf16.mxu0 0
  %349 = vmatpush1.bf16.xpose.msra.mxu0 0
  %350 = vmatprep.subr.bf16.mxu0 0
  %351 = vmatpush1.bf16.xpose.msra.mxu0 0
  %352 = vmatprep.subr.bf16.mxu0 0
  %353 = vmatpush1.bf16.xpose.msra.mxu0 0
  %354 = vmatprep.subr.bf16.mxu0 0
  %355 = vmatpush1.bf16.xpose.msra.mxu0 0
  %356 = vmatprep.mubr.bf16.mxu0 0
  %357 = vmatmul.mubr.bf16.gmra.mrb[0].mxu0 %v319
  %v358 = vpop.f32.mrb[0].mxu0
  %v359 = vadd.f32 0.0, %v358
  %v360 = vpop.f32.mrb[0].mxu0
  %v361 = vpop.f32.mrb[0].mxu0
  %v362 = vadd.f32 0.0, %v361
  %v363 = vpop.f32.mrb[0].mxu0
  %364 = vdwg.mxu0
  %v365 = vmul.f32 %v359, 0.25
  %v366 = vmul.f32 %v362, 0.25
  %v367 = vadd.f32 %v365, %v69
  %v368 = vadd.f32 %v366, %v70
  %v369 = vsel %vm317, %v367, -inf
  %370 = vmax.xlane.f32.xlu0 %v369
  %v371 = vpop.xlane.xlu0 %370
  %v372 = vsel %vm317, %v368, -inf
  %373 = vmax.xlane.f32.xlu0 %v372
  %v374 = vpop.xlane.xlu0 %373
  %v375 = vsub.f32 %v367, %v371
  %v376 = vsub.f32 %v368, %v374
  %v377 = vmul.f32 %v375, 1.442695
  %v378 = vpow.pop %v377
  %v379 = vmul.f32 %v376, 1.442695
  %v380 = vpow.pop %v379
  %v381 = vsel %vm317, %v378, 0.0
  %382 = vadd.xlane.f32.xlu0 %v381
  %v383 = vpop.xlane.xlu0 %382
  %v384 = vsel %vm317, %v380, 0.0
  %385 = vadd.xlane.f32.xlu0 %v384
  %v386 = vpop.xlane.xlu0 %385
  %v387 = vrcp.pop %v383
  %v388 = vrcp.pop %v386
  %v389 = vmul.f32 %v378, %v387
  %v390 = vmul.f32 %v380, %v388
  %v391 = vpack.c.bf16 %v390, %v389
  %v392 = vpack.c.bf16 %v312, %v309
  %v394 = vsel %vm317, %v391, 0
  %396 = vmatprep.subr.bf16.mxu0 0
  %397 = vmatpush1.bf16.msra.mxu0 %v392
  %398 = vmatprep.subr.bf16.mxu0 0
  %399 = vmatpush1.bf16.msra.mxu0 0
  %400 = vmatprep.subr.bf16.mxu0 0
  %401 = vmatpush1.bf16.msra.mxu0 0
  %402 = vmatprep.subr.bf16.mxu0 0
  %403 = vmatpush1.bf16.msra.mxu0 0
  %404 = vmatprep.subr.bf16.mxu0 0
  %405 = vmatpush1.bf16.msra.mxu0 0
  %406 = vmatprep.subr.bf16.mxu0 0
  %407 = vmatpush1.bf16.msra.mxu0 0
  %408 = vmatprep.subr.bf16.mxu0 0
  %409 = vmatpush1.bf16.msra.mxu0 0
  %410 = vmatprep.subr.bf16.mxu0 0
  %411 = vmatpush1.bf16.msra.mxu0 0
  %412 = vmatprep.subr.bf16.mxu0 0
  %413 = vmatpush1.bf16.msra.mxu0 0
  %414 = vmatprep.subr.bf16.mxu0 0
  %415 = vmatpush1.bf16.msra.mxu0 0
  %416 = vmatprep.subr.bf16.mxu0 0
  %417 = vmatpush1.bf16.msra.mxu0 0
  %418 = vmatprep.subr.bf16.mxu0 0
  %419 = vmatpush1.bf16.msra.mxu0 0
  %420 = vmatprep.subr.bf16.mxu0 0
  %421 = vmatpush1.bf16.msra.mxu0 0
  %422 = vmatprep.subr.bf16.mxu0 0
  %423 = vmatpush1.bf16.msra.mxu0 0
  %424 = vmatprep.subr.bf16.mxu0 0
  %425 = vmatpush1.bf16.msra.mxu0 0
  %426 = vmatprep.subr.bf16.mxu0 0
  %427 = vmatpush1.bf16.msra.mxu0 0
  %428 = vmatprep.mubr.bf16.mxu0 0
  %429 = vmatmul.mubr.bf16.gmra.mrb[0].mxu0 %v394
  %v430 = vpop.f32.mrb[0].mxu0
  %v431 = vadd.f32 0.0, %v430
  %v432 = vpop.f32.mrb[0].mxu0
  %v433 = vpop.f32.mrb[0].mxu0
  %v434 = vadd.f32 0.0, %v433
  %v435 = vpop.f32.mrb[0].mxu0
  %436 = vdwg.mxu0
  %v437 = vld [vmem:[%s10] sm:$0xf]
  %v438 = vld [vmem:[%s10 + $0x4] sm:$0xf]
  %v439 = vpack.c.bf16 %v434, %v431
  %s440 = scalar_lea.vmem %s4, 16
  %v441 = vld [vmem:[%s440] sm:$0xf]
  %v442 = vld [vmem:[%s440 + $0x4] sm:$0xf]
  %v443 = vld [vmem:[%s440 + $0x8] sm:$0xf]
  %v444 = vld [vmem:[%s440 + $0xc] sm:$0xf]
  %s445 = scalar_lea.vmem %s7, 1
  %v446 = vld [vmem:[%s445] sm:$0x1]
  %v448 = vlaneseq
  %v449 = vshrl.u32 %v448, 7
  %v450 = vsub.s32 0, %v449
  %v451 = vrot.slane %v446, %v450
  %v457 = vunpack.c.l.b16 %v441
  %v458 = vunpack.c.l.b16 %v442
  %v459 = vunpack.c.l.b16 %v443
  %v460 = vunpack.c.l.b16 %v444
  %v461 = vpack.c.b16 %v458, %v457
  %v462 = vpack.c.b16 %v460, %v459
  %465 = vmatprep.subr.bf16.mxu0 0
  %466 = vmatpush1.bf16.msra.mxu0 %v461
  %467 = vmatprep.subr.bf16.mxu0 0
  %468 = vmatpush1.bf16.msra.mxu0 %v462
  %469 = vmatprep.subr.bf16.mxu0 0
  %470 = vmatpush1.bf16.msra.mxu0 0
  %471 = vmatprep.subr.bf16.mxu0 0
  %472 = vmatpush1.bf16.msra.mxu0 0
  %473 = vmatprep.subr.bf16.mxu0 0
  %474 = vmatpush1.bf16.msra.mxu0 0
  %475 = vmatprep.subr.bf16.mxu0 0
  %476 = vmatpush1.bf16.msra.mxu0 0
  %477 = vmatprep.subr.bf16.mxu0 0
  %478 = vmatpush1.bf16.msra.mxu0 0
  %479 = vmatprep.subr.bf16.mxu0 0
  %480 = vmatpush1.bf16.msra.mxu0 0
  %481 = vmatprep.subr.bf16.mxu0 0
  %482 = vmatpush1.bf16.msra.mxu0 0
  %483 = vmatprep.subr.bf16.mxu0 0
  %484 = vmatpush1.bf16.msra.mxu0 0
  %485 = vmatprep.subr.bf16.mxu0 0
  %486 = vmatpush1.bf16.msra.mxu0 0
  %487 = vmatprep.subr.bf16.mxu0 0
  %488 = vmatpush1.bf16.msra.mxu0 0
  %489 = vmatprep.subr.bf16.mxu0 0
  %490 = vmatpush1.bf16.msra.mxu0 0
  %491 = vmatprep.subr.bf16.mxu0 0
  %492 = vmatpush1.bf16.msra.mxu0 0
  %493 = vmatprep.subr.bf16.mxu0 0
  %494 = vmatpush1.bf16.msra.mxu0 0
  %495 = vmatprep.subr.bf16.mxu0 0
  %496 = vmatpush1.bf16.msra.mxu0 0
  %497 = vmatprep.mubr.bf16.mxu0 0
  %498 = vmatmul.mubr.bf16.gmra.mrb[0].mxu0 %v144
  %v499 = vpop.f32.mrb[0].mxu0
  %v500 = vadd.f32 %v451, %v499
  %v501 = vpop.f32.mrb[0].mxu0
  %v502 = vpop.f32.mrb[0].mxu0
  %v503 = vadd.f32 %v451, %v502
  %v504 = vpop.f32.mrb[0].mxu0
  %505 = vdwg.mxu0
  %s506 = scalar_lea.vmem %s5, 16
  %v507 = vld [vmem:[%s506] sm:$0xf]
  %v508 = vld [vmem:[%s506 + $0x4] sm:$0xf]
  %v509 = vld [vmem:[%s506 + $0x8] sm:$0xf]
  %v510 = vld [vmem:[%s506 + $0xc] sm:$0xf]
  %s511 = scalar_lea.vmem %s8, 1
  %v512 = vld [vmem:[%s511] sm:$0x1]
  %v514 = vlaneseq
  %v515 = vshrl.u32 %v514, 7
  %v516 = vsub.s32 0, %v515
  %v517 = vrot.slane %v512, %v516
  %v523 = vunpack.c.l.b16 %v507
  %v524 = vunpack.c.l.b16 %v508
  %v525 = vunpack.c.l.b16 %v509
  %v526 = vunpack.c.l.b16 %v510
  %v527 = vpack.c.b16 %v524, %v523
  %v528 = vpack.c.b16 %v526, %v525
  %531 = vmatprep.subr.bf16.mxu0 0
  %532 = vmatpush1.bf16.msra.mxu0 %v527
  %533 = vmatprep.subr.bf16.mxu0 0
  %534 = vmatpush1.bf16.msra.mxu0 %v528
  %535 = vmatprep.subr.bf16.mxu0 0
  %536 = vmatpush1.bf16.msra.mxu0 0
  %537 = vmatprep.subr.bf16.mxu0 0
  %538 = vmatpush1.bf16.msra.mxu0 0
  %539 = vmatprep.subr.bf16.mxu0 0
  %540 = vmatpush1.bf16.msra.mxu0 0
  %541 = vmatprep.subr.bf16.mxu0 0
  %542 = vmatpush1.bf16.msra.mxu0 0
  %543 = vmatprep.subr.bf16.mxu0 0
  %544 = vmatpush1.bf16.msra.mxu0 0
  %545 = vmatprep.subr.bf16.mxu0 0
  %546 = vmatpush1.bf16.msra.mxu0 0
  %547 = vmatprep.subr.bf16.mxu0 0
  %548 = vmatpush1.bf16.msra.mxu0 0
  %549 = vmatprep.subr.bf16.mxu0 0
  %550 = vmatpush1.bf16.msra.mxu0 0
  %551 = vmatprep.subr.bf16.mxu0 0
  %552 = vmatpush1.bf16.msra.mxu0 0
  %553 = vmatprep.subr.bf16.mxu0 0
  %554 = vmatpush1.bf16.msra.mxu0 0
  %555 = vmatprep.subr.bf16.mxu0 0
  %556 = vmatpush1.bf16.msra.mxu0 0
  %557 = vmatprep.subr.bf16.mxu0 0
  %558 = vmatpush1.bf16.msra.mxu0 0
  %559 = vmatprep.subr.bf16.mxu0 0
  %560 = vmatpush1.bf16.msra.mxu0 0
  %561 = vmatprep.subr.bf16.mxu0 0
  %562 = vmatpush1.bf16.msra.mxu0 0
  %563 = vmatprep.mubr.bf16.mxu0 0
  %564 = vmatmul.mubr.bf16.gmra.mrb[0].mxu0 %v144
  %v565 = vpop.f32.mrb[0].mxu0
  %v566 = vadd.f32 %v517, %v565
  %v567 = vpop.f32.mrb[0].mxu0
  %v568 = vpop.f32.mrb[0].mxu0
  %v569 = vadd.f32 %v517, %v568
  %v570 = vpop.f32.mrb[0].mxu0
  %571 = vdwg.mxu0
  %s572 = scalar_lea.vmem %s6, 16
  %v573 = vld [vmem:[%s572] sm:$0xf]
  %v574 = vld [vmem:[%s572 + $0x4] sm:$0xf]
  %v575 = vld [vmem:[%s572 + $0x8] sm:$0xf]
  %v576 = vld [vmem:[%s572 + $0xc] sm:$0xf]
  %s577 = scalar_lea.vmem %s9, 1
  %v578 = vld [vmem:[%s577] sm:$0x1]
  %v580 = vlaneseq
  %v581 = vshrl.u32 %v580, 7
  %v582 = vsub.s32 0, %v581
  %v583 = vrot.slane %v578, %v582
  %v589 = vunpack.c.l.b16 %v573
  %v590 = vunpack.c.l.b16 %v574
  %v591 = vunpack.c.l.b16 %v575
  %v592 = vunpack.c.l.b16 %v576
  %v593 = vpack.c.b16 %v590, %v589
  %v594 = vpack.c.b16 %v592, %v591
  %597 = vmatprep.subr.bf16.mxu0 0
  %598 = vmatpush1.bf16.msra.mxu0 %v593
  %599 = vmatprep.subr.bf16.mxu0 0
  %600 = vmatpush1.bf16.msra.mxu0 %v594
  %601 = vmatprep.subr.bf16.mxu0 0
  %602 = vmatpush1.bf16.msra.mxu0 0
  %603 = vmatprep.subr.bf16.mxu0 0
  %604 = vmatpush1.bf16.msra.mxu0 0
  %605 = vmatprep.subr.bf16.mxu0 0
  %606 = vmatpush1.bf16.msra.mxu0 0
  %607 = vmatprep.subr.bf16.mxu0 0
  %608 = vmatpush1.bf16.msra.mxu0 0
  %609 = vmatprep.subr.bf16.mxu0 0
  %610 = vmatpush1.bf16.msra.mxu0 0
  %611 = vmatprep.subr.bf16.mxu0 0
  %612 = vmatpush1.bf16.msra.mxu0 0
  %613 = vmatprep.subr.bf16.mxu0 0
  %614 = vmatpush1.bf16.msra.mxu0 0
  %615 = vmatprep.subr.bf16.mxu0 0
  %616 = vmatpush1.bf16.msra.mxu0 0
  %617 = vmatprep.subr.bf16.mxu0 0
  %618 = vmatpush1.bf16.msra.mxu0 0
  %619 = vmatprep.subr.bf16.mxu0 0
  %620 = vmatpush1.bf16.msra.mxu0 0
  %621 = vmatprep.subr.bf16.mxu0 0
  %622 = vmatpush1.bf16.msra.mxu0 0
  %623 = vmatprep.subr.bf16.mxu0 0
  %624 = vmatpush1.bf16.msra.mxu0 0
  %625 = vmatprep.subr.bf16.mxu0 0
  %626 = vmatpush1.bf16.msra.mxu0 0
  %627 = vmatprep.subr.bf16.mxu0 0
  %628 = vmatpush1.bf16.msra.mxu0 0
  %629 = vmatprep.mubr.bf16.mxu0 0
  %630 = vmatmul.mubr.bf16.gmra.mrb[0].mxu0 %v144
  %v631 = vpop.f32.mrb[0].mxu0
  %v632 = vadd.f32 %v583, %v631
  %v633 = vpop.f32.mrb[0].mxu0
  %v634 = vpop.f32.mrb[0].mxu0
  %v635 = vadd.f32 %v583, %v634
  %v636 = vpop.f32.mrb[0].mxu0
  %637 = vdwg.mxu0
  %v638 = vpack.c.bf16 %v503, %v500
  %v639 = vpack.c.bf16 %v569, %v566
  %v641 = vsel %vm317, %v638, 0
  %v644 = vsel %vm317, %v639, 0
  %646 = vmatprep.subr.bf16.mxu0 0
  %647 = vmatpush1.bf16.xpose.msra.mxu0 %v644
  %648 = vmatprep.subr.bf16.mxu0 0
  %649 = vmatpush1.bf16.xpose.msra.mxu0 0
  %650 = vmatprep.subr.bf16.mxu0 0
  %651 = vmatpush1.bf16.xpose.msra.mxu0 0
  %652 = vmatprep.subr.bf16.mxu0 0
  %653 = vmatpush1.bf16.xpose.msra.mxu0 0
  %654 = vmatprep.subr.bf16.mxu0 0
  %655 = vmatpush1.bf16.xpose.msra.mxu0 0
  %656 = vmatprep.subr.bf16.mxu0 0
  %657 = vmatpush1.bf16.xpose.msra.mxu0 0
  %658 = vmatprep.subr.bf16.mxu0 0
  %659 = vmatpush1.bf16.xpose.msra.mxu0 0
  %660 = vmatprep.subr.bf16.mxu0 0
  %661 = vmatpush1.bf16.xpose.msra.mxu0 0
  %662 = vmatprep.subr.bf16.mxu0 0
  %663 = vmatpush1.bf16.xpose.msra.mxu0 0
  %664 = vmatprep.subr.bf16.mxu0 0
  %665 = vmatpush1.bf16.xpose.msra.mxu0 0
  %666 = vmatprep.subr.bf16.mxu0 0
  %667 = vmatpush1.bf16.xpose.msra.mxu0 0
  %668 = vmatprep.subr.bf16.mxu0 0
  %669 = vmatpush1.bf16.xpose.msra.mxu0 0
  %670 = vmatprep.subr.bf16.mxu0 0
  %671 = vmatpush1.bf16.xpose.msra.mxu0 0
  %672 = vmatprep.subr.bf16.mxu0 0
  %673 = vmatpush1.bf16.xpose.msra.mxu0 0
  %674 = vmatprep.subr.bf16.mxu0 0
  %675 = vmatpush1.bf16.xpose.msra.mxu0 0
  %676 = vmatprep.subr.bf16.mxu0 0
  %677 = vmatpush1.bf16.xpose.msra.mxu0 0
  %678 = vmatprep.mubr.bf16.mxu0 0
  %679 = vmatmul.mubr.bf16.gmra.mrb[0].mxu0 %v641
  %v680 = vpop.f32.mrb[0].mxu0
  %v681 = vadd.f32 0.0, %v680
  %v682 = vpop.f32.mrb[0].mxu0
  %v683 = vpop.f32.mrb[0].mxu0
  %v684 = vadd.f32 0.0, %v683
  %v685 = vpop.f32.mrb[0].mxu0
  %686 = vdwg.mxu0
  %v687 = vmul.f32 %v681, 0.25
  %v688 = vmul.f32 %v684, 0.25
  %v689 = vadd.f32 %v687, %v69
  %v690 = vadd.f32 %v688, %v70
  %v691 = vsel %vm317, %v689, -inf
  %692 = vmax.xlane.f32.xlu0 %v691
  %v693 = vpop.xlane.xlu0 %692
  %v694 = vsel %vm317, %v690, -inf
  %695 = vmax.xlane.f32.xlu0 %v694
  %v696 = vpop.xlane.xlu0 %695
  %v697 = vsub.f32 %v689, %v693
  %v698 = vsub.f32 %v690, %v696
  %v699 = vmul.f32 %v697, 1.442695
  %v700 = vpow.pop %v699
  %v701 = vmul.f32 %v698, 1.442695
  %v702 = vpow.pop %v701
  %v703 = vsel %vm317, %v700, 0.0
  %704 = vadd.xlane.f32.xlu0 %v703
  %v705 = vpop.xlane.xlu0 %704
  %v706 = vsel %vm317, %v702, 0.0
  %707 = vadd.xlane.f32.xlu0 %v706
  %v708 = vpop.xlane.xlu0 %707
  %v709 = vrcp.pop %v705
  %v710 = vrcp.pop %v708
  %v711 = vmul.f32 %v700, %v709
  %v712 = vmul.f32 %v702, %v710
  %v713 = vpack.c.bf16 %v712, %v711
  %v714 = vpack.c.bf16 %v635, %v632
  %v716 = vsel %vm317, %v713, 0
  %718 = vmatprep.subr.bf16.mxu0 0
  %719 = vmatpush1.bf16.msra.mxu0 %v714
  %720 = vmatprep.subr.bf16.mxu0 0
  %721 = vmatpush1.bf16.msra.mxu0 0
  %722 = vmatprep.subr.bf16.mxu0 0
  %723 = vmatpush1.bf16.msra.mxu0 0
  %724 = vmatprep.subr.bf16.mxu0 0
  %725 = vmatpush1.bf16.msra.mxu0 0
  %726 = vmatprep.subr.bf16.mxu0 0
  %727 = vmatpush1.bf16.msra.mxu0 0
  %728 = vmatprep.subr.bf16.mxu0 0
  %729 = vmatpush1.bf16.msra.mxu0 0
  %730 = vmatprep.subr.bf16.mxu0 0
  %731 = vmatpush1.bf16.msra.mxu0 0
  %732 = vmatprep.subr.bf16.mxu0 0
  %733 = vmatpush1.bf16.msra.mxu0 0
  %734 = vmatprep.subr.bf16.mxu0 0
  %735 = vmatpush1.bf16.msra.mxu0 0
  %736 = vmatprep.subr.bf16.mxu0 0
  %737 = vmatpush1.bf16.msra.mxu0 0
  %738 = vmatprep.subr.bf16.mxu0 0
  %739 = vmatpush1.bf16.msra.mxu0 0
  %740 = vmatprep.subr.bf16.mxu0 0
  %741 = vmatpush1.bf16.msra.mxu0 0
  %742 = vmatprep.subr.bf16.mxu0 0
  %743 = vmatpush1.bf16.msra.mxu0 0
  %744 = vmatprep.subr.bf16.mxu0 0
  %745 = vmatpush1.bf16.msra.mxu0 0
  %746 = vmatprep.subr.bf16.mxu0 0
  %747 = vmatpush1.bf16.msra.mxu0 0
  %748 = vmatprep.subr.bf16.mxu0 0
  %749 = vmatpush1.bf16.msra.mxu0 0
  %750 = vmatprep.mubr.bf16.mxu0 0
  %751 = vmatmul.mubr.bf16.gmra.mrb[0].mxu0 %v716
  %v752 = vpop.f32.mrb[0].mxu0
  %v753 = vadd.f32 0.0, %v752
  %v754 = vpop.f32.mrb[0].mxu0
  %v755 = vpop.f32.mrb[0].mxu0
  %v756 = vadd.f32 0.0, %v755
  %v757 = vpop.f32.mrb[0].mxu0
  %758 = vdwg.mxu0
  %s759 = scalar_lea.vmem %s10, 8
  %v760 = vld [vmem:[%s759] sm:$0xf]
  %v761 = vld [vmem:[%s759 + $0x4] sm:$0xf]
  %v762 = vpack.c.bf16 %v756, %v753
  %v765 = vunpack.c.l.b16 %v760
  %v766 = vunpack.c.l.b16 %v761
  %v767 = vpack.c.b16 %v766, %v765
  %v770 = vsel %vm317, %v762, 0
  %772 = vmatprep.subr.bf16.mxu0 0
  %773 = vmatpush1.bf16.msra.mxu0 %v767
  %774 = vmatprep.subr.bf16.mxu0 0
  %775 = vmatpush1.bf16.msra.mxu0 0
  %776 = vmatprep.subr.bf16.mxu0 0
  %777 = vmatpush1.bf16.msra.mxu0 0
  %778 = vmatprep.subr.bf16.mxu0 0
  %779 = vmatpush1.bf16.msra.mxu0 0
  %780 = vmatprep.subr.bf16.mxu0 0
  %781 = vmatpush1.bf16.msra.mxu0 0
  %782 = vmatprep.subr.bf16.mxu0 0
  %783 = vmatpush1.bf16.msra.mxu0 0
  %784 = vmatprep.subr.bf16.mxu0 0
  %785 = vmatpush1.bf16.msra.mxu0 0
  %786 = vmatprep.subr.bf16.mxu0 0
  %787 = vmatpush1.bf16.msra.mxu0 0
  %788 = vmatprep.subr.bf16.mxu0 0
  %789 = vmatpush1.bf16.msra.mxu0 0
  %790 = vmatprep.subr.bf16.mxu0 0
  %791 = vmatpush1.bf16.msra.mxu0 0
  %792 = vmatprep.subr.bf16.mxu0 0
  %793 = vmatpush1.bf16.msra.mxu0 0
  %794 = vmatprep.subr.bf16.mxu0 0
  %795 = vmatpush1.bf16.msra.mxu0 0
  %796 = vmatprep.subr.bf16.mxu0 0
  %797 = vmatpush1.bf16.msra.mxu0 0
  %798 = vmatprep.subr.bf16.mxu0 0
  %799 = vmatpush1.bf16.msra.mxu0 0
  %800 = vmatprep.subr.bf16.mxu0 0
  %801 = vmatpush1.bf16.msra.mxu0 0
  %802 = vmatprep.subr.bf16.mxu0 0
  %803 = vmatpush1.bf16.msra.mxu0 0
  %804 = vmatprep.mubr.bf16.mxu0 0
  %805 = vmatmul.mubr.bf16.gmra.mrb[0].mxu0 %v770
  %v806 = vpop.f32.mrb[0].mxu0
  %v807 = vadd.f32 0.0, %v806
  %v808 = vpop.f32.mrb[0].mxu0
  %v809 = vpop.f32.mrb[0].mxu0
  %v810 = vadd.f32 0.0, %v809
  %v811 = vpop.f32.mrb[0].mxu0
  %812 = vdwg.mxu0
  %v815 = vunpack.c.l.b16 %v437
  %v816 = vunpack.c.l.b16 %v438
  %v817 = vpack.c.b16 %v816, %v815
  %v820 = vsel %vm317, %v439, 0
  %822 = vmatprep.subr.bf16.mxu0 0
  %823 = vmatpush1.bf16.msra.mxu0 %v817
  %824 = vmatprep.subr.bf16.mxu0 0
  %825 = vmatpush1.bf16.msra.mxu0 0
  %826 = vmatprep.subr.bf16.mxu0 0
  %827 = vmatpush1.bf16.msra.mxu0 0
  %828 = vmatprep.subr.bf16.mxu0 0
  %829 = vmatpush1.bf16.msra.mxu0 0
  %830 = vmatprep.subr.bf16.mxu0 0
  %831 = vmatpush1.bf16.msra.mxu0 0
  %832 = vmatprep.subr.bf16.mxu0 0
  %833 = vmatpush1.bf16.msra.mxu0 0
  %834 = vmatprep.subr.bf16.mxu0 0
  %835 = vmatpush1.bf16.msra.mxu0 0
  %836 = vmatprep.subr.bf16.mxu0 0
  %837 = vmatpush1.bf16.msra.mxu0 0
  %838 = vmatprep.subr.bf16.mxu0 0
  %839 = vmatpush1.bf16.msra.mxu0 0
  %840 = vmatprep.subr.bf16.mxu0 0
  %841 = vmatpush1.bf16.msra.mxu0 0
  %842 = vmatprep.subr.bf16.mxu0 0
  %843 = vmatpush1.bf16.msra.mxu0 0
  %844 = vmatprep.subr.bf16.mxu0 0
  %845 = vmatpush1.bf16.msra.mxu0 0
  %846 = vmatprep.subr.bf16.mxu0 0
  %847 = vmatpush1.bf16.msra.mxu0 0
  %848 = vmatprep.subr.bf16.mxu0 0
  %849 = vmatpush1.bf16.msra.mxu0 0
  %850 = vmatprep.subr.bf16.mxu0 0
  %851 = vmatpush1.bf16.msra.mxu0 0
  %852 = vmatprep.subr.bf16.mxu0 0
  %853 = vmatpush1.bf16.msra.mxu0 0
  %854 = vmatprep.mubr.bf16.mxu0 0
  %855 = vmatmul.mubr.bf16.gmra.mrb[0].mxu0 %v820
  %v856 = vpop.f32.mrb[0].mxu0
  %v857 = vadd.f32 %v807, %v856
  %v858 = vpop.f32.mrb[0].mxu0
  %v859 = vpop.f32.mrb[0].mxu0
  %v860 = vadd.f32 %v810, %v859
  %v861 = vpop.f32.mrb[0].mxu0
  %862 = vdwg.mxu0
  %v863 = vadd.f32 %v117, %v857
  %v864 = vadd.f32 %v118, %v860
  %v865 = vld [vmem:[%s11] sm:$0x1]
  %v867 = vlaneseq
  %v868 = vshrl.u32 %v867, 7
  %v869 = vsub.s32 0, %v868
  %v870 = vrot.slane %v865, %v869
  %v872 = vadd.f32 %v863, %v870
  %v873 = vadd.f32 %v864, %v870
  %v874 = vld [vmem:[%s12] sm:$0x1]
  %v875 = vld [vmem:[%s13] sm:$0x1]
  %v876 = vsel %vm75, %v872, 0.0
  %877 = vadd.xlane.f32.xlu0 %v876
  %v878 = vpop.xlane.xlu0 %877
  %v879 = vsel %vm75, %v873, 0.0
  %880 = vadd.xlane.f32.xlu0 %v879
  %v881 = vpop.xlane.xlu0 %880
  %v882 = vmul.f32 %v878, %v82
  %v883 = vmul.f32 %v881, %v82
  %v884 = vsub.f32 %v872, %v882
  %v885 = vsub.f32 %v873, %v883
  %v886 = vmul.f32 %v884, %v884
  %v887 = vmul.f32 %v885, %v885
  %v888 = vsel %vm75, %v886, 0.0
  %889 = vadd.xlane.f32.xlu0 %v888
  %v890 = vpop.xlane.xlu0 %889
  %v891 = vsel %vm75, %v887, 0.0
  %892 = vadd.xlane.f32.xlu0 %v891
  %v893 = vpop.xlane.xlu0 %892
  %v894 = vmul.f32 %v890, %v82
  %v895 = vmul.f32 %v893, %v82
  %v896 = vadd.f32 %v894, 1e-12
  %v897 = vadd.f32 %v895, 1e-12
  %v898 = vrsqrt.pop %v896
  %v899 = vrsqrt.pop %v897
  %v900 = vmul.f32 %v884, %v898
  %v901 = vmul.f32 %v885, %v899
  %v903 = vlaneseq
  %v904 = vshrl.u32 %v903, 7
  %v905 = vsub.s32 0, %v904
  %v906 = vrot.slane %v874, %v905
  %v908 = vmul.f32 %v900, %v906
  %v909 = vmul.f32 %v901, %v906
  %v911 = vlaneseq
  %v912 = vshrl.u32 %v911, 7
  %v913 = vsub.s32 0, %v912
  %v914 = vrot.slane %v875, %v913
  %v916 = vadd.f32 %v908, %v914
  %v917 = vadd.f32 %v909, %v914
  %v918 = vld [vmem:[%s14] sm:$0xf]
  %v919 = vld [vmem:[%s14 + $0x4] sm:$0xf]
  %v920 = vld [vmem:[%s14 + $0x8] sm:$0xf]
  %v921 = vld [vmem:[%s14 + $0xc] sm:$0xf]
  %v922 = vpack.c.bf16 %v917, %v916
  %v923 = vld [vmem:[%s15] sm:$0x1]
  %v925 = vlaneseq
  %v926 = vshrl.u32 %v925, 7
  %v927 = vsub.s32 0, %v926
  %v928 = vrot.slane %v923, %v927
  %v934 = vunpack.c.l.b16 %v918
  %v935 = vunpack.c.l.b16 %v919
  %v936 = vunpack.c.l.b16 %v920
  %v937 = vunpack.c.l.b16 %v921
  %v938 = vpack.c.b16 %v935, %v934
  %v939 = vpack.c.b16 %v937, %v936
  %v943 = vsel %vm75, %v922, 0
  %945 = vmatprep.subr.bf16.mxu0 0
  %946 = vmatpush1.bf16.msra.mxu0 %v938
  %947 = vmatprep.subr.bf16.mxu0 0
  %948 = vmatpush1.bf16.msra.mxu0 %v939
  %949 = vmatprep.subr.bf16.mxu0 0
  %950 = vmatpush1.bf16.msra.mxu0 0
  %951 = vmatprep.subr.bf16.mxu0 0
  %952 = vmatpush1.bf16.msra.mxu0 0
  %953 = vmatprep.subr.bf16.mxu0 0
  %954 = vmatpush1.bf16.msra.mxu0 0
  %955 = vmatprep.subr.bf16.mxu0 0
  %956 = vmatpush1.bf16.msra.mxu0 0
  %957 = vmatprep.subr.bf16.mxu0 0
  %958 = vmatpush1.bf16.msra.mxu0 0
  %959 = vmatprep.subr.bf16.mxu0 0
  %960 = vmatpush1.bf16.msra.mxu0 0
  %961 = vmatprep.subr.bf16.mxu0 0
  %962 = vmatpush1.bf16.msra.mxu0 0
  %963 = vmatprep.subr.bf16.mxu0 0
  %964 = vmatpush1.bf16.msra.mxu0 0
  %965 = vmatprep.subr.bf16.mxu0 0
  %966 = vmatpush1.bf16.msra.mxu0 0
  %967 = vmatprep.subr.bf16.mxu0 0
  %968 = vmatpush1.bf16.msra.mxu0 0
  %969 = vmatprep.subr.bf16.mxu0 0
  %970 = vmatpush1.bf16.msra.mxu0 0
  %971 = vmatprep.subr.bf16.mxu0 0
  %972 = vmatpush1.bf16.msra.mxu0 0
  %973 = vmatprep.subr.bf16.mxu0 0
  %974 = vmatpush1.bf16.msra.mxu0 0
  %975 = vmatprep.subr.bf16.mxu0 0
  %976 = vmatpush1.bf16.msra.mxu0 0
  %977 = vmatprep.mubr.bf16.mxu0 0
  %978 = vmatmul.mubr.bf16.gmra.mrb[0].mxu0 %v943
  %v979 = vpop.f32.mrb[0].mxu0
  %v980 = vadd.f32 %v928, %v979
  %v981 = vpop.f32.mrb[0].mxu0
  %v982 = vpop.f32.mrb[0].mxu0
  %v983 = vadd.f32 %v928, %v982
  %v984 = vpop.f32.mrb[0].mxu0
  %985 = vdwg.mxu0
  %v986 = vmul.f32 %v980, %v980
  %v987 = vmul.f32 %v983, %v983
  %v988 = vmul.f32 %v980, %v986
  %v989 = vmul.f32 %v983, %v987
  %v990 = vmul.f32 %v988, 0.044715
  %v991 = vmul.f32 %v989, 0.044715
  %v992 = vadd.f32 %v980, %v990
  %v993 = vadd.f32 %v983, %v991
  %v994 = vmul.f32 %v992, 0.7978846
  %v995 = vmul.f32 %v993, 0.7978846
  %v996 = vtanh.pop %v994
  %v997 = vtanh.pop %v995
  %v998 = vadd.f32 %v996, 1.0
  %v999 = vadd.f32 %v997, 1.0
  %v1000 = vmul.f32 %v998, 0.5
  %v1001 = vmul.f32 %v999, 0.5
  %v1002 = vmul.f32 %v980, %v1000
  %v1003 = vmul.f32 %v983, %v1001
  %v1004 = vld [vmem:[%s16] sm:$0xf]
  %v1005 = vld [vmem:[%s16 + $0x4] sm:$0xf]
  %v1006 = vld [vmem:[%s16 + $0x8] sm:$0xf]
  %v1007 = vld [vmem:[%s16 + $0xc] sm:$0xf]
  %v1008 = vld [vmem:[%s16 + $0x10] sm:$0xf]
  %v1009 = vld [vmem:[%s16 + $0x14] sm:$0xf]
  %v1010 = vld [vmem:[%s16 + $0x18] sm:$0xf]
  %v1011 = vld [vmem:[%s16 + $0x1c] sm:$0xf]
  %v1012 = vpack.c.bf16 %v1003, %v1002
  %v1013 = vld [vmem:[%s17] sm:$0x1]
  %v1015 = vlaneseq
  %v1016 = vshrl.u32 %v1015, 7
  %v1017 = vsub.s32 0, %v1016
  %v1018 = vrot.slane %v1013, %v1017
  %v1028 = vunpack.c.l.b16 %v1004
  %v1029 = vunpack.c.l.b16 %v1005
  %v1030 = vunpack.c.l.b16 %v1006
  %v1031 = vunpack.c.l.b16 %v1007
  %v1032 = vunpack.c.l.b16 %v1008
  %v1033 = vunpack.c.l.b16 %v1009
  %v1034 = vunpack.c.l.b16 %v1010
  %v1035 = vunpack.c.l.b16 %v1011
  %v1036 = vpack.c.b16 %v1029, %v1028
  %v1037 = vpack.c.b16 %v1031, %v1030
  %v1038 = vpack.c.b16 %v1033, %v1032
  %v1039 = vpack.c.b16 %v1035, %v1034
  %vm1044 = vcmask 523264
  %v1046 = vsel %vm1044, %v1012, 0
  %1048 = vmatprep.subr.bf16.mxu0 0
  %1049 = vmatpush1.bf16.msra.mxu0 %v1036
  %1050 = vmatprep.subr.bf16.mxu0 0
  %1051 = vmatpush1.bf16.msra.mxu0 %v1037
  %1052 = vmatprep.subr.bf16.mxu0 0
  %1053 = vmatpush1.bf16.msra.mxu0 %v1038
  %1054 = vmatprep.subr.bf16.mxu0 0
  %1055 = vmatpush1.bf16.msra.mxu0 %v1039
  %1056 = vmatprep.subr.bf16.mxu0 0
  %1057 = vmatpush1.bf16.msra.mxu0 0
  %1058 = vmatprep.subr.bf16.mxu0 0
  %1059 = vmatpush1.bf16.msra.mxu0 0
  %1060 = vmatprep.subr.bf16.mxu0 0
  %1061 = vmatpush1.bf16.msra.mxu0 0
  %1062 = vmatprep.subr.bf16.mxu0 0
  %1063 = vmatpush1.bf16.msra.mxu0 0
  %1064 = vmatprep.subr.bf16.mxu0 0
  %1065 = vmatpush1.bf16.msra.mxu0 0
  %1066 = vmatprep.subr.bf16.mxu0 0
  %1067 = vmatpush1.bf16.msra.mxu0 0
  %1068 = vmatprep.subr.bf16.mxu0 0
  %1069 = vmatpush1.bf16.msra.mxu0 0
  %1070 = vmatprep.subr.bf16.mxu0 0
  %1071 = vmatpush1.bf16.msra.mxu0 0
  %1072 = vmatprep.subr.bf16.mxu0 0
  %1073 = vmatpush1.bf16.msra.mxu0 0
  %1074 = vmatprep.subr.bf16.mxu0 0
  %1075 = vmatpush1.bf16.msra.mxu0 0
  %1076 = vmatprep.subr.bf16.mxu0 0
  %1077 = vmatpush1.bf16.msra.mxu0 0
  %1078 = vmatprep.subr.bf16.mxu0 0
  %1079 = vmatpush1.bf16.msra.mxu0 0
  %1080 = vmatprep.mubr.bf16.mxu0 0
  %1081 = vmatmul.mubr.bf16.gmra.mrb[0].mxu0 %v1046
  %v1082 = vpop.f32.mrb[0].mxu0
  %v1083 = vadd.f32 %v1018, %v1082
  %v1084 = vpop.f32.mrb[0].mxu0
  %v1085 = vpop.f32.mrb[0].mxu0
  %v1086 = vadd.f32 %v1018, %v1085
  %v1087 = vpop.f32.mrb[0].mxu0
  %1088 = vdwg.mxu0
  %v1089 = vadd.f32 %v916, %v1083
  %v1090 = vadd.f32 %v917, %v1086
  %v1091 = vld [vmem:[%s18] sm:$0x1]
  %v1092 = vld [vmem:[%s19] sm:$0x1]
  %v1093 = vsel %vm75, %v1089, 0.0
  %1094 = vadd.xlane.f32.xlu0 %v1093
  %v1095 = vpop.xlane.xlu0 %1094
  %v1096 = vsel %vm75, %v1090, 0.0
  %1097 = vadd.xlane.f32.xlu0 %v1096
  %v1098 = vpop.xlane.xlu0 %1097
  %v1099 = vmul.f32 %v1095, %v82
  %v1100 = vmul.f32 %v1098, %v82
  %v1101 = vsub.f32 %v1089, %v1099
  %v1102 = vsub.f32 %v1090, %v1100
  %v1103 = vmul.f32 %v1101, %v1101
  %v1104 = vmul.f32 %v1102, %v1102
  %v1105 = vsel %vm75, %v1103, 0.0
  %1106 = vadd.xlane.f32.xlu0 %v1105
  %v1107 = vpop.xlane.xlu0 %1106
  %v1108 = vsel %vm75, %v1104, 0.0
  %1109 = vadd.xlane.f32.xlu0 %v1108
  %v1110 = vpop.xlane.xlu0 %1109
  %v1111 = vmul.f32 %v1107, %v82
  %v1112 = vmul.f32 %v1110, %v82
  %v1113 = vadd.f32 %v1111, 1e-12
  %v1114 = vadd.f32 %v1112, 1e-12
  %v1115 = vrsqrt.pop %v1113
  %v1116 = vrsqrt.pop %v1114
  %v1117 = vmul.f32 %v1101, %v1115
  %v1118 = vmul.f32 %v1102, %v1116
  %v1120 = vlaneseq
  %v1121 = vshrl.u32 %v1120, 7
  %v1122 = vsub.s32 0, %v1121
  %v1123 = vrot.slane %v1091, %v1122
  %v1125 = vmul.f32 %v1117, %v1123
  %v1126 = vmul.f32 %v1118, %v1123
  %v1128 = vlaneseq
  %v1129 = vshrl.u32 %v1128, 7
  %v1130 = vsub.s32 0, %v1129
  %v1131 = vrot.slane %v1092, %v1130
  %v1133 = vadd.f32 %v1125, %v1131
  %v1134 = vadd.f32 %v1126, %v1131
  %s1135 = scalar_lea.vmem %s4, 32
  %v1136 = vld [vmem:[%s1135] sm:$0xf]
  %v1137 = vld [vmem:[%s1135 + $0x4] sm:$0xf]
  %v1138 = vld [vmem:[%s1135 + $0x8] sm:$0xf]
  %v1139 = vld [vmem:[%s1135 + $0xc] sm:$0xf]
  %v1140 = vpack.c.bf16 %v1134, %v1133
  %s1141 = scalar_lea.vmem %s7, 2
  %v1142 = vld [vmem:[%s1141] sm:$0x1]
  %v1144 = vlaneseq
  %v1145 = vshrl.u32 %v1144, 7
  %v1146 = vsub.s32 0, %v1145
  %v1147 = vrot.slane %v1142, %v1146
  %v1153 = vunpack.c.l.b16 %v1136
  %v1154 = vunpack.c.l.b16 %v1137
  %v1155 = vunpack.c.l.b16 %v1138
  %v1156 = vunpack.c.l.b16 %v1139
  %v1157 = vpack.c.b16 %v1154, %v1153
  %v1158 = vpack.c.b16 %v1156, %v1155
  %v1162 = vsel %vm75, %v1140, 0
  %1164 = vmatprep.subr.bf16.mxu0 0
  %1165 = vmatpush1.bf16.msra.mxu0 %v1157
  %1166 = vmatprep.subr.bf16.mxu0 0
  %1167 = vmatpush1.bf16.msra.mxu0 %v1158
  %1168 = vmatprep.subr.bf16.mxu0 0
  %1169 = vmatpush1.bf16.msra.mxu0 0
  %1170 = vmatprep.subr.bf16.mxu0 0
  %1171 = vmatpush1.bf16.msra.mxu0 0
  %1172 = vmatprep.subr.bf16.mxu0 0
  %1173 = vmatpush1.bf16.msra.mxu0 0
  %1174 = vmatprep.subr.bf16.mxu0 0
  %1175 = vmatpush1.bf16.msra.mxu0 0
  %1176 = vmatprep.subr.bf16.mxu0 0
  %1177 = vmatpush1.bf16.msra.mxu0 0
  %1178 = vmatprep.subr.bf16.mxu0 0
  %1179 = vmatpush1.bf16.msra.mxu0 0
  %1180 = vmatprep.subr.bf16.mxu0 0
  %1181 = vmatpush1.bf16.msra.mxu0 0
  %1182 = vmatprep.subr.bf16.mxu0 0
  %1183 = vmatpush1.bf16.msra.mxu0 0
  %1184 = vmatprep.subr.bf16.mxu0 0
  %1185 = vmatpush1.bf16.msra.mxu0 0
  %1186 = vmatprep.subr.bf16.mxu0 0
  %1187 = vmatpush1.bf16.msra.mxu0 0
  %1188 = vmatprep.subr.bf16.mxu0 0
  %1189 = vmatpush1.bf16.msra.mxu0 0
  %1190 = vmatprep.subr.bf16.mxu0 0
  %1191 = vmatpush1.bf16.msra.mxu0 0
  %1192 = vmatprep.subr.bf16.mxu0 0
  %1193 = vmatpush1.bf16.msra.mxu0 0
  %1194 = vmatprep.subr.bf16.mxu0 0
  %1195 = vmatpush1.bf16.msra.mxu0 0
  %1196 = vmatprep.mubr.bf16.mxu0 0
  %1197 = vmatmul.mubr.bf16.gmra.mrb[0].mxu0 %v1162
  %v1198 = vpop.f32.mrb[0].mxu0
  %v1199 = vadd.f32 %v1147, %v1198
  %v1200 = vpop.f32.mrb[0].mxu0
  %v1201 = vpop.f32.mrb[0].mxu0
  %v1202 = vadd.f32 %v1147, %v1201
  %v1203 = vpop.f32.mrb[0].mxu0
  %1204 = vdwg.mxu0
  %s1205 = scalar_lea.vmem %s5, 32
  %v1206 = vld [vmem:[%s1205] sm:$0xf]
  %v1207 = vld [vmem:[%s1205 + $0x4] sm:$0xf]
  %v1208 = vld [vmem:[%s1205 + $0x8] sm:$0xf]
  %v1209 = vld [vmem:[%s1205 + $0xc] sm:$0xf]
  %s1210 = scalar_lea.vmem %s8, 2
  %v1211 = vld [vmem:[%s1210] sm:$0x1]
  %v1213 = vlaneseq
  %v1214 = vshrl.u32 %v1213, 7
  %v1215 = vsub.s32 0, %v1214
  %v1216 = vrot.slane %v1211, %v1215
  %v1222 = vunpack.c.l.b16 %v1206
  %v1223 = vunpack.c.l.b16 %v1207
  %v1224 = vunpack.c.l.b16 %v1208
  %v1225 = vunpack.c.l.b16 %v1209
  %v1226 = vpack.c.b16 %v1223, %v1222
  %v1227 = vpack.c.b16 %v1225, %v1224
  %1230 = vmatprep.subr.bf16.mxu0 0
  %1231 = vmatpush1.bf16.msra.mxu0 %v1226
  %1232 = vmatprep.subr.bf16.mxu0 0
  %1233 = vmatpush1.bf16.msra.mxu0 %v1227
  %1234 = vmatprep.subr.bf16.mxu0 0
  %1235 = vmatpush1.bf16.msra.mxu0 0
  %1236 = vmatprep.subr.bf16.mxu0 0
  %1237 = vmatpush1.bf16.msra.mxu0 0
  %1238 = vmatprep.subr.bf16.mxu0 0
  %1239 = vmatpush1.bf16.msra.mxu0 0
  %1240 = vmatprep.subr.bf16.mxu0 0
  %1241 = vmatpush1.bf16.msra.mxu0 0
  %1242 = vmatprep.subr.bf16.mxu0 0
  %1243 = vmatpush1.bf16.msra.mxu0 0
  %1244 = vmatprep.subr.bf16.mxu0 0
  %1245 = vmatpush1.bf16.msra.mxu0 0
  %1246 = vmatprep.subr.bf16.mxu0 0
  %1247 = vmatpush1.bf16.msra.mxu0 0
  %1248 = vmatprep.subr.bf16.mxu0 0
  %1249 = vmatpush1.bf16.msra.mxu0 0
  %1250 = vmatprep.subr.bf16.mxu0 0
  %1251 = vmatpush1.bf16.msra.mxu0 0
  %1252 = vmatprep.subr.bf16.mxu0 0
  %1253 = vmatpush1.bf16.msra.mxu0 0
  %1254 = vmatprep.subr.bf16.mxu0 0
  %1255 = vmatpush1.bf16.msra.mxu0 0
  %1256 = vmatprep.subr.bf16.mxu0 0
  %1257 = vmatpush1.bf16.msra.mxu0 0
  %1258 = vmatprep.subr.bf16.mxu0 0
  %1259 = vmatpush1.bf16.msra.mxu0 0
  %1260 = vmatprep.subr.bf16.mxu0 0
  %1261 = vmatpush1.bf16.msra.mxu0 0
  %1262 = vmatprep.mubr.bf16.mxu0 0
  %1263 = vmatmul.mubr.bf16.gmra.mrb[0].mxu0 %v1162
  %v1264 = vpop.f32.mrb[0].mxu0
  %v1265 = vadd.f32 %v1216, %v1264
  %v1266 = vpop.f32.mrb[0].mxu0
  %v1267 = vpop.f32.mrb[0].mxu0
  %v1268 = vadd.f32 %v1216, %v1267
  %v1269 = vpop.f32.mrb[0].mxu0
  %1270 = vdwg.mxu0
  %s1271 = scalar_lea.vmem %s6, 32
  %v1272 = vld [vmem:[%s1271] sm:$0xf]
  %v1273 = vld [vmem:[%s1271 + $0x4] sm:$0xf]
  %v1274 = vld [vmem:[%s1271 + $0x8] sm:$0xf]
  %v1275 = vld [vmem:[%s1271 + $0xc] sm:$0xf]
  %s1276 = scalar_lea.vmem %s9, 2
  %v1277 = vld [vmem:[%s1276] sm:$0x1]
  %v1279 = vlaneseq
  %v1280 = vshrl.u32 %v1279, 7
  %v1281 = vsub.s32 0, %v1280
  %v1282 = vrot.slane %v1277, %v1281
  %v1288 = vunpack.c.l.b16 %v1272
  %v1289 = vunpack.c.l.b16 %v1273
  %v1290 = vunpack.c.l.b16 %v1274
  %v1291 = vunpack.c.l.b16 %v1275
  %v1292 = vpack.c.b16 %v1289, %v1288
  %v1293 = vpack.c.b16 %v1291, %v1290
  %1296 = vmatprep.subr.bf16.mxu0 0
  %1297 = vmatpush1.bf16.msra.mxu0 %v1292
  %1298 = vmatprep.subr.bf16.mxu0 0
  %1299 = vmatpush1.bf16.msra.mxu0 %v1293
  %1300 = vmatprep.subr.bf16.mxu0 0
  %1301 = vmatpush1.bf16.msra.mxu0 0
  %1302 = vmatprep.subr.bf16.mxu0 0
  %1303 = vmatpush1.bf16.msra.mxu0 0
  %1304 = vmatprep.subr.bf16.mxu0 0
  %1305 = vmatpush1.bf16.msra.mxu0 0
  %1306 = vmatprep.subr.bf16.mxu0 0
  %1307 = vmatpush1.bf16.msra.mxu0 0
  %1308 = vmatprep.subr.bf16.mxu0 0
  %1309 = vmatpush1.bf16.msra.mxu0 0
  %1310 = vmatprep.subr.bf16.mxu0 0
  %1311 = vmatpush1.bf16.msra.mxu0 0
  %1312 = vmatprep.subr.bf16.mxu0 0
  %1313 = vmatpush1.bf16.msra.mxu0 0
  %1314 = vmatprep.subr.bf16.mxu0 0
  %1315 = vmatpush1.bf16.msra.mxu0 0
  %1316 = vmatprep.subr.bf16.mxu0 0
  %1317 = vmatpush1.bf16.msra.mxu0 0
  %1318 = vmatprep.subr.bf16.mxu0 0
  %1319 = vmatpush1.bf16.msra.mxu0 0
  %1320 = vmatprep.subr.bf16.mxu0 0
  %1321 = vmatpush1.bf16.msra.mxu0 0
  %1322 = vmatprep.subr.bf16.mxu0 0
  %1323 = vmatpush1.bf16.msra.mxu0 0
  %1324 = vmatprep.subr.bf16.mxu0 0
  %1325 = vmatpush1.bf16.msra.mxu0 0
  %1326 = vmatprep.subr.bf16.mxu0 0
  %1327 = vmatpush1.bf16.msra.mxu0 0
  %1328 = vmatprep.mubr.bf16.mxu0 0
  %1329 = vmatmul.mubr.bf16.gmra.mrb[0].mxu0 %v1162
  %v1330 = vpop.f32.mrb[0].mxu0
  %v1331 = vadd.f32 %v1282, %v1330
  %v1332 = vpop.f32.mrb[0].mxu0
  %v1333 = vpop.f32.mrb[0].mxu0
  %v1334 = vadd.f32 %v1282, %v1333
  %v1335 = vpop.f32.mrb[0].mxu0
  %1336 = vdwg.mxu0
  %v1337 = vpack.c.bf16 %v1202, %v1199
  %v1338 = vpack.c.bf16 %v1268, %v1265
  %v1340 = vsel %vm317, %v1337, 0
  %v1343 = vsel %vm317, %v1338, 0
  %1345 = vmatprep.subr.bf16.mxu0 0
  %1346 = vmatpush1.bf16.xpose.msra.mxu0 %v1343
  %1347 = vmatprep.subr.bf16.mxu0 0
  %1348 = vmatpush1.bf16.xpose.msra.mxu0 0
  %1349 = vmatprep.subr.bf16.mxu0 0
  %1350 = vmatpush1.bf16.xpose.msra.mxu0 0
  %1351 = vmatprep.subr.bf16.mxu0 0
  %1352 = vmatpush1.bf16.xpose.msra.mxu0 0
  %1353 = vmatprep.subr.bf16.mxu0 0
  %1354 = vmatpush1.bf16.xpose.msra.mxu0 0
  %1355 = vmatprep.subr.bf16.mxu0 0
  %1356 = vmatpush1.bf16.xpose.msra.mxu0 0
  %1357 = vmatprep.subr.bf16.mxu0 0
  %1358 = vmatpush1.bf16.xpose.msra.mxu0 0
  %1359 = vmatprep.subr.bf16.mxu0 0
  %1360 = vmatpush1.bf16.xpose.msra.mxu0 0
  %1361 = vmatprep.subr.bf16.mxu0 0
  %1362 = vmatpush1.bf16.xpose.msra.mxu0 0
  %1363 = vmatprep.subr.bf16.mxu0 0
  %1364 = vmatpush1.bf16.xpose.msra.mxu0 0
  %1365 = vmatprep.subr.bf16.mxu0 0
  %1366 = vmatpush1.bf16.xpose.msra.mxu0 0
  %1367 = vmatprep.subr.bf16.mxu0 0
  %1368 = vmatpush1.bf16.xpose.msra.mxu0 0
  %1369 = vmatprep.subr.bf16.mxu0 0
  %1370 = vmatpush1.bf16.xpose.msra.mxu0 0
  %1371 = vmatprep.subr.bf16.mxu0 0
  %1372 = vmatpush1.bf16.xpose.msra.mxu0 0
  %1373 = vmatprep.subr.bf16.mxu0 0
  %1374 = vmatpush1.bf16.xpose.msra.mxu0 0
  %1375 = vmatprep.subr.bf16.mxu0 0
  %1376 = vmatpush1.bf16.xpose.msra.mxu0 0
  %1377 = vmatprep.mubr.bf16.mxu0 0
  %1378 = vmatmul.mubr.bf16.gmra.mrb[0].mxu0 %v1340
  %v1379 = vpop.f32.mrb[0].mxu0
  %v1380 = vadd.f32 0.0, %v1379
  %v1381 = vpop.f32.mrb[0].mxu0
  %v1382 = vpop.f32.mrb[0].mxu0
  %v1383 = vadd.f32 0.0, %v1382
  %v1384 = vpop.f32.mrb[0].mxu0
  %1385 = vdwg.mxu0
  %v1386 = vmul.f32 %v1380, 0.25
  %v1387 = vmul.f32 %v1383, 0.25
  %v1388 = vadd.f32 %v1386, %v69
  %v1389 = vadd.f32 %v1387, %v70
  %v1390 = vsel %vm317, %v1388, -inf
  %1391 = vmax.xlane.f32.xlu0 %v1390
  %v1392 = vpop.xlane.xlu0 %1391
  %v1393 = vsel %vm317, %v1389, -inf
  %1394 = vmax.xlane.f32.xlu0 %v1393
  %v1395 = vpop.xlane.xlu0 %1394
  %v1396 = vsub.f32 %v1388, %v1392
  %v1397 = vsub.f32 %v1389, %v1395
  %v1398 = vmul.f32 %v1396, 1.442695
  %v1399 = vpow.pop %v1398
  %v1400 = vmul.f32 %v1397, 1.442695
  %v1401 = vpow.pop %v1400
  %v1402 = vsel %vm317, %v1399, 0.0
  %1403 = vadd.xlane.f32.xlu0 %v1402
  %v1404 = vpop.xlane.xlu0 %1403
  %v1405 = vsel %vm317, %v1401, 0.0
  %1406 = vadd.xlane.f32.xlu0 %v1405
  %v1407 = vpop.xlane.xlu0 %1406
  %v1408 = vrcp.pop %v1404
  %v1409 = vrcp.pop %v1407
  %v1410 = vmul.f32 %v1399, %v1408
  %v1411 = vmul.f32 %v1401, %v1409
  %v1412 = vpack.c.bf16 %v1411, %v1410
  %v1413 = vpack.c.bf16 %v1334, %v1331
  %v1415 = vsel %vm317, %v1412, 0
  %1417 = vmatprep.subr.bf16.mxu0 0
  %1418 = vmatpush1.bf16.msra.mxu0 %v1413
  %1419 = vmatprep.subr.bf16.mxu0 0
  %1420 = vmatpush1.bf16.msra.mxu0 0
  %1421 = vmatprep.subr.bf16.mxu0 0
  %1422 = vmatpush1.bf16.msra.mxu0 0
  %1423 = vmatprep.subr.bf16.mxu0 0
  %1424 = vmatpush1.bf16.msra.mxu0 0
  %1425 = vmatprep.subr.bf16.mxu0 0
  %1426 = vmatpush1.bf16.msra.mxu0 0
  %1427 = vmatprep.subr.bf16.mxu0 0
  %1428 = vmatpush1.bf16.msra.mxu0 0
  %1429 = vmatprep.subr.bf16.mxu0 0
  %1430 = vmatpush1.bf16.msra.mxu0 0
  %1431 = vmatprep.subr.bf16.mxu0 0
  %1432 = vmatpush1.bf16.msra.mxu0 0
  %1433 = vmatprep.subr.bf16.mxu0 0
  %1434 = vmatpush1.bf16.msra.mxu0 0
  %1435 = vmatprep.subr.bf16.mxu0 0
  %1436 = vmatpush1.bf16.msra.mxu0 0
  %1437 = vmatprep.subr.bf16.mxu0 0
  %1438 = vmatpush1.bf16.msra.mxu0 0
  %1439 = vmatprep.subr.bf16.mxu0 0
  %1440 = vmatpush1.bf16.msra.mxu0 0
  %1441 = vmatprep.subr.bf16.mxu0 0
  %1442 = vmatpush1.bf16.msra.mxu0 0
  %1443 = vmatprep.subr.bf16.mxu0 0
  %1444 = vmatpush1.bf16.msra.mxu0 0
  %1445 = vmatprep.subr.bf16.mxu0 0
  %1446 = vmatpush1.bf16.msra.mxu0 0
  %1447 = vmatprep.subr.bf16.mxu0 0
  %1448 = vmatpush1.bf16.msra.mxu0 0
  %1449 = vmatprep.mubr.bf16.mxu0 0
  %1450 = vmatmul.mubr.bf16.gmra.mrb[0].mxu0 %v1415
  %v1451 = vpop.f32.mrb[0].mxu0
  %v1452 = vadd.f32 0.0, %v1451
  %v1453 = vpop.f32.mrb[0].mxu0
  %v1454 = vpop.f32.mrb[0].mxu0
  %v1455 = vadd.f32 0.0, %v1454
  %v1456 = vpop.f32.mrb[0].mxu0
  %1457 = vdwg.mxu0
  %s1458 = scalar_lea.vmem %s10, 16
  %v1459 = vld [vmem:[%s1458] sm:$0xf]
  %v1460 = vld [vmem:[%s1458 + $0x4] sm:$0xf]
  %v1461 = vpack.c.bf16 %v1455, %v1452
  %s1462 = scalar_lea.vmem %s4, 48
  %v1463 = vld [vmem:[%s1462] sm:$0xf]
  %v1464 = vld [vmem:[%s1462 + $0x4] sm:$0xf]
  %v1465 = vld [vmem:[%s1462 + $0x8] sm:$0xf]
  %v1466 = vld [vmem:[%s1462 + $0xc] sm:$0xf]
  %s1467 = scalar_lea.vmem %s7, 3
  %v1468 = vld [vmem:[%s1467] sm:$0x1]
  %v1470 = vlaneseq
  %v1471 = vshrl.u32 %v1470, 7
  %v1472 = vsub.s32 0, %v1471
  %v1473 = vrot.slane %v1468, %v1472
  %v1479 = vunpack.c.l.b16 %v1463
  %v1480 = vunpack.c.l.b16 %v1464
  %v1481 = vunpack.c.l.b16 %v1465
  %v1482 = vunpack.c.l.b16 %v1466
  %v1483 = vpack.c.b16 %v1480, %v1479
  %v1484 = vpack.c.b16 %v1482, %v1481
  %1487 = vmatprep.subr.bf16.mxu0 0
  %1488 = vmatpush1.bf16.msra.mxu0 %v1483
  %1489 = vmatprep.subr.bf16.mxu0 0
  %1490 = vmatpush1.bf16.msra.mxu0 %v1484
  %1491 = vmatprep.subr.bf16.mxu0 0
  %1492 = vmatpush1.bf16.msra.mxu0 0
  %1493 = vmatprep.subr.bf16.mxu0 0
  %1494 = vmatpush1.bf16.msra.mxu0 0
  %1495 = vmatprep.subr.bf16.mxu0 0
  %1496 = vmatpush1.bf16.msra.mxu0 0
  %1497 = vmatprep.subr.bf16.mxu0 0
  %1498 = vmatpush1.bf16.msra.mxu0 0
  %1499 = vmatprep.subr.bf16.mxu0 0
  %1500 = vmatpush1.bf16.msra.mxu0 0
  %1501 = vmatprep.subr.bf16.mxu0 0
  %1502 = vmatpush1.bf16.msra.mxu0 0
  %1503 = vmatprep.subr.bf16.mxu0 0
  %1504 = vmatpush1.bf16.msra.mxu0 0
  %1505 = vmatprep.subr.bf16.mxu0 0
  %1506 = vmatpush1.bf16.msra.mxu0 0
  %1507 = vmatprep.subr.bf16.mxu0 0
  %1508 = vmatpush1.bf16.msra.mxu0 0
  %1509 = vmatprep.subr.bf16.mxu0 0
  %1510 = vmatpush1.bf16.msra.mxu0 0
  %1511 = vmatprep.subr.bf16.mxu0 0
  %1512 = vmatpush1.bf16.msra.mxu0 0
  %1513 = vmatprep.subr.bf16.mxu0 0
  %1514 = vmatpush1.bf16.msra.mxu0 0
  %1515 = vmatprep.subr.bf16.mxu0 0
  %1516 = vmatpush1.bf16.msra.mxu0 0
  %1517 = vmatprep.subr.bf16.mxu0 0
  %1518 = vmatpush1.bf16.msra.mxu0 0
  %1519 = vmatprep.mubr.bf16.mxu0 0
  %1520 = vmatmul.mubr.bf16.gmra.mrb[0].mxu0 %v1162
  %v1521 = vpop.f32.mrb[0].mxu0
  %v1522 = vadd.f32 %v1473, %v1521
  %v1523 = vpop.f32.mrb[0].mxu0
  %v1524 = vpop.f32.mrb[0].mxu0
  %v1525 = vadd.f32 %v1473, %v1524
  %v1526 = vpop.f32.mrb[0].mxu0
  %1527 = vdwg.mxu0
  %s1528 = scalar_lea.vmem %s5, 48
  %v1529 = vld [vmem:[%s1528] sm:$0xf]
  %v1530 = vld [vmem:[%s1528 + $0x4] sm:$0xf]
  %v1531 = vld [vmem:[%s1528 + $0x8] sm:$0xf]
  %v1532 = vld [vmem:[%s1528 + $0xc] sm:$0xf]
  %s1533 = scalar_lea.vmem %s8, 3
  %v1534 = vld [vmem:[%s1533] sm:$0x1]
  %v1536 = vlaneseq
  %v1537 = vshrl.u32 %v1536, 7
  %v1538 = vsub.s32 0, %v1537
  %v1539 = vrot.slane %v1534, %v1538
  %v1545 = vunpack.c.l.b16 %v1529
  %v1546 = vunpack.c.l.b16 %v1530
  %v1547 = vunpack.c.l.b16 %v1531
  %v1548 = vunpack.c.l.b16 %v1532
  %v1549 = vpack.c.b16 %v1546, %v1545
  %v1550 = vpack.c.b16 %v1548, %v1547
  %1553 = vmatprep.subr.bf16.mxu0 0
  %1554 = vmatpush1.bf16.msra.mxu0 %v1549
  %1555 = vmatprep.subr.bf16.mxu0 0
  %1556 = vmatpush1.bf16.msra.mxu0 %v1550
  %1557 = vmatprep.subr.bf16.mxu0 0
  %1558 = vmatpush1.bf16.msra.mxu0 0
  %1559 = vmatprep.subr.bf16.mxu0 0
  %1560 = vmatpush1.bf16.msra.mxu0 0
  %1561 = vmatprep.subr.bf16.mxu0 0
  %1562 = vmatpush1.bf16.msra.mxu0 0
  %1563 = vmatprep.subr.bf16.mxu0 0
  %1564 = vmatpush1.bf16.msra.mxu0 0
  %1565 = vmatprep.subr.bf16.mxu0 0
  %1566 = vmatpush1.bf16.msra.mxu0 0
  %1567 = vmatprep.subr.bf16.mxu0 0
  %1568 = vmatpush1.bf16.msra.mxu0 0
  %1569 = vmatprep.subr.bf16.mxu0 0
  %1570 = vmatpush1.bf16.msra.mxu0 0
  %1571 = vmatprep.subr.bf16.mxu0 0
  %1572 = vmatpush1.bf16.msra.mxu0 0
  %1573 = vmatprep.subr.bf16.mxu0 0
  %1574 = vmatpush1.bf16.msra.mxu0 0
  %1575 = vmatprep.subr.bf16.mxu0 0
  %1576 = vmatpush1.bf16.msra.mxu0 0
  %1577 = vmatprep.subr.bf16.mxu0 0
  %1578 = vmatpush1.bf16.msra.mxu0 0
  %1579 = vmatprep.subr.bf16.mxu0 0
  %1580 = vmatpush1.bf16.msra.mxu0 0
  %1581 = vmatprep.subr.bf16.mxu0 0
  %1582 = vmatpush1.bf16.msra.mxu0 0
  %1583 = vmatprep.subr.bf16.mxu0 0
  %1584 = vmatpush1.bf16.msra.mxu0 0
  %1585 = vmatprep.mubr.bf16.mxu0 0
  %1586 = vmatmul.mubr.bf16.gmra.mrb[0].mxu0 %v1162
  %v1587 = vpop.f32.mrb[0].mxu0
  %v1588 = vadd.f32 %v1539, %v1587
  %v1589 = vpop.f32.mrb[0].mxu0
  %v1590 = vpop.f32.mrb[0].mxu0
  %v1591 = vadd.f32 %v1539, %v1590
  %v1592 = vpop.f32.mrb[0].mxu0
  %1593 = vdwg.mxu0
  %s1594 = scalar_lea.vmem %s6, 48
  %v1595 = vld [vmem:[%s1594] sm:$0xf]
  %v1596 = vld [vmem:[%s1594 + $0x4] sm:$0xf]
  %v1597 = vld [vmem:[%s1594 + $0x8] sm:$0xf]
  %v1598 = vld [vmem:[%s1594 + $0xc] sm:$0xf]
  %s1599 = scalar_lea.vmem %s9, 3
  %v1600 = vld [vmem:[%s1599] sm:$0x1]
  %v1602 = vlaneseq
  %v1603 = vshrl.u32 %v1602, 7
  %v1604 = vsub.s32 0, %v1603
  %v1605 = vrot.slane %v1600, %v1604
  %v1611 = vunpack.c.l.b16 %v1595
  %v1612 = vunpack.c.l.b16 %v1596
  %v1613 = vunpack.c.l.b16 %v1597
  %v1614 = vunpack.c.l.b16 %v1598
  %v1615 = vpack.c.b16 %v1612, %v1611
  %v1616 = vpack.c.b16 %v1614, %v1613
  %1619 = vmatprep.subr.bf16.mxu0 0
  %1620 = vmatpush1.bf16.msra.mxu0 %v1615
  %1621 = vmatprep.subr.bf16.mxu0 0
  %1622 = vmatpush1.bf16.msra.mxu0 %v1616
  %1623 = vmatprep.subr.bf16.mxu0 0
  %1624 = vmatpush1.bf16.msra.mxu0 0
  %1625 = vmatprep.subr.bf16.mxu0 0
  %1626 = vmatpush1.bf16.msra.mxu0 0
  %1627 = vmatprep.subr.bf16.mxu0 0
  %1628 = vmatpush1.bf16.msra.mxu0 0
  %1629 = vmatprep.subr.bf16.mxu0 0
  %1630 = vmatpush1.bf16.msra.mxu0 0
  %1631 = vmatprep.subr.bf16.mxu0 0
  %1632 = vmatpush1.bf16.msra.mxu0 0
  %1633 = vmatprep.subr.bf16.mxu0 0
  %1634 = vmatpush1.bf16.msra.mxu0 0
  %1635 = vmatprep.subr.bf16.mxu0 0
  %1636 = vmatpush1.bf16.msra.mxu0 0
  %1637 = vmatprep.subr.bf16.mxu0 0
  %1638 = vmatpush1.bf16.msra.mxu0 0
  %1639 = vmatprep.subr.bf16.mxu0 0
  %1640 = vmatpush1.bf16.msra.mxu0 0
  %1641 = vmatprep.subr.bf16.mxu0 0
  %1642 = vmatpush1.bf16.msra.mxu0 0
  %1643 = vmatprep.subr.bf16.mxu0 0
  %1644 = vmatpush1.bf16.msra.mxu0 0
  %1645 = vmatprep.subr.bf16.mxu0 0
  %1646 = vmatpush1.bf16.msra.mxu0 0
  %1647 = vmatprep.subr.bf16.mxu0 0
  %1648 = vmatpush1.bf16.msra.mxu0 0
  %1649 = vmatprep.subr.bf16.mxu0 0
  %1650 = vmatpush1.bf16.msra.mxu0 0
  %1651 = vmatprep.mubr.bf16.mxu0 0
  %1652 = vmatmul.mubr.bf16.gmra.mrb[0].mxu0 %v1162
  %v1653 = vpop.f32.mrb[0].mxu0
  %v1654 = vadd.f32 %v1605, %v1653
  %v1655 = vpop.f32.mrb[0].mxu0
  %v1656 = vpop.f32.mrb[0].mxu0
  %v1657 = vadd.f32 %v1605, %v1656
  %v1658 = vpop.f32.mrb[0].mxu0
  %1659 = vdwg.mxu0
  %v1660 = vpack.c.bf16 %v1525, %v1522
  %v1661 = vpack.c.bf16 %v1591, %v1588
  %v1663 = vsel %vm317, %v1660, 0
  %v1666 = vsel %vm317, %v1661, 0
  %1668 = vmatprep.subr.bf16.mxu0 0
  %1669 = vmatpush1.bf16.xpose.msra.mxu0 %v1666
  %1670 = vmatprep.subr.bf16.mxu0 0
  %1671 = vmatpush1.bf16.xpose.msra.mxu0 0
  %1672 = vmatprep.subr.bf16.mxu0 0
  %1673 = vmatpush1.bf16.xpose.msra.mxu0 0
  %1674 = vmatprep.subr.bf16.mxu0 0
  %1675 = vmatpush1.bf16.xpose.msra.mxu0 0
  %1676 = vmatprep.subr.bf16.mxu0 0
  %1677 = vmatpush1.bf16.xpose.msra.mxu0 0
  %1678 = vmatprep.subr.bf16.mxu0 0
  %1679 = vmatpush1.bf16.xpose.msra.mxu0 0
  %1680 = vmatprep.subr.bf16.mxu0 0
  %1681 = vmatpush1.bf16.xpose.msra.mxu0 0
  %1682 = vmatprep.subr.bf16.mxu0 0
  %1683 = vmatpush1.bf16.xpose.msra.mxu0 0
  %1684 = vmatprep.subr.bf16.mxu0 0
  %1685 = vmatpush1.bf16.xpose.msra.mxu0 0
  %1686 = vmatprep.subr.bf16.mxu0 0
  %1687 = vmatpush1.bf16.xpose.msra.mxu0 0
  %1688 = vmatprep.subr.bf16.mxu0 0
  %1689 = vmatpush1.bf16.xpose.msra.mxu0 0
  %1690 = vmatprep.subr.bf16.mxu0 0
  %1691 = vmatpush1.bf16.xpose.msra.mxu0 0
  %1692 = vmatprep.subr.bf16.mxu0 0
  %1693 = vmatpush1.bf16.xpose.msra.mxu0 0
  %1694 = vmatprep.subr.bf16.mxu0 0
  %1695 = vmatpush1.bf16.xpose.msra.mxu0 0
  %1696 = vmatprep.subr.bf16.mxu0 0
  %1697 = vmatpush1.bf16.xpose.msra.mxu0 0
  %1698 = vmatprep.subr.bf16.mxu0 0
  %1699 = vmatpush1.bf16.xpose.msra.mxu0 0
  %1700 = vmatprep.mubr.bf16.mxu0 0
  %1701 = vmatmul.mubr.bf16.gmra.mrb[0].mxu0 %v1663
  %v1702 = vpop.f32.mrb[0].mxu0
  %v1703 = vadd.f32 0.0, %v1702
  %v1704 = vpop.f32.mrb[0].mxu0
  %v1705 = vpop.f32.mrb[0].mxu0
  %v1706 = vadd.f32 0.0, %v1705
  %v1707 = vpop.f32.mrb[0].mxu0
  %1708 = vdwg.mxu0
  %v1709 = vmul.f32 %v1703, 0.25
  %v1710 = vmul.f32 %v1706, 0.25
  %v1711 = vadd.f32 %v1709, %v69
  %v1712 = vadd.f32 %v1710, %v70
  %v1713 = vsel %vm317, %v1711, -inf
  %1714 = vmax.xlane.f32.xlu0 %v1713
  %v1715 = vpop.xlane.xlu0 %1714
  %v1716 = vsel %vm317, %v1712, -inf
  %1717 = vmax.xlane.f32.xlu0 %v1716
  %v1718 = vpop.xlane.xlu0 %1717
  %v1719 = vsub.f32 %v1711, %v1715
  %v1720 = vsub.f32 %v1712, %v1718
  %v1721 = vmul.f32 %v1719, 1.442695
  %v1722 = vpow.pop %v1721
  %v1723 = vmul.f32 %v1720, 1.442695
  %v1724 = vpow.pop %v1723
  %v1725 = vsel %vm317, %v1722, 0.0
  %1726 = vadd.xlane.f32.xlu0 %v1725
  %v1727 = vpop.xlane.xlu0 %1726
  %v1728 = vsel %vm317, %v1724, 0.0
  %1729 = vadd.xlane.f32.xlu0 %v1728
  %v1730 = vpop.xlane.xlu0 %1729
  %v1731 = vrcp.pop %v1727
  %v1732 = vrcp.pop %v1730
  %v1733 = vmul.f32 %v1722, %v1731
  %v1734 = vmul.f32 %v1724, %v1732
  %v1735 = vpack.c.bf16 %v1734, %v1733
  %v1736 = vpack.c.bf16 %v1657, %v1654
  %v1738 = vsel %vm317, %v1735, 0
  %1740 = vmatprep.subr.bf16.mxu0 0
  %1741 = vmatpush1.bf16.msra.mxu0 %v1736
  %1742 = vmatprep.subr.bf16.mxu0 0
  %1743 = vmatpush1.bf16.msra.mxu0 0
  %1744 = vmatprep.subr.bf16.mxu0 0
  %1745 = vmatpush1.bf16.msra.mxu0 0
  %1746 = vmatprep.subr.bf16.mxu0 0
  %1747 = vmatpush1.bf16.msra.mxu0 0
  %1748 = vmatprep.subr.bf16.mxu0 0
  %1749 = vmatpush1.bf16.msra.mxu0 0
  %1750 = vmatprep.subr.bf16.mxu0 0
  %1751 = vmatpush1.bf16.msra.mxu0 0
  %1752 = vmatprep.subr.bf16.mxu0 0
  %1753 = vmatpush1.bf16.msra.mxu0 0
  %1754 = vmatprep.subr.bf16.mxu0 0
  %1755 = vmatpush1.bf16.msra.mxu0 0
  %1756 = vmatprep.subr.bf16.mxu0 0
  %1757 = vmatpush1.bf16.msra.mxu0 0
  %1758 = vmatprep.subr.bf16.mxu0 0
  %1759 = vmatpush1.bf16.msra.mxu0 0
  %1760 = vmatprep.subr.bf16.mxu0 0
  %1761 = vmatpush1.bf16.msra.mxu0 0
  %1762 = vmatprep.subr.bf16.mxu0 0
  %1763 = vmatpush1.bf16.msra.mxu0 0
  %1764 = vmatprep.subr.bf16.mxu0 0
  %1765 = vmatpush1.bf16.msra.mxu0 0
  %1766 = vmatprep.subr.bf16.mxu0 0
  %1767 = vmatpush1.bf16.msra.mxu0 0
  %1768 = vmatprep.subr.bf16.mxu0 0
  %1769 = vmatpush1.bf16.msra.mxu0 0
  %1770 = vmatprep.subr.bf16.mxu0 0
  %1771 = vmatpush1.bf16.msra.mxu0 0
  %1772 = vmatprep.mubr.bf16.mxu0 0
  %1773 = vmatmul.mubr.bf16.gmra.mrb[0].mxu0 %v1738
  %v1774 = vpop.f32.mrb[0].mxu0
  %v1775 = vadd.f32 0.0, %v1774
  %v1776 = vpop.f32.mrb[0].mxu0
  %v1777 = vpop.f32.mrb[0].mxu0
  %v1778 = vadd.f32 0.0, %v1777
  %v1779 = vpop.f32.mrb[0].mxu0
  %1780 = vdwg.mxu0
  %s1781 = scalar_lea.vmem %s10, 24
  %v1782 = vld [vmem:[%s1781] sm:$0xf]
  %v1783 = vld [vmem:[%s1781 + $0x4] sm:$0xf]
  %v1784 = vpack.c.bf16 %v1778, %v1775
  %v1787 = vunpack.c.l.b16 %v1782
  %v1788 = vunpack.c.l.b16 %v1783
  %v1789 = vpack.c.b16 %v1788, %v1787
  %v1792 = vsel %vm317, %v1784, 0
  %1794 = vmatprep.subr.bf16.mxu0 0
  %1795 = vmatpush1.bf16.msra.mxu0 %v1789
  %1796 = vmatprep.subr.bf16.mxu0 0
  %1797 = vmatpush1.bf16.msra.mxu0 0
  %1798 = vmatprep.subr.bf16.mxu0 0
  %1799 = vmatpush1.bf16.msra.mxu0 0
  %1800 = vmatprep.subr.bf16.mxu0 0
  %1801 = vmatpush1.bf16.msra.mxu0 0
  %1802 = vmatprep.subr.bf16.mxu0 0
  %1803 = vmatpush1.bf16.msra.mxu0 0
  %1804 = vmatprep.subr.bf16.mxu0 0
  %1805 = vmatpush1.bf16.msra.mxu0 0
  %1806 = vmatprep.subr.bf16.mxu0 0
  %1807 = vmatpush1.bf16.msra.mxu0 0
  %1808 = vmatprep.subr.bf16.mxu0 0
  %1809 = vmatpush1.bf16.msra.mxu0 0
  %1810 = vmatprep.subr.bf16.mxu0 0
  %1811 = vmatpush1.bf16.msra.mxu0 0
  %1812 = vmatprep.subr.bf16.mxu0 0
  %1813 = vmatpush1.bf16.msra.mxu0 0
  %1814 = vmatprep.subr.bf16.mxu0 0
  %1815 = vmatpush1.bf16.msra.mxu0 0
  %1816 = vmatprep.subr.bf16.mxu0 0
  %1817 = vmatpush1.bf16.msra.mxu0 0
  %1818 = vmatprep.subr.bf16.mxu0 0
  %1819 = vmatpush1.bf16.msra.mxu0 0
  %1820 = vmatprep.subr.bf16.mxu0 0
  %1821 = vmatpush1.bf16.msra.mxu0 0
  %1822 = vmatprep.subr.bf16.mxu0 0
  %1823 = vmatpush1.bf16.msra.mxu0 0
  %1824 = vmatprep.subr.bf16.mxu0 0
  %1825 = vmatpush1.bf16.msra.mxu0 0
  %1826 = vmatprep.mubr.bf16.mxu0 0
  %1827 = vmatmul.mubr.bf16.gmra.mrb[0].mxu0 %v1792
  %v1828 = vpop.f32.mrb[0].mxu0
  %v1829 = vadd.f32 0.0, %v1828
  %v1830 = vpop.f32.mrb[0].mxu0
  %v1831 = vpop.f32.mrb[0].mxu0
  %v1832 = vadd.f32 0.0, %v1831
  %v1833 = vpop.f32.mrb[0].mxu0
  %1834 = vdwg.mxu0
  %v1837 = vunpack.c.l.b16 %v1459
  %v1838 = vunpack.c.l.b16 %v1460
  %v1839 = vpack.c.b16 %v1838, %v1837
  %v1842 = vsel %vm317, %v1461, 0
  %1844 = vmatprep.subr.bf16.mxu0 0
  %1845 = vmatpush1.bf16.msra.mxu0 %v1839
  %1846 = vmatprep.subr.bf16.mxu0 0
  %1847 = vmatpush1.bf16.msra.mxu0 0
  %1848 = vmatprep.subr.bf16.mxu0 0
  %1849 = vmatpush1.bf16.msra.mxu0 0
  %1850 = vmatprep.subr.bf16.mxu0 0
  %1851 = vmatpush1.bf16.msra.mxu0 0
  %1852 = vmatprep.subr.bf16.mxu0 0
  %1853 = vmatpush1.bf16.msra.mxu0 0
  %1854 = vmatprep.subr.bf16.mxu0 0
  %1855 = vmatpush1.bf16.msra.mxu0 0
  %1856 = vmatprep.subr.bf16.mxu0 0
  %1857 = vmatpush1.bf16.msra.mxu0 0
  %1858 = vmatprep.subr.bf16.mxu0 0
  %1859 = vmatpush1.bf16.msra.mxu0 0
  %1860 = vmatprep.subr.bf16.mxu0 0
  %1861 = vmatpush1.bf16.msra.mxu0 0
  %1862 = vmatprep.subr.bf16.mxu0 0
  %1863 = vmatpush1.bf16.msra.mxu0 0
  %1864 = vmatprep.subr.bf16.mxu0 0
  %1865 = vmatpush1.bf16.msra.mxu0 0
  %1866 = vmatprep.subr.bf16.mxu0 0
  %1867 = vmatpush1.bf16.msra.mxu0 0
  %1868 = vmatprep.subr.bf16.mxu0 0
  %1869 = vmatpush1.bf16.msra.mxu0 0
  %1870 = vmatprep.subr.bf16.mxu0 0
  %1871 = vmatpush1.bf16.msra.mxu0 0
  %1872 = vmatprep.subr.bf16.mxu0 0
  %1873 = vmatpush1.bf16.msra.mxu0 0
  %1874 = vmatprep.subr.bf16.mxu0 0
  %1875 = vmatpush1.bf16.msra.mxu0 0
  %1876 = vmatprep.mubr.bf16.mxu0 0
  %1877 = vmatmul.mubr.bf16.gmra.mrb[0].mxu0 %v1842
  %v1878 = vpop.f32.mrb[0].mxu0
  %v1879 = vadd.f32 %v1829, %v1878
  %v1880 = vpop.f32.mrb[0].mxu0
  %v1881 = vpop.f32.mrb[0].mxu0
  %v1882 = vadd.f32 %v1832, %v1881
  %v1883 = vpop.f32.mrb[0].mxu0
  %1884 = vdwg.mxu0
  %v1885 = vadd.f32 %v1133, %v1879
  %v1886 = vadd.f32 %v1134, %v1882
  %s1887 = scalar_lea.vmem %s11, 1
  %v1888 = vld [vmem:[%s1887] sm:$0x1]
  %v1890 = vlaneseq
  %v1891 = vshrl.u32 %v1890, 7
  %v1892 = vsub.s32 0, %v1891
  %v1893 = vrot.slane %v1888, %v1892
  %v1895 = vadd.f32 %v1885, %v1893
  %v1896 = vadd.f32 %v1886, %v1893
  %s1897 = scalar_lea.vmem %s12, 1
  %v1898 = vld [vmem:[%s1897] sm:$0x1]
  %s1899 = scalar_lea.vmem %s13, 1
  %v1900 = vld [vmem:[%s1899] sm:$0x1]
  %v1901 = vsel %vm75, %v1895, 0.0
  %1902 = vadd.xlane.f32.xlu0 %v1901
  %v1903 = vpop.xlane.xlu0 %1902
  %v1904 = vsel %vm75, %v1896, 0.0
  %1905 = vadd.xlane.f32.xlu0 %v1904
  %v1906 = vpop.xlane.xlu0 %1905
  %v1907 = vmul.f32 %v1903, %v82
  %v1908 = vmul.f32 %v1906, %v82
  %v1909 = vsub.f32 %v1895, %v1907
  %v1910 = vsub.f32 %v1896, %v1908
  %v1911 = vmul.f32 %v1909, %v1909
  %v1912 = vmul.f32 %v1910, %v1910
  %v1913 = vsel %vm75, %v1911, 0.0
  %1914 = vadd.xlane.f32.xlu0 %v1913
  %v1915 = vpop.xlane.xlu0 %1914
  %v1916 = vsel %vm75, %v1912, 0.0
  %1917 = vadd.xlane.f32.xlu0 %v1916
  %v1918 = vpop.xlane.xlu0 %1917
  %v1919 = vmul.f32 %v1915, %v82
  %v1920 = vmul.f32 %v1918, %v82
  %v1921 = vadd.f32 %v1919, 1e-12
  %v1922 = vadd.f32 %v1920, 1e-12
  %v1923 = vrsqrt.pop %v1921
  %v1924 = vrsqrt.pop %v1922
  %v1925 = vmul.f32 %v1909, %v1923
  %v1926 = vmul.f32 %v1910, %v1924
  %v1928 = vlaneseq
  %v1929 = vshrl.u32 %v1928, 7
  %v1930 = vsub.s32 0, %v1929
  %v1931 = vrot.slane %v1898, %v1930
  %v1933 = vmul.f32 %v1925, %v1931
  %v1934 = vmul.f32 %v1926, %v1931
  %v1936 = vlaneseq
  %v1937 = vshrl.u32 %v1936, 7
  %v1938 = vsub.s32 0, %v1937
  %v1939 = vrot.slane %v1900, %v1938
  %v1941 = vadd.f32 %v1933, %v1939
  %v1942 = vadd.f32 %v1934, %v1939
  %s1943 = scalar_lea.vmem %s14, 16
  %v1944 = vld [vmem:[%s1943] sm:$0xf]
  %v1945 = vld [vmem:[%s1943 + $0x4] sm:$0xf]
  %v1946 = vld [vmem:[%s1943 + $0x8] sm:$0xf]
  %v1947 = vld [vmem:[%s1943 + $0xc] sm:$0xf]
  %v1948 = vpack.c.bf16 %v1942, %v1941
  %s1949 = scalar_lea.vmem %s15, 1
  %v1950 = vld [vmem:[%s1949] sm:$0x1]
  %v1952 = vlaneseq
  %v1953 = vshrl.u32 %v1952, 7
  %v1954 = vsub.s32 0, %v1953
  %v1955 = vrot.slane %v1950, %v1954
  %v1961 = vunpack.c.l.b16 %v1944
  %v1962 = vunpack.c.l.b16 %v1945
  %v1963 = vunpack.c.l.b16 %v1946
  %v1964 = vunpack.c.l.b16 %v1947
  %v1965 = vpack.c.b16 %v1962, %v1961
  %v1966 = vpack.c.b16 %v1964, %v1963
  %v1970 = vsel %vm75, %v1948, 0
  %1972 = vmatprep.subr.bf16.mxu0 0
  %1973 = vmatpush1.bf16.msra.mxu0 %v1965
  %1974 = vmatprep.subr.bf16.mxu0 0
  %1975 = vmatpush1.bf16.msra.mxu0 %v1966
  %1976 = vmatprep.subr.bf16.mxu0 0
  %1977 = vmatpush1.bf16.msra.mxu0 0
  %1978 = vmatprep.subr.bf16.mxu0 0
  %1979 = vmatpush1.bf16.msra.mxu0 0
  %1980 = vmatprep.subr.bf16.mxu0 0
  %1981 = vmatpush1.bf16.msra.mxu0 0
  %1982 = vmatprep.subr.bf16.mxu0 0
  %1983 = vmatpush1.bf16.msra.mxu0 0
  %1984 = vmatprep.subr.bf16.mxu0 0
  %1985 = vmatpush1.bf16.msra.mxu0 0
  %1986 = vmatprep.subr.bf16.mxu0 0
  %1987 = vmatpush1.bf16.msra.mxu0 0
  %1988 = vmatprep.subr.bf16.mxu0 0
  %1989 = vmatpush1.bf16.msra.mxu0 0
  %1990 = vmatprep.subr.bf16.mxu0 0
  %1991 = vmatpush1.bf16.msra.mxu0 0
  %1992 = vmatprep.subr.bf16.mxu0 0
  %1993 = vmatpush1.bf16.msra.mxu0 0
  %1994 = vmatprep.subr.bf16.mxu0 0
  %1995 = vmatpush1.bf16.msra.mxu0 0
  %1996 = vmatprep.subr.bf16.mxu0 0
  %1997 = vmatpush1.bf16.msra.mxu0 0
  %1998 = vmatprep.subr.bf16.mxu0 0
  %1999 = vmatpush1.bf16.msra.mxu0 0
  %2000 = vmatprep.subr.bf16.mxu0 0
  %2001 = vmatpush1.bf16.msra.mxu0 0
  %2002 = vmatprep.subr.bf16.mxu0 0
  %2003 = vmatpush1.bf16.msra.mxu0 0
  %2004 = vmatprep.mubr.bf16.mxu0 0
  %2005 = vmatmul.mubr.bf16.gmra.mrb[0].mxu0 %v1970
  %v2006 = vpop.f32.mrb[0].mxu0
  %v2007 = vadd.f32 %v1955, %v2006
  %v2008 = vpop.f32.mrb[0].mxu0
  %v2009 = vpop.f32.mrb[0].mxu0
  %v2010 = vadd.f32 %v1955, %v2009
  %v2011 = vpop.f32.mrb[0].mxu0
  %2012 = vdwg.mxu0
  %v2013 = vmul.f32 %v2007, %v2007
  %v2014 = vmul.f32 %v2010, %v2010
  %v2015 = vmul.f32 %v2007, %v2013
  %v2016 = vmul.f32 %v2010, %v2014
  %v2017 = vmul.f32 %v2015, 0.044715
  %v2018 = vmul.f32 %v2016, 0.044715
  %v2019 = vadd.f32 %v2007, %v2017
  %v2020 = vadd.f32 %v2010, %v2018
  %v2021 = vmul.f32 %v2019, 0.7978846
  %v2022 = vmul.f32 %v2020, 0.7978846
  %v2023 = vtanh.pop %v2021
  %v2024 = vtanh.pop %v2022
  %v2025 = vadd.f32 %v2023, 1.0
  %v2026 = vadd.f32 %v2024, 1.0
  %v2027 = vmul.f32 %v2025, 0.5
  %v2028 = vmul.f32 %v2026, 0.5
  %v2029 = vmul.f32 %v2007, %v2027
  %v2030 = vmul.f32 %v2010, %v2028
  %s2031 = scalar_lea.vmem %s16, 32
  %v2032 = vld [vmem:[%s2031] sm:$0xf]
  %v2033 = vld [vmem:[%s2031 + $0x4] sm:$0xf]
  %v2034 = vld [vmem:[%s2031 + $0x8] sm:$0xf]
  %v2035 = vld [vmem:[%s2031 + $0xc] sm:$0xf]
  %v2036 = vld [vmem:[%s2031 + $0x10] sm:$0xf]
  %v2037 = vld [vmem:[%s2031 + $0x14] sm:$0xf]
  %v2038 = vld [vmem:[%s2031 + $0x18] sm:$0xf]
  %v2039 = vld [vmem:[%s2031 + $0x1c] sm:$0xf]
  %v2040 = vpack.c.bf16 %v2030, %v2029
  %s2041 = scalar_lea.vmem %s17, 1
  %v2042 = vld [vmem:[%s2041] sm:$0x1]
  %v2044 = vlaneseq
  %v2045 = vshrl.u32 %v2044, 7
  %v2046 = vsub.s32 0, %v2045
  %v2047 = vrot.slane %v2042, %v2046
  %v2057 = vunpack.c.l.b16 %v2032
  %v2058 = vunpack.c.l.b16 %v2033
  %v2059 = vunpack.c.l.b16 %v2034
  %v2060 = vunpack.c.l.b16 %v2035
  %v2061 = vunpack.c.l.b16 %v2036
  %v2062 = vunpack.c.l.b16 %v2037
  %v2063 = vunpack.c.l.b16 %v2038
  %v2064 = vunpack.c.l.b16 %v2039
  %v2065 = vpack.c.b16 %v2058, %v2057
  %v2066 = vpack.c.b16 %v2060, %v2059
  %v2067 = vpack.c.b16 %v2062, %v2061
  %v2068 = vpack.c.b16 %v2064, %v2063
  %v2074 = vsel %vm1044, %v2040, 0
  %2076 = vmatprep.subr.bf16.mxu0 0
  %2077 = vmatpush1.bf16.msra.mxu0 %v2065
  %2078 = vmatprep.subr.bf16.mxu0 0
  %2079 = vmatpush1.bf16.msra.mxu0 %v2066
  %2080 = vmatprep.subr.bf16.mxu0 0
  %2081 = vmatpush1.bf16.msra.mxu0 %v2067
  %2082 = vmatprep.subr.bf16.mxu0 0
  %2083 = vmatpush1.bf16.msra.mxu0 %v2068
  %2084 = vmatprep.subr.bf16.mxu0 0
  %2085 = vmatpush1.bf16.msra.mxu0 0
  %2086 = vmatprep.subr.bf16.mxu0 0
  %2087 = vmatpush1.bf16.msra.mxu0 0
  %2088 = vmatprep.subr.bf16.mxu0 0
  %2089 = vmatpush1.bf16.msra.mxu0 0
  %2090 = vmatprep.subr.bf16.mxu0 0
  %2091 = vmatpush1.bf16.msra.mxu0 0
  %2092 = vmatprep.subr.bf16.mxu0 0
  %2093 = vmatpush1.bf16.msra.mxu0 0
  %2094 = vmatprep.subr.bf16.mxu0 0
  %2095 = vmatpush1.bf16.msra.mxu0 0
  %2096 = vmatprep.subr.bf16.mxu0 0
  %2097 = vmatpush1.bf16.msra.mxu0 0
  %2098 = vmatprep.subr.bf16.mxu0 0
  %2099 = vmatpush1.bf16.msra.mxu0 0
  %2100 = vmatprep.subr.bf16.mxu0 0
  %2101 = vmatpush1.bf16.msra.mxu0 0
  %2102 = vmatprep.subr.bf16.mxu0 0
  %2103 = vmatpush1.bf16.msra.mxu0 0
  %2104 = vmatprep.subr.bf16.mxu0 0
  %2105 = vmatpush1.bf16.msra.mxu0 0
  %2106 = vmatprep.subr.bf16.mxu0 0
  %2107 = vmatpush1.bf16.msra.mxu0 0
  %2108 = vmatprep.mubr.bf16.mxu0 0
  %2109 = vmatmul.mubr.bf16.gmra.mrb[0].mxu0 %v2074
  %v2110 = vpop.f32.mrb[0].mxu0
  %v2111 = vadd.f32 %v2047, %v2110
  %v2112 = vpop.f32.mrb[0].mxu0
  %v2113 = vpop.f32.mrb[0].mxu0
  %v2114 = vadd.f32 %v2047, %v2113
  %v2115 = vpop.f32.mrb[0].mxu0
  %2116 = vdwg.mxu0
  %v2117 = vadd.f32 %v1941, %v2111
  %v2118 = vadd.f32 %v1942, %v2114
  %s2119 = scalar_lea.vmem %s18, 1
  %v2120 = vld [vmem:[%s2119] sm:$0x1]
  %s2121 = scalar_lea.vmem %s19, 1
  %v2122 = vld [vmem:[%s2121] sm:$0x1]
  %v2123 = vsel %vm75, %v2117, 0.0
  %2124 = vadd.xlane.f32.xlu0 %v2123
  %v2125 = vpop.xlane.xlu0 %2124
  %v2126 = vsel %vm75, %v2118, 0.0
  %2127 = vadd.xlane.f32.xlu0 %v2126
  %v2128 = vpop.xlane.xlu0 %2127
  %v2129 = vmul.f32 %v2125, %v82
  %v2130 = vmul.f32 %v2128, %v82
  %v2131 = vsub.f32 %v2117, %v2129
  %v2132 = vsub.f32 %v2118, %v2130
  %v2133 = vmul.f32 %v2131, %v2131
  %v2134 = vmul.f32 %v2132, %v2132
  %v2135 = vsel %vm75, %v2133, 0.0
  %2136 = vadd.xlane.f32.xlu0 %v2135
  %v2137 = vpop.xlane.xlu0 %2136
  %v2138 = vsel %vm75, %v2134, 0.0
  %2139 = vadd.xlane.f32.xlu0 %v2138
  %v2140 = vpop.xlane.xlu0 %2139
  %v2141 = vmul.f32 %v2137, %v82
  %v2142 = vmul.f32 %v2140, %v82
  %v2143 = vadd.f32 %v2141, 1e-12
  %v2144 = vadd.f32 %v2142, 1e-12
  %v2145 = vrsqrt.pop %v2143
  %v2146 = vrsqrt.pop %v2144
  %v2147 = vmul.f32 %v2131, %v2145
  %v2148 = vmul.f32 %v2132, %v2146
  %v2150 = vlaneseq
  %v2151 = vshrl.u32 %v2150, 7
  %v2152 = vsub.s32 0, %v2151
  %v2153 = vrot.slane %v2120, %v2152
  %v2155 = vmul.f32 %v2147, %v2153
  %v2156 = vmul.f32 %v2148, %v2153
  %v2158 = vlaneseq
  %v2159 = vshrl.u32 %v2158, 7
  %v2160 = vsub.s32 0, %v2159
  %v2161 = vrot.slane %v2122, %v2160
  %v2163 = vadd.f32 %v2155, %v2161
  %v2164 = vadd.f32 %v2156, %v2161
  %v2165 = vld [vmem:[%s20] sm:$0x1]
  %v2166 = vpack.c.bf16 %v2164, %v2163
  %v2168 = vsel %vm75, %v2165, 0
  %v2171 = vsel %vm75, %v2166, 0
  %2173 = vmatprep.subr.bf16.mxu0 0
  %2174 = vmatpush1.bf16.xpose.msra.mxu0 %v2171
  %2175 = vmatprep.subr.bf16.mxu0 0
  %2176 = vmatpush1.bf16.xpose.msra.mxu0 0
  %2177 = vmatprep.subr.bf16.mxu0 0
  %2178 = vmatpush1.bf16.xpose.msra.mxu0 0
  %2179 = vmatprep.subr.bf16.mxu0 0
  %2180 = vmatpush1.bf16.xpose.msra.mxu0 0
  %2181 = vmatprep.subr.bf16.mxu0 0
  %2182 = vmatpush1.bf16.xpose.msra.mxu0 0
  %2183 = vmatprep.subr.bf16.mxu0 0
  %2184 = vmatpush1.bf16.xpose.msra.mxu0 0
  %2185 = vmatprep.subr.bf16.mxu0 0
  %2186 = vmatpush1.bf16.xpose.msra.mxu0 0
  %2187 = vmatprep.subr.bf16.mxu0 0
  %2188 = vmatpush1.bf16.xpose.msra.mxu0 0
  %2189 = vmatprep.subr.bf16.mxu0 0
  %2190 = vmatpush1.bf16.xpose.msra.mxu0 0
  %2191 = vmatprep.subr.bf16.mxu0 0
  %2192 = vmatpush1.bf16.xpose.msra.mxu0 0
  %2193 = vmatprep.subr.bf16.mxu0 0
  %2194 = vmatpush1.bf16.xpose.msra.mxu0 0
  %2195 = vmatprep.subr.bf16.mxu0 0
  %2196 = vmatpush1.bf16.xpose.msra.mxu0 0
  %2197 = vmatprep.subr.bf16.mxu0 0
  %2198 = vmatpush1.bf16.xpose.msra.mxu0 0
  %2199 = vmatprep.subr.bf16.mxu0 0
  %2200 = vmatpush1.bf16.xpose.msra.mxu0 0
  %2201 = vmatprep.subr.bf16.mxu0 0
  %2202 = vmatpush1.bf16.xpose.msra.mxu0 0
  %2203 = vmatprep.subr.bf16.mxu0 0
  %2204 = vmatpush1.bf16.xpose.msra.mxu0 0
  %2205 = vmatprep.mubr.bf16.mxu0 0
  %2206 = vmatmul.mubr.bf16.gmra.mrb[0].mxu0 %v2168
  %v2207 = vpop.f32.mrb[0].mxu0
  %v2208 = vadd.f32 0.0, %v2207
  %v2209 = vpop.f32.mrb[0].mxu0
  %v2210 = vpop.f32.mrb[0].mxu0
  %v2211 = vpop.f32.mrb[0].mxu0
  %2212 = vdwg.mxu0
  %vm2213 = vcmask 123904
  %2214 = vst.msk [vmem:[%s21] sm:$0x3] %vm2213, %v2208
  // Predicated region
  $region86: #{_lambda_.1} parent=0 // pred_check
    _
  $region87: #{_lambda_.1} parent=0 // pred_check_branch
    %2216 = sbr.rel (0) target = $region89
  $region88: #{_lambda_.1} parent=0 // pred_region
    _
  $region89: #{_lambda_.1} parent=0 // pred_fallthru
    _
  // Predicated region
  $region90: #{_lambda_.1} parent=0 // pred_check
    _
  $region91: #{_lambda_.1} parent=0 // pred_check_branch
    %2218 = sbr.rel (0) target = $region93
  $region92: #{_lambda_.1} parent=0 // pred_region
    _
  $region93: #{_lambda_.1} parent=0 // pred_fallthru
    _

</llo_original>
